<compile_context>
chip_gen: v7x
topology: tpu7x:2x2x1
jax: 0.10.0
libtpu: 0.0.40
codegen_flags: <defaults>
</compile_context>

<pallas_src>
import functools

import jax
import jax.numpy as jnp
from jax import lax
from jax.experimental import pallas as pl
from jax.experimental.pallas import tpu as pltpu

_VMEM_LIMIT_BYTES = 48 * 1024 * 1024


def _round_up(x, m):
    return ((x + m - 1) // m) * m


# ----------------------------------------------------------------------------
# Kernels
# ----------------------------------------------------------------------------
def _fused_conv_kernel(x_ref, w_ref, b_ref, o_ref, *, tap_offsets, leaky_relu):
    """stride==1 fused conv: per-tap row-shifted matmuls, accumulated in f32.

    x_ref: (1, R_pad, C)   f32  flattened zero-padded image for this batch elem
    w_ref: (taps, C, Np)   bf16 per-tap weights with BN scale folded in
    b_ref: (1, Np)         f32  folded BN/conv bias
    o_ref: (1, tm, Np)     f32  lane-dense (Np multiple of 128) output rows
    """
    _, tm, _ = o_ref.shape
    base = pl.multiple_of(pl.program_id(1) * tm, tm)
    acc = None
    for t, off in enumerate(tap_offsets):
        a = x_ref[0, pl.ds(base + off, tm), :].astype(jnp.bfloat16)      # (tm, C)
        p = jnp.dot(a, w_ref[t], preferred_element_type=jnp.float32)     # (tm, Np)
        acc = p if acc is None else acc + p
    y = acc + b_ref[...]                        # f32 epilogue
    if leaky_relu:
        y = jnp.where(y > 0, y, 0.1 * y)
    o_ref[0] = y.astype(o_ref.dtype)


def _matmul_bias_act_kernel(a_ref, w_ref, b_ref, o_ref, *, leaky_relu):
    """Fallback (stride>1): im2col rows tile @ reshaped weight + bias + LeakyReLU."""
    y = jnp.dot(a_ref[...], w_ref[...], preferred_element_type=jnp.float32)
    y = y + b_ref[...]
    if leaky_relu:
        y = jnp.where(y > 0, y, 0.1 * y)
    o_ref[...] = y.astype(o_ref.dtype)


# ----------------------------------------------------------------------------
# Wrappers
# ----------------------------------------------------------------------------
def _fold_bn_params(n_out, conv_bias, bn_params):
    """Eval-mode BN (+ optional conv bias) folded to per-channel scale/bias."""
    if bn_params is not None:
        inv_std = 1.0 / jnp.sqrt(bn_params["running_var"] + bn_params["eps"])
        scale = bn_params["gamma"] * inv_std
        bias = bn_params["beta"] - bn_params["running_mean"] * scale
        if conv_bias is not None:
            bias = bias + conv_bias * scale
    else:
        scale = jnp.ones((n_out,), jnp.float32)
        bias = conv_bias if conv_bias is not None else jnp.zeros((n_out,), jnp.float32)
    return scale.astype(jnp.float32), bias.astype(jnp.float32)


def _conv_fused_stride1(x_nhwc, w_folded, bias, *, size, pad, leaky_relu, tm_max):
    n, h, w, c = x_nhwc.shape
    n_out = w_folded.shape[0]
    hp, wp = h + 2 * pad, w + 2 * pad
    ho, wo = hp - size + 1, wp - size + 1
    n_out_p = _round_up(n_out, 128)                 # lane-dense output channels

    # Per-tap weights (taps, C, Np), BN scale already folded; zero-pad extra lanes.
    w_taps = jnp.transpose(w_folded, (2, 3, 1, 0)).reshape(size * size, c, n_out)
    w_taps = jnp.pad(w_taps, ((0, 0), (0, 0), (0, n_out_p - n_out))).astype(jnp.bfloat16)
    b_row = jnp.pad(bias, (0, n_out_p - n_out)).reshape(1, n_out_p).astype(jnp.float32)

    # Flattened zero-padded image.  Outputs are computed at all wp columns per row;
    # the wo..wp-1 "garbage" columns are sliced off afterwards, so every tap
    # (ky, kx) is the contiguous row shift ky*wp + kx of this buffer.
    xp = jnp.pad(x_nhwc, ((0, 0), (pad, pad), (pad, pad), (0, 0)))
    xf = xp.reshape(n, hp * wp, c)

    m_b = ho * wp                                   # output rows per batch element
    tm = min(tm_max, _round_up(m_b, 8))
    m_pad = pl.cdiv(m_b, tm) * tm
    off_max = (size - 1) * wp + (size - 1)
    r_pad = _round_up(m_pad + off_max, 8)           # keep all tap reads in bounds
    xf = jnp.pad(xf, ((0, 0), (0, r_pad - hp * wp), (0, 0)))
    # Note: xf stays f32 here; the activation tile is cast to bf16 in-kernel so the
    # MXU still runs bf16 x bf16 -> f32.  On v6e/v7x xf itself can also be stored
    # bf16 to halve activation HBM reads.

    tap_offsets = tuple(ky * wp + kx for ky in range(size) for kx in range(size))

    flops = 2 * n * ho * wo * size * size * c * n_out
    bytes_accessed = int(xf.size * 4 + w_taps.size * 2 + b_row.size * 4
                         + n * m_pad * n_out_p * 4)
    kernel = functools.partial(_fused_conv_kernel, tap_offsets=tap_offsets,
                               leaky_relu=leaky_relu)

    out = pl.pallas_call(
        kernel,
        out_shape=jax.ShapeDtypeStruct((n, m_pad, n_out_p), jnp.float32),
        grid_spec=pltpu.PrefetchScalarGridSpec(
            num_scalar_prefetch=0,
            grid=(n, m_pad // tm),
            in_specs=[
                pl.BlockSpec((1, r_pad, c), lambda b, i: (b, 0, 0)),       # image
                pl.BlockSpec((size * size, c, n_out_p), lambda b, i: (0, 0, 0)),
                pl.BlockSpec((1, n_out_p), lambda b, i: (0, 0)),           # bias
            ],
            out_specs=pl.BlockSpec((1, tm, n_out_p), lambda b, i: (b, i, 0)),
        ),
        compiler_params=pltpu.CompilerParams(
            dimension_semantics=("parallel", "parallel"),
            vmem_limit_bytes=_VMEM_LIMIT_BYTES),
        cost_estimate=pl.CostEstimate(flops=flops, transcendentals=0,
                                      bytes_accessed=bytes_accessed),
    )(xf, w_taps, b_row)

    out = out[:, :m_b, :n_out].reshape(n, ho, wp, n_out)[:, :, :wo, :]
    return out                                       # NHWC


def _im2col_nhwc(x_nhwc, size, stride, pad):
    n, h, w, c = x_nhwc.shape
    xp = jnp.pad(x_nhwc, ((0, 0), (pad, pad), (pad, pad), (0, 0)))
    ho = (h + 2 * pad - size) // stride + 1
    wo = (w + 2 * pad - size) // stride + 1
    patches = []
    for ky in range(size):
        for kx in range(size):
            patches.append(
                xp[:, ky:ky + ho * stride:stride, kx:kx + wo * stride:stride, :])
    cols = jnp.concatenate(patches, axis=-1)          # (N, Ho, Wo, size*size*C)
    return cols.reshape(n * ho * wo, size * size * c), ho, wo


def _conv_im2col(x_nhwc, w_folded, bias, *, size, stride, pad, leaky_relu, tm_max):
    n = x_nhwc.shape[0]
    c = x_nhwc.shape[-1]
    n_out = w_folded.shape[0]
    cols, ho, wo = _im2col_nhwc(x_nhwc, size, stride, pad)    # (M, K) f32
    m, k = cols.shape
    n_out_p = _round_up(n_out, 128)
    k_p = _round_up(k, 16)

    w_mat = jnp.transpose(w_folded, (2, 3, 1, 0)).reshape(k, n_out)
    w_mat = jnp.pad(w_mat, ((0, k_p - k), (0, n_out_p - n_out))).astype(jnp.bfloat16)
    b_row = jnp.pad(bias, (0, n_out_p - n_out)).reshape(1, n_out_p).astype(jnp.float32)

    tm = min(tm_max, _round_up(m, 128))
    m_pad = pl.cdiv(m, tm) * tm
    cols = jnp.pad(cols, ((0, m_pad - m), (0, k_p - k))).astype(jnp.bfloat16)

    kernel = functools.partial(_matmul_bias_act_kernel, leaky_relu=leaky_relu)
    out = pl.pallas_call(
        kernel,
        out_shape=jax.ShapeDtypeStruct((m_pad, n_out_p), jnp.float32),
        grid_spec=pltpu.PrefetchScalarGridSpec(
            num_scalar_prefetch=0,
            grid=(m_pad // tm,),
            in_specs=[
                pl.BlockSpec((tm, k_p), lambda i: (i, 0)),
                pl.BlockSpec((k_p, n_out_p), lambda i: (0, 0)),
                pl.BlockSpec((1, n_out_p), lambda i: (0, 0)),
            ],
            out_specs=pl.BlockSpec((tm, n_out_p), lambda i: (i, 0)),
        ),
        compiler_params=pltpu.CompilerParams(
            dimension_semantics=("parallel",),
            vmem_limit_bytes=_VMEM_LIMIT_BYTES),
        cost_estimate=pl.CostEstimate(
            flops=2 * m * k * n_out, transcendentals=0,
            bytes_accessed=int(cols.size * 2 + w_mat.size * 2 + m_pad * n_out_p * 4)),
    )(cols, w_mat, b_row)

    out = out[:m, :n_out].reshape(n, ho, wo, n_out)
    return out                                       # NHWC


def yolo_conv_forward(x_nchw, weight, conv_bias, bn_params, *, size, stride, pad,
                      leaky_relu=True, tm_max=512):
    """Forward of YoloConv: Conv2d -> BatchNorm2d(eval) -> LeakyReLU(0.1).

    x_nchw:    (N, C, H, W) f32
    weight:    (Nout, C, size, size) f32 (PyTorch Conv2d layout)
    conv_bias: (Nout,) or None
    bn_params: None or dict(gamma, beta, running_mean, running_var, eps)
    """
    n_out = weight.shape[0]
    scale, bias = _fold_bn_params(n_out, conv_bias, bn_params)
    w_folded = (weight * scale[:, None, None, None]).astype(jnp.float32)

    # TODO(synk): chained YoloConv blocks should keep activations NHWC end-to-end;
    # the NCHW<->NHWC transposes here only match the PyTorch module boundary.
    x_nhwc = jnp.transpose(x_nchw, (0, 2, 3, 1))
    if stride == 1:
        out_nhwc = _conv_fused_stride1(x_nhwc, w_folded, bias, size=size, pad=pad,
                                       leaky_relu=leaky_relu, tm_max=tm_max)
    else:
        out_nhwc = _conv_im2col(x_nhwc, w_folded, bias, size=size, stride=stride,
                                pad=pad, leaky_relu=leaky_relu, tm_max=tm_max)
    return jnp.transpose(out_nhwc, (0, 3, 1, 2))     # back to NCHW


# ----------------------------------------------------------------------------
# Reference + test
# ----------------------------------------------------------------------------
def _reference(x, weight, conv_bias, bn_params, *, stride, pad, leaky_relu,
               round_to_bf16):
    n_out = weight.shape[0]
    scale, bias = _fold_bn_params(n_out, conv_bias, bn_params)
    w = weight * scale[:, None, None, None]
    if round_to_bf16:       # match the kernel's bf16-quantized MXU inputs
        x = x.astype(jnp.bfloat16).astype(jnp.float32)
        w = w.astype(jnp.bfloat16).astype(jnp.float32)
    y = lax.conv_general_dilated(
        x, w, window_strides=(stride, stride), padding=[(pad, pad), (pad, pad)],
        dimension_numbers=("NCHW", "OIHW", "NCHW"),
        precision=lax.Precision.HIGHEST)
    y = y + bias[None, :, None, None]
    if leaky_relu:
        y = jnp.where(y > 0, y, 0.1 * y)
    return y


if __name__ == "__main__":
    key = jax.random.PRNGKey(0)
    kx, kw, kg, kbe, krm, krv, kx2, kw2, kb2 = jax.random.split(key, 9)

    # Case 1: YoloConv(bn=True, c=4, n=32, size=3, stride=1, pad=1, leaky_relu=True)
    x = jax.random.normal(kx, (2, 4, 16, 16), dtype=jnp.float32)
    weight = 0.1 * jax.random.normal(kw, (32, 4, 3, 3), dtype=jnp.float32)
    bn_params = dict(
        gamma=1.0 + 0.1 * jax.random.normal(kg, (32,), dtype=jnp.float32),
        beta=0.1 * jax.random.normal(kbe, (32,), dtype=jnp.float32),
        running_mean=0.1 * jax.random.normal(krm, (32,), dtype=jnp.float32),
        running_var=jnp.abs(1.0 + 0.1 * jax.random.normal(krv, (32,), dtype=jnp.float32)),
        eps=1e-5,
    )
    out = yolo_conv_forward(x, weight, None, bn_params,
                            size=3, stride=1, pad=1, leaky_relu=True)
    out = jax.block_until_ready(out)
    assert out.shape == (2, 32, 16, 16), out.shape
    ref_q = _reference(x, weight, None, bn_params, stride=1, pad=1,
                       leaky_relu=True, round_to_bf16=True)
    ref_f = _reference(x, weight, None, bn_params, stride=1, pad=1,
                       leaky_relu=True, round_to_bf16=False)
    assert jnp.allclose(out, ref_q, atol=1e-3, rtol=1e-3), \
        float(jnp.max(jnp.abs(out - ref_q)))
    # looser check vs. pure-f32 module math (slack is bf16 input quantization)
    assert jnp.allclose(out, ref_f, atol=5e-2, rtol=5e-2), \
        float(jnp.max(jnp.abs(out - ref_f)))

    # Case 2: strided fallback path: YoloConv(bn=False, c=4, n=16, size=3, stride=2, pad=1)
    x2 = jax.random.normal(kx2, (2, 4, 16, 16), dtype=jnp.float32)
    w2 = 0.1 * jax.random.normal(kw2, (16, 4, 3, 3), dtype=jnp.float32)
    b2 = 0.1 * jax.random.normal(kb2, (16,), dtype=jnp.float32)
    out2 = yolo_conv_forward(x2, w2, b2, None,
                             size=3, stride=2, pad=1, leaky_relu=True)
    out2 = jax.block_until_ready(out2)
    assert out2.shape == (2, 16, 8, 8), out2.shape
    ref2_q = _reference(x2, w2, b2, None, stride=2, pad=1,
                        leaky_relu=True, round_to_bf16=True)
    ref2_f = _reference(x2, w2, b2, None, stride=2, pad=1,
                        leaky_relu=True, round_to_bf16=False)
    assert jnp.allclose(out2, ref2_q, atol=1e-3, rtol=1e-3), \
        float(jnp.max(jnp.abs(out2 - ref2_q)))
    assert jnp.allclose(out2, ref2_f, atol=5e-2, rtol=5e-2), \
        float(jnp.max(jnp.abs(out2 - ref2_f)))

    print("KERNEL_OK")
</pallas_src>

<mosaic_0001>
module attributes {stable_mosaic.version = 11 : i64} {
  func.func @_fused_conv_kernel(%arg0: i32, %arg1: i32, %arg2: memref<1x328x4xf32, #tpu.memory_space<vmem>>, %arg3: memref<9x4x128xbf16, #tpu.memory_space<vmem>>, %arg4: memref<1x128xf32, #tpu.memory_space<vmem>>, %arg5: memref<1x288x128xf32, #tpu.memory_space<vmem>>) attributes {dimension_semantics = [#tpu.dimension_semantics<parallel>, #tpu.dimension_semantics<parallel>], iteration_bounds = array<i64: 2, 1>, scalar_prefetch = 0 : i64, scratch_operands = 0 : i64, tpu.core_type = #tpu.core_type<tc>, window_params = [{transform_indices = @transform_0, window_bounds = array<i64: 1, 328, 4>}, {pipeline_mode = #tpu.pipeline_mode<synchronous>, transform_indices = @transform_1, window_bounds = array<i64: 9, 4, 128>}, {pipeline_mode = #tpu.pipeline_mode<synchronous>, transform_indices = @transform_2, window_bounds = array<i64: 1, 128>}, {transform_indices = @transform_3, window_bounds = array<i64: 1, 288, 128>}]} {
    %c288_i32 = arith.constant 288 : i32
    %0 = arith.muli %arg1, %c288_i32 : i32
    %1 = tpu.assume_multiple %0, 288 : i32
    %c0_i32 = arith.constant 0 : i32
    %2 = arith.addi %1, %c0_i32 : i32
    %c0 = arith.constant 0 : index
    %3 = arith.index_cast %2 : i32 to index
    %c0_0 = arith.constant 0 : index
    %4 = vector.load %arg2[%c0, %3, %c0_0] : memref<1x328x4xf32, #tpu.memory_space<vmem>>, vector<1x288x4xf32>
    %5 = vector.shape_cast %4 : vector<1x288x4xf32> to vector<288x4xf32>
    %6 = arith.truncf %5 : vector<288x4xf32> to vector<288x4xbf16>
    %c0_1 = arith.constant 0 : index
    %c0_2 = arith.constant 0 : index
    %c0_3 = arith.constant 0 : index
    %7 = vector.load %arg3[%c0_1, %c0_2, %c0_3] : memref<9x4x128xbf16, #tpu.memory_space<vmem>>, vector<1x4x128xbf16>
    %8 = vector.shape_cast %7 : vector<1x4x128xbf16> to vector<4x128xbf16>
    %cst = arith.constant dense<0.000000e+00> : vector<288x128xf32>
    %9 = tpu.matmul %6, %8, %cst {dimension_numbers = #tpu.dot_dimension_numbers<[1], [0], [0], [1], [0, 0, 1, 1], [], []>} : vector<288x4xbf16>, vector<4x128xbf16>, vector<288x128xf32> -> vector<288x128xf32>
    %c1_i32 = arith.constant 1 : i32
    %10 = arith.addi %1, %c1_i32 : i32
    %c0_4 = arith.constant 0 : index
    %11 = arith.index_cast %10 : i32 to index
    %c0_5 = arith.constant 0 : index
    %12 = vector.load %arg2[%c0_4, %11, %c0_5] : memref<1x328x4xf32, #tpu.memory_space<vmem>>, vector<1x288x4xf32>
    %13 = vector.shape_cast %12 : vector<1x288x4xf32> to vector<288x4xf32>
    %14 = arith.truncf %13 : vector<288x4xf32> to vector<288x4xbf16>
    %c1 = arith.constant 1 : index
    %c0_6 = arith.constant 0 : index
    %c0_7 = arith.constant 0 : index
    %15 = vector.load %arg3[%c1, %c0_6, %c0_7] : memref<9x4x128xbf16, #tpu.memory_space<vmem>>, vector<1x4x128xbf16>
    %16 = vector.shape_cast %15 : vector<1x4x128xbf16> to vector<4x128xbf16>
    %cst_8 = arith.constant dense<0.000000e+00> : vector<288x128xf32>
    %17 = tpu.matmul %14, %16, %cst_8 {dimension_numbers = #tpu.dot_dimension_numbers<[1], [0], [0], [1], [0, 0, 1, 1], [], []>} : vector<288x4xbf16>, vector<4x128xbf16>, vector<288x128xf32> -> vector<288x128xf32>
    %18 = arith.addf %9, %17 : vector<288x128xf32>
    %c2_i32 = arith.constant 2 : i32
    %19 = arith.addi %1, %c2_i32 : i32
    %c0_9 = arith.constant 0 : index
    %20 = arith.index_cast %19 : i32 to index
    %c0_10 = arith.constant 0 : index
    %21 = vector.load %arg2[%c0_9, %20, %c0_10] : memref<1x328x4xf32, #tpu.memory_space<vmem>>, vector<1x288x4xf32>
    %22 = vector.shape_cast %21 : vector<1x288x4xf32> to vector<288x4xf32>
    %23 = arith.truncf %22 : vector<288x4xf32> to vector<288x4xbf16>
    %c2 = arith.constant 2 : index
    %c0_11 = arith.constant 0 : index
    %c0_12 = arith.constant 0 : index
    %24 = vector.load %arg3[%c2, %c0_11, %c0_12] : memref<9x4x128xbf16, #tpu.memory_space<vmem>>, vector<1x4x128xbf16>
    %25 = vector.shape_cast %24 : vector<1x4x128xbf16> to vector<4x128xbf16>
    %cst_13 = arith.constant dense<0.000000e+00> : vector<288x128xf32>
    %26 = tpu.matmul %23, %25, %cst_13 {dimension_numbers = #tpu.dot_dimension_numbers<[1], [0], [0], [1], [0, 0, 1, 1], [], []>} : vector<288x4xbf16>, vector<4x128xbf16>, vector<288x128xf32> -> vector<288x128xf32>
    %27 = arith.addf %18, %26 : vector<288x128xf32>
    %c18_i32 = arith.constant 18 : i32
    %28 = arith.addi %1, %c18_i32 : i32
    %c0_14 = arith.constant 0 : index
    %29 = arith.index_cast %28 : i32 to index
    %c0_15 = arith.constant 0 : index
    %30 = vector.load %arg2[%c0_14, %29, %c0_15] : memref<1x328x4xf32, #tpu.memory_space<vmem>>, vector<1x288x4xf32>
    %31 = vector.shape_cast %30 : vector<1x288x4xf32> to vector<288x4xf32>
    %32 = arith.truncf %31 : vector<288x4xf32> to vector<288x4xbf16>
    %c3 = arith.constant 3 : index
    %c0_16 = arith.constant 0 : index
    %c0_17 = arith.constant 0 : index
    %33 = vector.load %arg3[%c3, %c0_16, %c0_17] : memref<9x4x128xbf16, #tpu.memory_space<vmem>>, vector<1x4x128xbf16>
    %34 = vector.shape_cast %33 : vector<1x4x128xbf16> to vector<4x128xbf16>
    %cst_18 = arith.constant dense<0.000000e+00> : vector<288x128xf32>
    %35 = tpu.matmul %32, %34, %cst_18 {dimension_numbers = #tpu.dot_dimension_numbers<[1], [0], [0], [1], [0, 0, 1, 1], [], []>} : vector<288x4xbf16>, vector<4x128xbf16>, vector<288x128xf32> -> vector<288x128xf32>
    %36 = arith.addf %27, %35 : vector<288x128xf32>
    %c19_i32 = arith.constant 19 : i32
    %37 = arith.addi %1, %c19_i32 : i32
    %c0_19 = arith.constant 0 : index
    %38 = arith.index_cast %37 : i32 to index
    %c0_20 = arith.constant 0 : index
    %39 = vector.load %arg2[%c0_19, %38, %c0_20] : memref<1x328x4xf32, #tpu.memory_space<vmem>>, vector<1x288x4xf32>
    %40 = vector.shape_cast %39 : vector<1x288x4xf32> to vector<288x4xf32>
    %41 = arith.truncf %40 : vector<288x4xf32> to vector<288x4xbf16>
    %c4 = arith.constant 4 : index
    %c0_21 = arith.constant 0 : index
    %c0_22 = arith.constant 0 : index
    %42 = vector.load %arg3[%c4, %c0_21, %c0_22] : memref<9x4x128xbf16, #tpu.memory_space<vmem>>, vector<1x4x128xbf16>
    %43 = vector.shape_cast %42 : vector<1x4x128xbf16> to vector<4x128xbf16>
    %cst_23 = arith.constant dense<0.000000e+00> : vector<288x128xf32>
    %44 = tpu.matmul %41, %43, %cst_23 {dimension_numbers = #tpu.dot_dimension_numbers<[1], [0], [0], [1], [0, 0, 1, 1], [], []>} : vector<288x4xbf16>, vector<4x128xbf16>, vector<288x128xf32> -> vector<288x128xf32>
    %45 = arith.addf %36, %44 : vector<288x128xf32>
    %c20_i32 = arith.constant 20 : i32
    %46 = arith.addi %1, %c20_i32 : i32
    %c0_24 = arith.constant 0 : index
    %47 = arith.index_cast %46 : i32 to index
    %c0_25 = arith.constant 0 : index
    %48 = vector.load %arg2[%c0_24, %47, %c0_25] : memref<1x328x4xf32, #tpu.memory_space<vmem>>, vector<1x288x4xf32>
    %49 = vector.shape_cast %48 : vector<1x288x4xf32> to vector<288x4xf32>
    %50 = arith.truncf %49 : vector<288x4xf32> to vector<288x4xbf16>
    %c5 = arith.constant 5 : index
    %c0_26 = arith.constant 0 : index
    %c0_27 = arith.constant 0 : index
    %51 = vector.load %arg3[%c5, %c0_26, %c0_27] : memref<9x4x128xbf16, #tpu.memory_space<vmem>>, vector<1x4x128xbf16>
    %52 = vector.shape_cast %51 : vector<1x4x128xbf16> to vector<4x128xbf16>
    %cst_28 = arith.constant dense<0.000000e+00> : vector<288x128xf32>
    %53 = tpu.matmul %50, %52, %cst_28 {dimension_numbers = #tpu.dot_dimension_numbers<[1], [0], [0], [1], [0, 0, 1, 1], [], []>} : vector<288x4xbf16>, vector<4x128xbf16>, vector<288x128xf32> -> vector<288x128xf32>
    %54 = arith.addf %45, %53 : vector<288x128xf32>
    %c36_i32 = arith.constant 36 : i32
    %55 = arith.addi %1, %c36_i32 : i32
    %c0_29 = arith.constant 0 : index
    %56 = arith.index_cast %55 : i32 to index
    %c0_30 = arith.constant 0 : index
    %57 = vector.load %arg2[%c0_29, %56, %c0_30] : memref<1x328x4xf32, #tpu.memory_space<vmem>>, vector<1x288x4xf32>
    %58 = vector.shape_cast %57 : vector<1x288x4xf32> to vector<288x4xf32>
    %59 = arith.truncf %58 : vector<288x4xf32> to vector<288x4xbf16>
    %c6 = arith.constant 6 : index
    %c0_31 = arith.constant 0 : index
    %c0_32 = arith.constant 0 : index
    %60 = vector.load %arg3[%c6, %c0_31, %c0_32] : memref<9x4x128xbf16, #tpu.memory_space<vmem>>, vector<1x4x128xbf16>
    %61 = vector.shape_cast %60 : vector<1x4x128xbf16> to vector<4x128xbf16>
    %cst_33 = arith.constant dense<0.000000e+00> : vector<288x128xf32>
    %62 = tpu.matmul %59, %61, %cst_33 {dimension_numbers = #tpu.dot_dimension_numbers<[1], [0], [0], [1], [0, 0, 1, 1], [], []>} : vector<288x4xbf16>, vector<4x128xbf16>, vector<288x128xf32> -> vector<288x128xf32>
    %63 = arith.addf %54, %62 : vector<288x128xf32>
    %c37_i32 = arith.constant 37 : i32
    %64 = arith.addi %1, %c37_i32 : i32
    %c0_34 = arith.constant 0 : index
    %65 = arith.index_cast %64 : i32 to index
    %c0_35 = arith.constant 0 : index
    %66 = vector.load %arg2[%c0_34, %65, %c0_35] : memref<1x328x4xf32, #tpu.memory_space<vmem>>, vector<1x288x4xf32>
    %67 = vector.shape_cast %66 : vector<1x288x4xf32> to vector<288x4xf32>
    %68 = arith.truncf %67 : vector<288x4xf32> to vector<288x4xbf16>
    %c7 = arith.constant 7 : index
    %c0_36 = arith.constant 0 : index
    %c0_37 = arith.constant 0 : index
    %69 = vector.load %arg3[%c7, %c0_36, %c0_37] : memref<9x4x128xbf16, #tpu.memory_space<vmem>>, vector<1x4x128xbf16>
    %70 = vector.shape_cast %69 : vector<1x4x128xbf16> to vector<4x128xbf16>
    %cst_38 = arith.constant dense<0.000000e+00> : vector<288x128xf32>
    %71 = tpu.matmul %68, %70, %cst_38 {dimension_numbers = #tpu.dot_dimension_numbers<[1], [0], [0], [1], [0, 0, 1, 1], [], []>} : vector<288x4xbf16>, vector<4x128xbf16>, vector<288x128xf32> -> vector<288x128xf32>
    %72 = arith.addf %63, %71 : vector<288x128xf32>
    %c38_i32 = arith.constant 38 : i32
    %73 = arith.addi %1, %c38_i32 : i32
    %c0_39 = arith.constant 0 : index
    %74 = arith.index_cast %73 : i32 to index
    %c0_40 = arith.constant 0 : index
    %75 = vector.load %arg2[%c0_39, %74, %c0_40] : memref<1x328x4xf32, #tpu.memory_space<vmem>>, vector<1x288x4xf32>
    %76 = vector.shape_cast %75 : vector<1x288x4xf32> to vector<288x4xf32>
    %77 = arith.truncf %76 : vector<288x4xf32> to vector<288x4xbf16>
    %c8 = arith.constant 8 : index
    %c0_41 = arith.constant 0 : index
    %c0_42 = arith.constant 0 : index
    %78 = vector.load %arg3[%c8, %c0_41, %c0_42] : memref<9x4x128xbf16, #tpu.memory_space<vmem>>, vector<1x4x128xbf16>
    %79 = vector.shape_cast %78 : vector<1x4x128xbf16> to vector<4x128xbf16>
    %cst_43 = arith.constant dense<0.000000e+00> : vector<288x128xf32>
    %80 = tpu.matmul %77, %79, %cst_43 {dimension_numbers = #tpu.dot_dimension_numbers<[1], [0], [0], [1], [0, 0, 1, 1], [], []>} : vector<288x4xbf16>, vector<4x128xbf16>, vector<288x128xf32> -> vector<288x128xf32>
    %81 = arith.addf %72, %80 : vector<288x128xf32>
    %c0_44 = arith.constant 0 : index
    %c0_45 = arith.constant 0 : index
    %82 = vector.load %arg4[%c0_44, %c0_45] : memref<1x128xf32, #tpu.memory_space<vmem>>, vector<1x128xf32>
    %83 = vector.broadcast %82 : vector<1x128xf32> to vector<288x128xf32>
    %84 = arith.addf %81, %83 : vector<288x128xf32>
    %cst_46 = arith.constant 0.000000e+00 : f32
    %85 = vector.broadcast %cst_46 : f32 to vector<288x128xf32>
    %86 = arith.cmpf ogt, %84, %85 : vector<288x128xf32>
    %cst_47 = arith.constant 1.000000e-01 : f32
    %87 = vector.broadcast %cst_47 : f32 to vector<288x128xf32>
    %88 = arith.mulf %87, %84 : vector<288x128xf32>
    %89 = arith.select %86, %84, %88 : vector<288x128xi1>, vector<288x128xf32>
    %c0_48 = arith.constant 0 : index
    %c0_49 = arith.constant 0 : index
    %c0_50 = arith.constant 0 : index
    %90 = vector.load %arg5[%c0_48, %c0_49, %c0_50] : memref<1x288x128xf32, #tpu.memory_space<vmem>>, vector<1x288x128xf32>
    %91 = vector.shape_cast %90 : vector<1x288x128xf32> to vector<288x128xf32>
    %92 = vector.shape_cast %89 : vector<288x128xf32> to vector<1x288x128xf32>
    tpu.vector_store %arg5[%c0_48, %c0_49, %c0_50], %92 {strides = array<i32>} : memref<1x288x128xf32, #tpu.memory_space<vmem>>, vector<1x288x128xf32>,
    return
  }
  func.func @transform_0(%arg0: i32, %arg1: i32) -> (i32, i32, i32) {
    %c0_i32 = arith.constant 0 : i32
    %c0_i32_0 = arith.constant 0 : i32
    %c0_i32_1 = arith.constant 0 : i32
    return %arg0, %c0_i32, %c0_i32_0 : i32, i32, i32
  }
  func.func @transform_1(%arg0: i32, %arg1: i32) -> (i32, i32, i32) {
    %c0_i32 = arith.constant 0 : i32
    %c0_i32_0 = arith.constant 0 : i32
    %c0_i32_1 = arith.constant 0 : i32
    %c0_i32_2 = arith.constant 0 : i32
    return %c0_i32, %c0_i32_0, %c0_i32_1 : i32, i32, i32
  }
  func.func @transform_2(%arg0: i32, %arg1: i32) -> (i32, i32) {
    %c0_i32 = arith.constant 0 : i32
    %c0_i32_0 = arith.constant 0 : i32
    %c0_i32_1 = arith.constant 0 : i32
    return %c0_i32, %c0_i32_0 : i32, i32
  }
  func.func @transform_3(%arg0: i32, %arg1: i32) -> (i32, i32, i32) {
    %c0_i32 = arith.constant 0 : i32
    %c0_i32_0 = arith.constant 0 : i32
    return %arg0, %arg1, %c0_i32 : i32, i32, i32
  }
}

</mosaic_0001>

<llo_original>
// kernel: tpu_custom_call.1
$region0: #{tpu_custom_call.1}
  #allocation0 [shape = 'u32[]', space=smem, size = 0x4, offset = 0x4, fixed_abs, tag = 'smem constant byte address 0x4 - core index']
  #allocation1 [shape = 'u32[144,128]{1,0:T(1,128)}', space=vmem, size = 0x12000, scoped, tag = 'internal scratch']
  %s0 = inlined_call_operand.vmem [shape: f32[2,328,4], index: 0, kind: input, shape index: {}]
  %s1 = inlined_call_operand.vmem [shape: bf16[9,4,128], index: 1, kind: input, shape index: {}]
  %s2 = inlined_call_operand.vmem [shape: f32[1,128], index: 2, kind: input, shape index: {}]
  %s3 = inlined_call_operand.hbm [shape: f32[2,288,128], index: 3, kind: output, shape index: {}]
  %s4 = sld [smem:[#allocation0]]
  $region45: #{tpu_custom_call.1} parent=0
    _
  %s6 = ssub.s32 1, %s4
  %s7 = scalar_select 0, %s6, %s4
  $region1: #{tpu_custom_call.1} parent=0
    #allocation2 [shape = 'u8[294912]{0}', space=vmem, size = 0x48000, scoped, tag = 'output window, operand 0']
    #allocation3 [shape = 's32[2]{0}', space=sflag, size = 0x8, scoped, tag = 'scoped memory for tpu_custom_call.1']
    %8 = vsyncpa [#allocation3], 0
    %s9 = scalar_lea.sflag [#allocation3], 1
    %10 = vsyncpa %s9, 0
    loop: start=0, step=1, limit=4
    $region2: #{tpu_custom_call.1} parent=1 // loop_pre_header
      _
    $region3: #{tpu_custom_call.1} parent=1 // loop_header
      %s12 = sphi 0, %s16
      %p13 = scmp.ge.s32.totalorder %s12, 4
      %s19 = sphi 0, %s31
      %s20 = sphi 0, %s27
      %s21 = sphi 0, %s19
      %s22 = sphi 0, %s20
      %s23 = sphi 0, %s21
      %s24 = sphi 0, %s22
      %s34 = sphi 0, %s36
      %s37 = sphi 0, %s34
      %s38 = sphi 0, %s37
      %s54 = sphi 0, %s38
      %s58 = sphi 0, %s58
      %s60 = sphi 0, %s58
      %s61 = sphi 0, %s60
      %s75 = sphi 0, %s61
      %s79 = sphi 0, %s79
      %s81 = sphi 0, %s79
      %s82 = sphi 0, %s81
      %s96 = sphi 0, %s82
      %s104 = sphi 0, %s106
      %s107 = sphi 0, %s104
      %s108 = sphi 0, %s107
      %s124 = sphi 0, %s108
    $region4: #{tpu_custom_call.1} parent=1 // loop_header_branch
      %15 = sbr.rel (%p13) target = $region8
    $region5: #{tpu_custom_call.1} parent=1 // loop_body
      %s17 = ssub.s32 %s12, 1
      %s18 = ssub.s32 %s12, 2
      %s25 = sadd.s32 1, %s20
      %p26 = scmp.ge.s32.totalorder %s25, 1
      %s27 = scalar_select %p26, 0, %s25
      %s28 = sadd.s32 1, %s19
      %s29 = scalar_select %p26, %s28, %s19
      %p30 = scmp.ge.s32.totalorder %s29, 2
      %s31 = scalar_select %p30, 0, %s29
      %s32 = ssub.s32 %s19, %s31
      %p33 = scmp.eq.s32.totalorder %s32, 0
      %s35 = sadd.s32 %s34, 1
      %s36 = scalar_select %p33, %s34, %s35
      %p39 = pneg %p33
      %p40 = scmp.eq.s32.totalorder %s12, 1
      %p41 = por %p39, %p40
      %p42 = scmp.ne.s32.totalorder %s34, %s37
      %p43 = scmp.eq.s32.totalorder %s12, 0
      %p44 = por %p42, %p43
      %p45 = scmp.ne.s32.totalorder %s34, %s37
      %p46 = scmp.eq.s32.totalorder %s17, 1
      %p47 = por %p45, %p46
      %p48 = scmp.ne.s32.totalorder %s37, %s38
      %p49 = scmp.eq.s32.totalorder %s17, 0
      %p50 = por %p48, %p49
      %p51 = scmp.ne.s32.totalorder %s37, %s38
      %p52 = scmp.eq.s32.totalorder %s18, 1
      %p53 = por %p51, %p52
      %p55 = scmp.ne.s32.totalorder %s38, %s54
      %p56 = scmp.eq.s32.totalorder %s18, 0
      %p57 = por %p55, %p56
      %s59 = sadd.s32 %s58, 1
      %p62 = scmp.eq.s32.totalorder %s12, 1
      %p63 = scmp.ne.s32.totalorder %s58, %s60
      %p64 = scmp.eq.s32.totalorder %s12, 0
      %p65 = por %p63, %p64
      %p66 = scmp.ne.s32.totalorder %s58, %s60
      %p67 = scmp.eq.s32.totalorder %s17, 1
      %p68 = por %p66, %p67
      %p69 = scmp.ne.s32.totalorder %s60, %s61
      %p70 = scmp.eq.s32.totalorder %s17, 0
      %p71 = por %p69, %p70
      %p72 = scmp.ne.s32.totalorder %s60, %s61
      %p73 = scmp.eq.s32.totalorder %s18, 1
      %p74 = por %p72, %p73
      %p76 = scmp.ne.s32.totalorder %s61, %s75
      %p77 = scmp.eq.s32.totalorder %s18, 0
      %p78 = por %p76, %p77
      %s80 = sadd.s32 %s79, 1
      %p83 = scmp.eq.s32.totalorder %s12, 1
      %p84 = scmp.ne.s32.totalorder %s79, %s81
      %p85 = scmp.eq.s32.totalorder %s12, 0
      %p86 = por %p84, %p85
      %p87 = scmp.ne.s32.totalorder %s79, %s81
      %p88 = scmp.eq.s32.totalorder %s17, 1
      %p89 = por %p87, %p88
      %p90 = scmp.ne.s32.totalorder %s81, %s82
      %p91 = scmp.eq.s32.totalorder %s17, 0
      %p92 = por %p90, %p91
      %p93 = scmp.ne.s32.totalorder %s81, %s82
      %p94 = scmp.eq.s32.totalorder %s18, 1
      %p95 = por %p93, %p94
      %p97 = scmp.ne.s32.totalorder %s82, %s96
      %p98 = scmp.eq.s32.totalorder %s18, 0
      %p99 = por %p97, %p98
      %s100 = ssub.s32 %s19, %s31
      %s101 = ssub.s32 %s20, %s27
      %s102 = sor.u32 %s100, %s101
      %p103 = scmp.eq.s32.totalorder %s102, 0
      %s105 = sadd.s32 %s104, 1
      %s106 = scalar_select %p103, %s104, %s105
      %p109 = pneg %p103
      %p110 = scmp.eq.s32.totalorder %s12, 1
      %p111 = por %p109, %p110
      %p112 = scmp.ne.s32.totalorder %s104, %s107
      %p113 = scmp.eq.s32.totalorder %s12, 0
      %p114 = por %p112, %p113
      %p115 = scmp.ne.s32.totalorder %s104, %s107
      %p116 = scmp.eq.s32.totalorder %s17, 1
      %p117 = por %p115, %p116
      %p118 = scmp.ne.s32.totalorder %s107, %s108
      %p119 = scmp.eq.s32.totalorder %s17, 0
      %p120 = por %p118, %p119
      %p121 = scmp.ne.s32.totalorder %s107, %s108
      %p122 = scmp.eq.s32.totalorder %s18, 1
      %p123 = por %p121, %p122
      %p125 = scmp.ne.s32.totalorder %s108, %s124
      %p126 = scmp.eq.s32.totalorder %s18, 0
      %p127 = por %p125, %p126
      %p128 = scmp.le.s32.totalorder 1, %s12
      %p129 = scmp.lt.s32.totalorder %s12, 3
      %p130 = pnand %p128, %p129
      %p131 = pneg %p130
      // Predicated region
      $region9: #{tpu_custom_call.1} parent=5 // pred_check
        _
      $region10: #{tpu_custom_call.1} parent=5 // pred_check_branch
        %133 = sbr.rel (%p130) target = $region12
      $region11: #{tpu_custom_call.1} parent=5 // pred_region
        %s134 = ssub.s32 %s12, 1
        // Predicated region
        $region13: #{tpu_custom_call.1} parent=11 // pred_check
          %p135 = pneg %p71
        $region14: #{tpu_custom_call.1} parent=11 // pred_check_branch
          %137 = sbr.rel (%p135) target = $region16
        $region15: #{tpu_custom_call.1} parent=11 // pred_region
          _
        $region16: #{tpu_custom_call.1} parent=11 // pred_fallthru
          _
        // Predicated region
        $region17: #{tpu_custom_call.1} parent=11 // pred_check
          %p138 = pneg %p92
        $region18: #{tpu_custom_call.1} parent=11 // pred_check_branch
          %140 = sbr.rel (%p138) target = $region20
        $region19: #{tpu_custom_call.1} parent=11 // pred_region
          _
        $region20: #{tpu_custom_call.1} parent=11 // pred_fallthru
          _
      $region12: #{tpu_custom_call.1} parent=5 // pred_fallthru
        _
      %p141 = scmp.lt.s32.totalorder %s12, 2
      // Predicated region
      $region21: #{tpu_custom_call.1} parent=5 // pred_check
        %p142 = pneg %p141
      $region22: #{tpu_custom_call.1} parent=5 // pred_check_branch
        %144 = sbr.rel (%p142) target = $region24
      $region23: #{tpu_custom_call.1} parent=5 // pred_region
        // Predicated region
        $region25: #{tpu_custom_call.1} parent=23 // pred_check
          %p145 = pneg %p44
        $region26: #{tpu_custom_call.1} parent=23 // pred_check_branch
          %147 = sbr.rel (%p145) target = $region28
        $region27: #{tpu_custom_call.1} parent=23 // pred_region
          %p148 = scmp.lt.s32.totalorder %s19, 1
          %s149 = scalar_select %p148, %s19, 1
          %s150 = smul.addr %s149, 41
          %s151 = smul.addr %s150, 8
          %s152 = scalar_lea.vmem %s0, %s151
        $region28: #{tpu_custom_call.1} parent=23 // pred_fallthru
          _
      $region24: #{tpu_custom_call.1} parent=5 // pred_fallthru
        _
      %p153 = scmp.le.s32.totalorder 1, %s12
      %p154 = scmp.lt.s32.totalorder %s12, 3
      %p155 = pnand %p153, %p154
      %p156 = pneg %p155
      // Predicated region
      $region29: #{tpu_custom_call.1} parent=5 // pred_check
        _
      $region30: #{tpu_custom_call.1} parent=5 // pred_check_branch
        %158 = sbr.rel (%p155) target = $region32
      $region31: #{tpu_custom_call.1} parent=5 // pred_region
        %s159 = ssub.s32 %s12, 1
        %p160 = scmp.lt.s32.totalorder %s21, 1
        %s161 = scalar_select %p160, %s21, 1
        %s162 = smul.addr %s161, 41
        %s163 = smul.addr %s162, 8
        %s164 = scalar_lea.vmem %s0, %s163
        %p165 = pneg %p50
        %p166 = pneg %p47
        %p167 = pneg %p71
        %p168 = pneg %p68
        %p169 = pneg %p92
        %p170 = pneg %p89
        %p171 = pneg %p120
        %p172 = pneg %p117
        %s173 = sand.u32 %s107, 1
        %s174 = scalar_lea.sflag [#allocation3], %s173
        %s175 = sand.u32 %s107, 1
        %s176 = smul.addr %s175, 288
        %s177 = scalar_lea.vmem [#allocation2], %s176
        %p178 = scmp.lt.s32.totalorder %s21, 1
        %s179 = scalar_select %p178, %s21, 1
        %s180 = smul.addr %s179, 41
        %s181 = smul.addr %s180, 8
        %s182 = scalar_lea.vmem %s0, %s181
        %s183 = smul.u32 36, %s22
        %s185 = smul.u32 %s22, 288
        %s186 = scalar_lea.vmem %s182, %s185
        %v187 = vld [vmem:[%s186] sm:$0xff]
        %v188 = vld [vmem:[%s186 + $0x8] sm:$0xff]
        %v189 = vld [vmem:[%s186 + $0x10] sm:$0xff]
        %v190 = vld [vmem:[%s186 + $0x18] sm:$0xff]
        %v191 = vld [vmem:[%s186 + $0x20] sm:$0xff]
        %v192 = vld [vmem:[%s186 + $0x28] sm:$0xff]
        %v193 = vld [vmem:[%s186 + $0x30] sm:$0xff]
        %v194 = vld [vmem:[%s186 + $0x38] sm:$0xff]
        %v195 = vld [vmem:[%s186 + $0x40] sm:$0xff]
        %v196 = vld [vmem:[%s186 + $0x48] sm:$0xff]
        %v197 = vld [vmem:[%s186 + $0x50] sm:$0xff]
        %v198 = vld [vmem:[%s186 + $0x58] sm:$0xff]
        %v199 = vld [vmem:[%s186 + $0x60] sm:$0xff]
        %v200 = vld [vmem:[%s186 + $0x68] sm:$0xff]
        %v201 = vld [vmem:[%s186 + $0x70] sm:$0xff]
        %v202 = vld [vmem:[%s186 + $0x78] sm:$0xff]
        %v203 = vld [vmem:[%s186 + $0x80] sm:$0xff]
        %v204 = vld [vmem:[%s186 + $0x88] sm:$0xff]
        %v205 = vld [vmem:[%s186 + $0x90] sm:$0xff]
        %v206 = vld [vmem:[%s186 + $0x98] sm:$0xff]
        %v207 = vld [vmem:[%s186 + $0xa0] sm:$0xff]
        %v208 = vld [vmem:[%s186 + $0xa8] sm:$0xff]
        %v209 = vld [vmem:[%s186 + $0xb0] sm:$0xff]
        %v210 = vld [vmem:[%s186 + $0xb8] sm:$0xff]
        %v211 = vld [vmem:[%s186 + $0xc0] sm:$0xff]
        %v212 = vld [vmem:[%s186 + $0xc8] sm:$0xff]
        %v213 = vld [vmem:[%s186 + $0xd0] sm:$0xff]
        %v214 = vld [vmem:[%s186 + $0xd8] sm:$0xff]
        %v215 = vld [vmem:[%s186 + $0xe0] sm:$0xff]
        %v216 = vld [vmem:[%s186 + $0xe8] sm:$0xff]
        %v217 = vld [vmem:[%s186 + $0xf0] sm:$0xff]
        %v218 = vld [vmem:[%s186 + $0xf8] sm:$0xff]
        %v219 = vld [vmem:[%s186 + $0x100] sm:$0xff]
        %v220 = vld [vmem:[%s186 + $0x108] sm:$0xff]
        %v221 = vld [vmem:[%s186 + $0x110] sm:$0xff]
        %v222 = vld [vmem:[%s186 + $0x118] sm:$0xff]
        %v223 = vpack.c.bf16 %v188, %v187
        %v224 = vpack.c.bf16 %v190, %v189
        %v225 = vpack.c.bf16 %v192, %v191
        %v226 = vpack.c.bf16 %v194, %v193
        %v227 = vpack.c.bf16 %v196, %v195
        %v228 = vpack.c.bf16 %v198, %v197
        %v229 = vpack.c.bf16 %v200, %v199
        %v230 = vpack.c.bf16 %v202, %v201
        %v231 = vpack.c.bf16 %v204, %v203
        %v232 = vpack.c.bf16 %v206, %v205
        %v233 = vpack.c.bf16 %v208, %v207
        %v234 = vpack.c.bf16 %v210, %v209
        %v235 = vpack.c.bf16 %v212, %v211
        %v236 = vpack.c.bf16 %v214, %v213
        %v237 = vpack.c.bf16 %v216, %v215
        %v238 = vpack.c.bf16 %v218, %v217
        %v239 = vpack.c.bf16 %v220, %v219
        %v240 = vpack.c.bf16 %v222, %v221
        %v241 = vld [vmem:[%s1] sm:$0x3]
        %s242 = sadd.s32 %s185, 1
        %s243 = scalar_lea.vmem %s182, %s242
        %v244 = vld [vmem:[%s243] sm:$0xff]
        %v245 = vld [vmem:[%s243 + $0x8] sm:$0xff]
        %v246 = vld [vmem:[%s243 + $0x10] sm:$0xff]
        %v247 = vld [vmem:[%s243 + $0x18] sm:$0xff]
        %v248 = vld [vmem:[%s243 + $0x20] sm:$0xff]
        %v249 = vld [vmem:[%s243 + $0x28] sm:$0xff]
        %v250 = vld [vmem:[%s243 + $0x30] sm:$0xff]
        %v251 = vld [vmem:[%s243 + $0x38] sm:$0xff]
        %v252 = vld [vmem:[%s243 + $0x40] sm:$0xff]
        %v253 = vld [vmem:[%s243 + $0x48] sm:$0xff]
        %v254 = vld [vmem:[%s243 + $0x50] sm:$0xff]
        %v255 = vld [vmem:[%s243 + $0x58] sm:$0xff]
        %v256 = vld [vmem:[%s243 + $0x60] sm:$0xff]
        %v257 = vld [vmem:[%s243 + $0x68] sm:$0xff]
        %v258 = vld [vmem:[%s243 + $0x70] sm:$0xff]
        %v259 = vld [vmem:[%s243 + $0x78] sm:$0xff]
        %v260 = vld [vmem:[%s243 + $0x80] sm:$0xff]
        %v261 = vld [vmem:[%s243 + $0x88] sm:$0xff]
        %v262 = vld [vmem:[%s243 + $0x90] sm:$0xff]
        %v263 = vld [vmem:[%s243 + $0x98] sm:$0xff]
        %v264 = vld [vmem:[%s243 + $0xa0] sm:$0xff]
        %v265 = vld [vmem:[%s243 + $0xa8] sm:$0xff]
        %v266 = vld [vmem:[%s243 + $0xb0] sm:$0xff]
        %v267 = vld [vmem:[%s243 + $0xb8] sm:$0xff]
        %v268 = vld [vmem:[%s243 + $0xc0] sm:$0xff]
        %v269 = vld [vmem:[%s243 + $0xc8] sm:$0xff]
        %v270 = vld [vmem:[%s243 + $0xd0] sm:$0xff]
        %v271 = vld [vmem:[%s243 + $0xd8] sm:$0xff]
        %v272 = vld [vmem:[%s243 + $0xe0] sm:$0xff]
        %v273 = vld [vmem:[%s243 + $0xe8] sm:$0xff]
        %v274 = vld [vmem:[%s243 + $0xf0] sm:$0xff]
        %v275 = vld [vmem:[%s243 + $0xf8] sm:$0xff]
        %v276 = vld [vmem:[%s243 + $0x100] sm:$0xff]
        %v277 = vld [vmem:[%s243 + $0x108] sm:$0xff]
        %v278 = vld [vmem:[%s243 + $0x110] sm:$0xff]
        %v279 = vld [vmem:[%s243 + $0x118] sm:$0xff]
        %v280 = vpack.c.bf16 %v245, %v244
        %v281 = vpack.c.bf16 %v247, %v246
        %v282 = vpack.c.bf16 %v249, %v248
        %v283 = vpack.c.bf16 %v251, %v250
        %v284 = vpack.c.bf16 %v253, %v252
        %v285 = vpack.c.bf16 %v255, %v254
        %v286 = vpack.c.bf16 %v257, %v256
        %v287 = vpack.c.bf16 %v259, %v258
        %v288 = vpack.c.bf16 %v261, %v260
        %v289 = vpack.c.bf16 %v263, %v262
        %v290 = vpack.c.bf16 %v265, %v264
        %v291 = vpack.c.bf16 %v267, %v266
        %v292 = vpack.c.bf16 %v269, %v268
        %v293 = vpack.c.bf16 %v271, %v270
        %v294 = vpack.c.bf16 %v273, %v272
        %v295 = vpack.c.bf16 %v275, %v274
        %v296 = vpack.c.bf16 %v277, %v276
        %v297 = vpack.c.bf16 %v279, %v278
        %s298 = scalar_lea.vmem %s1, 2
        %v299 = vld [vmem:[%s298] sm:$0x3]
        %vm300 = vcmask 31744
        %v302 = vsel %vm300, %v280, 0
        %v305 = vsel %vm300, %v281, 0
        %v308 = vsel %vm300, %v282, 0
        %v311 = vsel %vm300, %v283, 0
        %v314 = vsel %vm300, %v284, 0
        %v317 = vsel %vm300, %v285, 0
        %v320 = vsel %vm300, %v286, 0
        %v323 = vsel %vm300, %v287, 0
        %v326 = vsel %vm300, %v288, 0
        %v329 = vsel %vm300, %v289, 0
        %v332 = vsel %vm300, %v290, 0
        %v335 = vsel %vm300, %v291, 0
        %v338 = vsel %vm300, %v292, 0
        %v341 = vsel %vm300, %v293, 0
        %v344 = vsel %vm300, %v294, 0
        %v347 = vsel %vm300, %v295, 0
        %v350 = vsel %vm300, %v296, 0
        %v353 = vsel %vm300, %v297, 0
        %vm355 = vcmask 1041408
        %v357 = vsel %vm355, %v299, 0
        %359 = vmatprep.subr.bf16.mxu0 0
        %360 = vmatpush1.bf16.msra.mxu0 %v357
        %361 = vmatprep.subr.bf16.mxu0 0
        %362 = vmatpush1.bf16.msra.mxu0 0
        %363 = vmatprep.subr.bf16.mxu0 0
        %364 = vmatpush1.bf16.msra.mxu0 0
        %365 = vmatprep.subr.bf16.mxu0 0
        %366 = vmatpush1.bf16.msra.mxu0 0
        %367 = vmatprep.subr.bf16.mxu0 0
        %368 = vmatpush1.bf16.msra.mxu0 0
        %369 = vmatprep.subr.bf16.mxu0 0
        %370 = vmatpush1.bf16.msra.mxu0 0
        %371 = vmatprep.subr.bf16.mxu0 0
        %372 = vmatpush1.bf16.msra.mxu0 0
        %373 = vmatprep.subr.bf16.mxu0 0
        %374 = vmatpush1.bf16.msra.mxu0 0
        %375 = vmatprep.subr.bf16.mxu0 0
        %376 = vmatpush1.bf16.msra.mxu0 0
        %377 = vmatprep.subr.bf16.mxu0 0
        %378 = vmatpush1.bf16.msra.mxu0 0
        %379 = vmatprep.subr.bf16.mxu0 0
        %380 = vmatpush1.bf16.msra.mxu0 0
        %381 = vmatprep.subr.bf16.mxu0 0
        %382 = vmatpush1.bf16.msra.mxu0 0
        %383 = vmatprep.subr.bf16.mxu0 0
        %384 = vmatpush1.bf16.msra.mxu0 0
        %385 = vmatprep.subr.bf16.mxu0 0
        %386 = vmatpush1.bf16.msra.mxu0 0
        %387 = vmatprep.subr.bf16.mxu0 0
        %388 = vmatpush1.bf16.msra.mxu0 0
        %389 = vmatprep.subr.bf16.mxu0 0
        %390 = vmatpush1.bf16.msra.mxu0 0
        %391 = vmatprep.mubr.bf16.mxu0 0
        %392 = vmatmul.mubr.bf16.gmra.mrb[0].mxu0 %v302
        %v393 = vpop.f32.mrb[0].mxu0
        %v394 = vadd.f32 0.0, %v393
        %v395 = vpop.f32.mrb[0].mxu0
        %v396 = vpop.f32.mrb[0].mxu0
        %v397 = vadd.f32 0.0, %v396
        %v398 = vpop.f32.mrb[0].mxu0
        %399 = vmatprep.mubr.bf16.mxu0 0
        %400 = vmatmul.mubr.bf16.gmra.mrb[0].mxu0 %v305
        %v401 = vpop.f32.mrb[0].mxu0
        %v402 = vadd.f32 0.0, %v401
        %v403 = vpop.f32.mrb[0].mxu0
        %v404 = vpop.f32.mrb[0].mxu0
        %v405 = vadd.f32 0.0, %v404
        %v406 = vpop.f32.mrb[0].mxu0
        %407 = vmatprep.mubr.bf16.mxu0 0
        %408 = vmatmul.mubr.bf16.gmra.mrb[0].mxu0 %v308
        %v409 = vpop.f32.mrb[0].mxu0
        %v410 = vadd.f32 0.0, %v409
        %v411 = vpop.f32.mrb[0].mxu0
        %v412 = vpop.f32.mrb[0].mxu0
        %v413 = vadd.f32 0.0, %v412
        %v414 = vpop.f32.mrb[0].mxu0
        %415 = vmatprep.mubr.bf16.mxu0 0
        %416 = vmatmul.mubr.bf16.gmra.mrb[0].mxu0 %v311
        %v417 = vpop.f32.mrb[0].mxu0
        %v418 = vadd.f32 0.0, %v417
        %v419 = vpop.f32.mrb[0].mxu0
        %v420 = vpop.f32.mrb[0].mxu0
        %v421 = vadd.f32 0.0, %v420
        %v422 = vpop.f32.mrb[0].mxu0
        %423 = vmatprep.mubr.bf16.mxu0 0
        %424 = vmatmul.mubr.bf16.gmra.mrb[0].mxu0 %v314
        %v425 = vpop.f32.mrb[0].mxu0
        %v426 = vadd.f32 0.0, %v425
        %v427 = vpop.f32.mrb[0].mxu0
        %v428 = vpop.f32.mrb[0].mxu0
        %v429 = vadd.f32 0.0, %v428
        %v430 = vpop.f32.mrb[0].mxu0
        %431 = vmatprep.mubr.bf16.mxu0 0
        %432 = vmatmul.mubr.bf16.gmra.mrb[0].mxu0 %v317
        %v433 = vpop.f32.mrb[0].mxu0
        %v434 = vadd.f32 0.0, %v433
        %v435 = vpop.f32.mrb[0].mxu0
        %v436 = vpop.f32.mrb[0].mxu0
        %v437 = vadd.f32 0.0, %v436
        %v438 = vpop.f32.mrb[0].mxu0
        %439 = vmatprep.mubr.bf16.mxu0 0
        %440 = vmatmul.mubr.bf16.gmra.mrb[0].mxu0 %v320
        %v441 = vpop.f32.mrb[0].mxu0
        %v442 = vadd.f32 0.0, %v441
        %v443 = vpop.f32.mrb[0].mxu0
        %v444 = vpop.f32.mrb[0].mxu0
        %v445 = vadd.f32 0.0, %v444
        %v446 = vpop.f32.mrb[0].mxu0
        %447 = vmatprep.mubr.bf16.mxu0 0
        %448 = vmatmul.mubr.bf16.gmra.mrb[0].mxu0 %v323
        %v449 = vpop.f32.mrb[0].mxu0
        %v450 = vadd.f32 0.0, %v449
        %v451 = vpop.f32.mrb[0].mxu0
        %v452 = vpop.f32.mrb[0].mxu0
        %v453 = vadd.f32 0.0, %v452
        %v454 = vpop.f32.mrb[0].mxu0
        %455 = vmatprep.mubr.bf16.mxu0 0
        %456 = vmatmul.mubr.bf16.gmra.mrb[0].mxu0 %v326
        %v457 = vpop.f32.mrb[0].mxu0
        %v458 = vadd.f32 0.0, %v457
        %v459 = vpop.f32.mrb[0].mxu0
        %v460 = vpop.f32.mrb[0].mxu0
        %v461 = vadd.f32 0.0, %v460
        %v462 = vpop.f32.mrb[0].mxu0
        %463 = vmatprep.mubr.bf16.mxu0 0
        %464 = vmatmul.mubr.bf16.gmra.mrb[0].mxu0 %v329
        %v465 = vpop.f32.mrb[0].mxu0
        %v466 = vadd.f32 0.0, %v465
        %v467 = vpop.f32.mrb[0].mxu0
        %v468 = vpop.f32.mrb[0].mxu0
        %v469 = vadd.f32 0.0, %v468
        %v470 = vpop.f32.mrb[0].mxu0
        %471 = vmatprep.mubr.bf16.mxu0 0
        %472 = vmatmul.mubr.bf16.gmra.mrb[0].mxu0 %v332
        %v473 = vpop.f32.mrb[0].mxu0
        %v474 = vadd.f32 0.0, %v473
        %v475 = vpop.f32.mrb[0].mxu0
        %v476 = vpop.f32.mrb[0].mxu0
        %v477 = vadd.f32 0.0, %v476
        %v478 = vpop.f32.mrb[0].mxu0
        %479 = vmatprep.mubr.bf16.mxu0 0
        %480 = vmatmul.mubr.bf16.gmra.mrb[0].mxu0 %v335
        %v481 = vpop.f32.mrb[0].mxu0
        %v482 = vadd.f32 0.0, %v481
        %v483 = vpop.f32.mrb[0].mxu0
        %v484 = vpop.f32.mrb[0].mxu0
        %v485 = vadd.f32 0.0, %v484
        %v486 = vpop.f32.mrb[0].mxu0
        %487 = vmatprep.mubr.bf16.mxu0 0
        %488 = vmatmul.mubr.bf16.gmra.mrb[0].mxu0 %v338
        %v489 = vpop.f32.mrb[0].mxu0
        %v490 = vadd.f32 0.0, %v489
        %v491 = vpop.f32.mrb[0].mxu0
        %v492 = vpop.f32.mrb[0].mxu0
        %v493 = vadd.f32 0.0, %v492
        %v494 = vpop.f32.mrb[0].mxu0
        %495 = vmatprep.mubr.bf16.mxu0 0
        %496 = vmatmul.mubr.bf16.gmra.mrb[0].mxu0 %v341
        %v497 = vpop.f32.mrb[0].mxu0
        %v498 = vadd.f32 0.0, %v497
        %v499 = vpop.f32.mrb[0].mxu0
        %v500 = vpop.f32.mrb[0].mxu0
        %v501 = vadd.f32 0.0, %v500
        %v502 = vpop.f32.mrb[0].mxu0
        %503 = vmatprep.mubr.bf16.mxu0 0
        %504 = vmatmul.mubr.bf16.gmra.mrb[0].mxu0 %v344
        %v505 = vpop.f32.mrb[0].mxu0
        %v506 = vadd.f32 0.0, %v505
        %v507 = vpop.f32.mrb[0].mxu0
        %v508 = vpop.f32.mrb[0].mxu0
        %v509 = vadd.f32 0.0, %v508
        %v510 = vpop.f32.mrb[0].mxu0
        %511 = vmatprep.mubr.bf16.mxu0 0
        %512 = vmatmul.mubr.bf16.gmra.mrb[0].mxu0 %v347
        %v513 = vpop.f32.mrb[0].mxu0
        %v514 = vadd.f32 0.0, %v513
        %v515 = vpop.f32.mrb[0].mxu0
        %v516 = vpop.f32.mrb[0].mxu0
        %v517 = vadd.f32 0.0, %v516
        %v518 = vpop.f32.mrb[0].mxu0
        %519 = vmatprep.mubr.bf16.mxu0 0
        %520 = vmatmul.mubr.bf16.gmra.mrb[0].mxu0 %v350
        %v521 = vpop.f32.mrb[0].mxu0
        %v522 = vadd.f32 0.0, %v521
        %v523 = vpop.f32.mrb[0].mxu0
        %v524 = vpop.f32.mrb[0].mxu0
        %v525 = vadd.f32 0.0, %v524
        %v526 = vpop.f32.mrb[0].mxu0
        %527 = vmatprep.mubr.bf16.mxu0 0
        %528 = vmatmul.mubr.bf16.gmra.mrb[0].mxu0 %v353
        %v529 = vpop.f32.mrb[0].mxu0
        %v530 = vadd.f32 0.0, %v529
        %v531 = vpop.f32.mrb[0].mxu0
        %v532 = vpop.f32.mrb[0].mxu0
        %v533 = vadd.f32 0.0, %v532
        %v534 = vpop.f32.mrb[0].mxu0
        %535 = vdwg.mxu0
        %v537 = vsel %vm300, %v223, 0
        %v540 = vsel %vm300, %v224, 0
        %v543 = vsel %vm300, %v225, 0
        %v546 = vsel %vm300, %v226, 0
        %v549 = vsel %vm300, %v227, 0
        %v552 = vsel %vm300, %v228, 0
        %v555 = vsel %vm300, %v229, 0
        %v558 = vsel %vm300, %v230, 0
        %v561 = vsel %vm300, %v231, 0
        %v564 = vsel %vm300, %v232, 0
        %v567 = vsel %vm300, %v233, 0
        %v570 = vsel %vm300, %v234, 0
        %v573 = vsel %vm300, %v235, 0
        %v576 = vsel %vm300, %v236, 0
        %v579 = vsel %vm300, %v237, 0
        %v582 = vsel %vm300, %v238, 0
        %v585 = vsel %vm300, %v239, 0
        %v588 = vsel %vm300, %v240, 0
        %v591 = vsel %vm355, %v241, 0
        %593 = vmatprep.subr.bf16.mxu0 0
        %594 = vmatpush1.bf16.msra.mxu0 %v591
        %595 = vmatprep.subr.bf16.mxu0 0
        %596 = vmatpush1.bf16.msra.mxu0 0
        %597 = vmatprep.subr.bf16.mxu0 0
        %598 = vmatpush1.bf16.msra.mxu0 0
        %599 = vmatprep.subr.bf16.mxu0 0
        %600 = vmatpush1.bf16.msra.mxu0 0
        %601 = vmatprep.subr.bf16.mxu0 0
        %602 = vmatpush1.bf16.msra.mxu0 0
        %603 = vmatprep.subr.bf16.mxu0 0
        %604 = vmatpush1.bf16.msra.mxu0 0
        %605 = vmatprep.subr.bf16.mxu0 0
        %606 = vmatpush1.bf16.msra.mxu0 0
        %607 = vmatprep.subr.bf16.mxu0 0
        %608 = vmatpush1.bf16.msra.mxu0 0
        %609 = vmatprep.subr.bf16.mxu0 0
        %610 = vmatpush1.bf16.msra.mxu0 0
        %611 = vmatprep.subr.bf16.mxu0 0
        %612 = vmatpush1.bf16.msra.mxu0 0
        %613 = vmatprep.subr.bf16.mxu0 0
        %614 = vmatpush1.bf16.msra.mxu0 0
        %615 = vmatprep.subr.bf16.mxu0 0
        %616 = vmatpush1.bf16.msra.mxu0 0
        %617 = vmatprep.subr.bf16.mxu0 0
        %618 = vmatpush1.bf16.msra.mxu0 0
        %619 = vmatprep.subr.bf16.mxu0 0
        %620 = vmatpush1.bf16.msra.mxu0 0
        %621 = vmatprep.subr.bf16.mxu0 0
        %622 = vmatpush1.bf16.msra.mxu0 0
        %623 = vmatprep.subr.bf16.mxu0 0
        %624 = vmatpush1.bf16.msra.mxu0 0
        %625 = vmatprep.mubr.bf16.mxu0 0
        %626 = vmatmul.mubr.bf16.gmra.mrb[0].mxu0 %v537
        %v627 = vpop.f32.mrb[0].mxu0
        %v628 = vadd.f32 %v394, %v627
        %v629 = vpop.f32.mrb[0].mxu0
        %v630 = vpop.f32.mrb[0].mxu0
        %v631 = vadd.f32 %v397, %v630
        %v632 = vpop.f32.mrb[0].mxu0
        %633 = vmatprep.mubr.bf16.mxu0 0
        %634 = vmatmul.mubr.bf16.gmra.mrb[0].mxu0 %v540
        %v635 = vpop.f32.mrb[0].mxu0
        %v636 = vadd.f32 %v402, %v635
        %v637 = vpop.f32.mrb[0].mxu0
        %v638 = vpop.f32.mrb[0].mxu0
        %v639 = vadd.f32 %v405, %v638
        %v640 = vpop.f32.mrb[0].mxu0
        %641 = vmatprep.mubr.bf16.mxu0 0
        %642 = vmatmul.mubr.bf16.gmra.mrb[0].mxu0 %v543
        %v643 = vpop.f32.mrb[0].mxu0
        %v644 = vadd.f32 %v410, %v643
        %v645 = vpop.f32.mrb[0].mxu0
        %v646 = vpop.f32.mrb[0].mxu0
        %v647 = vadd.f32 %v413, %v646
        %v648 = vpop.f32.mrb[0].mxu0
        %649 = vmatprep.mubr.bf16.mxu0 0
        %650 = vmatmul.mubr.bf16.gmra.mrb[0].mxu0 %v546
        %v651 = vpop.f32.mrb[0].mxu0
        %v652 = vadd.f32 %v418, %v651
        %v653 = vpop.f32.mrb[0].mxu0
        %v654 = vpop.f32.mrb[0].mxu0
        %v655 = vadd.f32 %v421, %v654
        %v656 = vpop.f32.mrb[0].mxu0
        %657 = vmatprep.mubr.bf16.mxu0 0
        %658 = vmatmul.mubr.bf16.gmra.mrb[0].mxu0 %v549
        %v659 = vpop.f32.mrb[0].mxu0
        %v660 = vadd.f32 %v426, %v659
        %v661 = vpop.f32.mrb[0].mxu0
        %v662 = vpop.f32.mrb[0].mxu0
        %v663 = vadd.f32 %v429, %v662
        %v664 = vpop.f32.mrb[0].mxu0
        %665 = vmatprep.mubr.bf16.mxu0 0
        %666 = vmatmul.mubr.bf16.gmra.mrb[0].mxu0 %v552
        %v667 = vpop.f32.mrb[0].mxu0
        %v668 = vadd.f32 %v434, %v667
        %v669 = vpop.f32.mrb[0].mxu0
        %v670 = vpop.f32.mrb[0].mxu0
        %v671 = vadd.f32 %v437, %v670
        %v672 = vpop.f32.mrb[0].mxu0
        %673 = vmatprep.mubr.bf16.mxu0 0
        %674 = vmatmul.mubr.bf16.gmra.mrb[0].mxu0 %v555
        %v675 = vpop.f32.mrb[0].mxu0
        %v676 = vadd.f32 %v442, %v675
        %v677 = vpop.f32.mrb[0].mxu0
        %v678 = vpop.f32.mrb[0].mxu0
        %v679 = vadd.f32 %v445, %v678
        %v680 = vpop.f32.mrb[0].mxu0
        %681 = vmatprep.mubr.bf16.mxu0 0
        %682 = vmatmul.mubr.bf16.gmra.mrb[0].mxu0 %v558
        %v683 = vpop.f32.mrb[0].mxu0
        %v684 = vadd.f32 %v450, %v683
        %v685 = vpop.f32.mrb[0].mxu0
        %v686 = vpop.f32.mrb[0].mxu0
        %v687 = vadd.f32 %v453, %v686
        %v688 = vpop.f32.mrb[0].mxu0
        %689 = vmatprep.mubr.bf16.mxu0 0
        %690 = vmatmul.mubr.bf16.gmra.mrb[0].mxu0 %v561
        %v691 = vpop.f32.mrb[0].mxu0
        %v692 = vadd.f32 %v458, %v691
        %v693 = vpop.f32.mrb[0].mxu0
        %v694 = vpop.f32.mrb[0].mxu0
        %v695 = vadd.f32 %v461, %v694
        %v696 = vpop.f32.mrb[0].mxu0
        %697 = vmatprep.mubr.bf16.mxu0 0
        %698 = vmatmul.mubr.bf16.gmra.mrb[0].mxu0 %v564
        %v699 = vpop.f32.mrb[0].mxu0
        %v700 = vadd.f32 %v466, %v699
        %v701 = vpop.f32.mrb[0].mxu0
        %v702 = vpop.f32.mrb[0].mxu0
        %v703 = vadd.f32 %v469, %v702
        %v704 = vpop.f32.mrb[0].mxu0
        %705 = vmatprep.mubr.bf16.mxu0 0
        %706 = vmatmul.mubr.bf16.gmra.mrb[0].mxu0 %v567
        %v707 = vpop.f32.mrb[0].mxu0
        %v708 = vadd.f32 %v474, %v707
        %v709 = vpop.f32.mrb[0].mxu0
        %v710 = vpop.f32.mrb[0].mxu0
        %v711 = vadd.f32 %v477, %v710
        %v712 = vpop.f32.mrb[0].mxu0
        %713 = vmatprep.mubr.bf16.mxu0 0
        %714 = vmatmul.mubr.bf16.gmra.mrb[0].mxu0 %v570
        %v715 = vpop.f32.mrb[0].mxu0
        %v716 = vadd.f32 %v482, %v715
        %v717 = vpop.f32.mrb[0].mxu0
        %v718 = vpop.f32.mrb[0].mxu0
        %v719 = vadd.f32 %v485, %v718
        %v720 = vpop.f32.mrb[0].mxu0
        %721 = vmatprep.mubr.bf16.mxu0 0
        %722 = vmatmul.mubr.bf16.gmra.mrb[0].mxu0 %v573
        %v723 = vpop.f32.mrb[0].mxu0
        %v724 = vadd.f32 %v490, %v723
        %v725 = vpop.f32.mrb[0].mxu0
        %v726 = vpop.f32.mrb[0].mxu0
        %v727 = vadd.f32 %v493, %v726
        %v728 = vpop.f32.mrb[0].mxu0
        %729 = vmatprep.mubr.bf16.mxu0 0
        %730 = vmatmul.mubr.bf16.gmra.mrb[0].mxu0 %v576
        %v731 = vpop.f32.mrb[0].mxu0
        %v732 = vadd.f32 %v498, %v731
        %v733 = vpop.f32.mrb[0].mxu0
        %v734 = vpop.f32.mrb[0].mxu0
        %v735 = vadd.f32 %v501, %v734
        %v736 = vpop.f32.mrb[0].mxu0
        %737 = vmatprep.mubr.bf16.mxu0 0
        %738 = vmatmul.mubr.bf16.gmra.mrb[0].mxu0 %v579
        %v739 = vpop.f32.mrb[0].mxu0
        %v740 = vadd.f32 %v506, %v739
        %v741 = vpop.f32.mrb[0].mxu0
        %v742 = vpop.f32.mrb[0].mxu0
        %v743 = vadd.f32 %v509, %v742
        %v744 = vpop.f32.mrb[0].mxu0
        %745 = vmatprep.mubr.bf16.mxu0 0
        %746 = vmatmul.mubr.bf16.gmra.mrb[0].mxu0 %v582
        %v747 = vpop.f32.mrb[0].mxu0
        %v748 = vadd.f32 %v514, %v747
        %v749 = vpop.f32.mrb[0].mxu0
        %v750 = vpop.f32.mrb[0].mxu0
        %v751 = vadd.f32 %v517, %v750
        %v752 = vpop.f32.mrb[0].mxu0
        %753 = vmatprep.mubr.bf16.mxu0 0
        %754 = vmatmul.mubr.bf16.gmra.mrb[0].mxu0 %v585
        %v755 = vpop.f32.mrb[0].mxu0
        %v756 = vadd.f32 %v522, %v755
        %v757 = vpop.f32.mrb[0].mxu0
        %v758 = vpop.f32.mrb[0].mxu0
        %v759 = vadd.f32 %v525, %v758
        %v760 = vpop.f32.mrb[0].mxu0
        %761 = vmatprep.mubr.bf16.mxu0 0
        %762 = vmatmul.mubr.bf16.gmra.mrb[0].mxu0 %v588
        %v763 = vpop.f32.mrb[0].mxu0
        %v764 = vadd.f32 %v530, %v763
        %v765 = vpop.f32.mrb[0].mxu0
        %v766 = vpop.f32.mrb[0].mxu0
        %v767 = vadd.f32 %v533, %v766
        %v768 = vpop.f32.mrb[0].mxu0
        %769 = vdwg.mxu0
        %s770 = sadd.s32 %s185, 2
        %s771 = scalar_lea.vmem %s182, %s770
        %v772 = vld [vmem:[%s771] sm:$0xff]
        %v773 = vld [vmem:[%s771 + $0x8] sm:$0xff]
        %v774 = vld [vmem:[%s771 + $0x10] sm:$0xff]
        %v775 = vld [vmem:[%s771 + $0x18] sm:$0xff]
        %v776 = vld [vmem:[%s771 + $0x20] sm:$0xff]
        %v777 = vld [vmem:[%s771 + $0x28] sm:$0xff]
        %v778 = vld [vmem:[%s771 + $0x30] sm:$0xff]
        %v779 = vld [vmem:[%s771 + $0x38] sm:$0xff]
        %v780 = vld [vmem:[%s771 + $0x40] sm:$0xff]
        %v781 = vld [vmem:[%s771 + $0x48] sm:$0xff]
        %v782 = vld [vmem:[%s771 + $0x50] sm:$0xff]
        %v783 = vld [vmem:[%s771 + $0x58] sm:$0xff]
        %v784 = vld [vmem:[%s771 + $0x60] sm:$0xff]
        %v785 = vld [vmem:[%s771 + $0x68] sm:$0xff]
        %v786 = vld [vmem:[%s771 + $0x70] sm:$0xff]
        %v787 = vld [vmem:[%s771 + $0x78] sm:$0xff]
        %v788 = vld [vmem:[%s771 + $0x80] sm:$0xff]
        %v789 = vld [vmem:[%s771 + $0x88] sm:$0xff]
        %v790 = vld [vmem:[%s771 + $0x90] sm:$0xff]
        %v791 = vld [vmem:[%s771 + $0x98] sm:$0xff]
        %v792 = vld [vmem:[%s771 + $0xa0] sm:$0xff]
        %v793 = vld [vmem:[%s771 + $0xa8] sm:$0xff]
        %v794 = vld [vmem:[%s771 + $0xb0] sm:$0xff]
        %v795 = vld [vmem:[%s771 + $0xb8] sm:$0xff]
        %v796 = vld [vmem:[%s771 + $0xc0] sm:$0xff]
        %v797 = vld [vmem:[%s771 + $0xc8] sm:$0xff]
        %v798 = vld [vmem:[%s771 + $0xd0] sm:$0xff]
        %v799 = vld [vmem:[%s771 + $0xd8] sm:$0xff]
        %v800 = vld [vmem:[%s771 + $0xe0] sm:$0xff]
        %v801 = vld [vmem:[%s771 + $0xe8] sm:$0xff]
        %v802 = vld [vmem:[%s771 + $0xf0] sm:$0xff]
        %v803 = vld [vmem:[%s771 + $0xf8] sm:$0xff]
        %v804 = vld [vmem:[%s771 + $0x100] sm:$0xff]
        %v805 = vld [vmem:[%s771 + $0x108] sm:$0xff]
        %v806 = vld [vmem:[%s771 + $0x110] sm:$0xff]
        %v807 = vld [vmem:[%s771 + $0x118] sm:$0xff]
        %v808 = vpack.c.bf16 %v773, %v772
        %v809 = vpack.c.bf16 %v775, %v774
        %v810 = vpack.c.bf16 %v777, %v776
        %v811 = vpack.c.bf16 %v779, %v778
        %v812 = vpack.c.bf16 %v781, %v780
        %v813 = vpack.c.bf16 %v783, %v782
        %v814 = vpack.c.bf16 %v785, %v784
        %v815 = vpack.c.bf16 %v787, %v786
        %v816 = vpack.c.bf16 %v789, %v788
        %v817 = vpack.c.bf16 %v791, %v790
        %v818 = vpack.c.bf16 %v793, %v792
        %v819 = vpack.c.bf16 %v795, %v794
        %v820 = vpack.c.bf16 %v797, %v796
        %v821 = vpack.c.bf16 %v799, %v798
        %v822 = vpack.c.bf16 %v801, %v800
        %v823 = vpack.c.bf16 %v803, %v802
        %v824 = vpack.c.bf16 %v805, %v804
        %v825 = vpack.c.bf16 %v807, %v806
        %s826 = scalar_lea.vmem %s1, 4
        %v827 = vld [vmem:[%s826] sm:$0x3]
        %v829 = vsel %vm300, %v808, 0
        %v832 = vsel %vm300, %v809, 0
        %v835 = vsel %vm300, %v810, 0
        %v838 = vsel %vm300, %v811, 0
        %v841 = vsel %vm300, %v812, 0
        %v844 = vsel %vm300, %v813, 0
        %v847 = vsel %vm300, %v814, 0
        %v850 = vsel %vm300, %v815, 0
        %v853 = vsel %vm300, %v816, 0
        %v856 = vsel %vm300, %v817, 0
        %v859 = vsel %vm300, %v818, 0
        %v862 = vsel %vm300, %v819, 0
        %v865 = vsel %vm300, %v820, 0
        %v868 = vsel %vm300, %v821, 0
        %v871 = vsel %vm300, %v822, 0
        %v874 = vsel %vm300, %v823, 0
        %v877 = vsel %vm300, %v824, 0
        %v880 = vsel %vm300, %v825, 0
        %v883 = vsel %vm355, %v827, 0
        %885 = vmatprep.subr.bf16.mxu0 0
        %886 = vmatpush1.bf16.msra.mxu0 %v883
        %887 = vmatprep.subr.bf16.mxu0 0
        %888 = vmatpush1.bf16.msra.mxu0 0
        %889 = vmatprep.subr.bf16.mxu0 0
        %890 = vmatpush1.bf16.msra.mxu0 0
        %891 = vmatprep.subr.bf16.mxu0 0
        %892 = vmatpush1.bf16.msra.mxu0 0
        %893 = vmatprep.subr.bf16.mxu0 0
        %894 = vmatpush1.bf16.msra.mxu0 0
        %895 = vmatprep.subr.bf16.mxu0 0
        %896 = vmatpush1.bf16.msra.mxu0 0
        %897 = vmatprep.subr.bf16.mxu0 0
        %898 = vmatpush1.bf16.msra.mxu0 0
        %899 = vmatprep.subr.bf16.mxu0 0
        %900 = vmatpush1.bf16.msra.mxu0 0
        %901 = vmatprep.subr.bf16.mxu0 0
        %902 = vmatpush1.bf16.msra.mxu0 0
        %903 = vmatprep.subr.bf16.mxu0 0
        %904 = vmatpush1.bf16.msra.mxu0 0
        %905 = vmatprep.subr.bf16.mxu0 0
        %906 = vmatpush1.bf16.msra.mxu0 0
        %907 = vmatprep.subr.bf16.mxu0 0
        %908 = vmatpush1.bf16.msra.mxu0 0
        %909 = vmatprep.subr.bf16.mxu0 0
        %910 = vmatpush1.bf16.msra.mxu0 0
        %911 = vmatprep.subr.bf16.mxu0 0
        %912 = vmatpush1.bf16.msra.mxu0 0
        %913 = vmatprep.subr.bf16.mxu0 0
        %914 = vmatpush1.bf16.msra.mxu0 0
        %915 = vmatprep.subr.bf16.mxu0 0
        %916 = vmatpush1.bf16.msra.mxu0 0
        %917 = vmatprep.mubr.bf16.mxu0 0
        %918 = vmatmul.mubr.bf16.gmra.mrb[0].mxu0 %v829
        %v919 = vpop.f32.mrb[0].mxu0
        %v920 = vadd.f32 0.0, %v919
        %v921 = vpop.f32.mrb[0].mxu0
        %v922 = vpop.f32.mrb[0].mxu0
        %v923 = vadd.f32 0.0, %v922
        %v924 = vpop.f32.mrb[0].mxu0
        %925 = vmatprep.mubr.bf16.mxu0 0
        %926 = vmatmul.mubr.bf16.gmra.mrb[0].mxu0 %v832
        %v927 = vpop.f32.mrb[0].mxu0
        %v928 = vadd.f32 0.0, %v927
        %v929 = vpop.f32.mrb[0].mxu0
        %v930 = vpop.f32.mrb[0].mxu0
        %v931 = vadd.f32 0.0, %v930
        %v932 = vpop.f32.mrb[0].mxu0
        %933 = vmatprep.mubr.bf16.mxu0 0
        %934 = vmatmul.mubr.bf16.gmra.mrb[0].mxu0 %v835
        %v935 = vpop.f32.mrb[0].mxu0
        %v936 = vadd.f32 0.0, %v935
        %v937 = vpop.f32.mrb[0].mxu0
        %v938 = vpop.f32.mrb[0].mxu0
        %v939 = vadd.f32 0.0, %v938
        %v940 = vpop.f32.mrb[0].mxu0
        %941 = vmatprep.mubr.bf16.mxu0 0
        %942 = vmatmul.mubr.bf16.gmra.mrb[0].mxu0 %v838
        %v943 = vpop.f32.mrb[0].mxu0
        %v944 = vadd.f32 0.0, %v943
        %v945 = vpop.f32.mrb[0].mxu0
        %v946 = vpop.f32.mrb[0].mxu0
        %v947 = vadd.f32 0.0, %v946
        %v948 = vpop.f32.mrb[0].mxu0
        %949 = vmatprep.mubr.bf16.mxu0 0
        %950 = vmatmul.mubr.bf16.gmra.mrb[0].mxu0 %v841
        %v951 = vpop.f32.mrb[0].mxu0
        %v952 = vadd.f32 0.0, %v951
        %v953 = vpop.f32.mrb[0].mxu0
        %v954 = vpop.f32.mrb[0].mxu0
        %v955 = vadd.f32 0.0, %v954
        %v956 = vpop.f32.mrb[0].mxu0
        %957 = vmatprep.mubr.bf16.mxu0 0
        %958 = vmatmul.mubr.bf16.gmra.mrb[0].mxu0 %v844
        %v959 = vpop.f32.mrb[0].mxu0
        %v960 = vadd.f32 0.0, %v959
        %v961 = vpop.f32.mrb[0].mxu0
        %v962 = vpop.f32.mrb[0].mxu0
        %v963 = vadd.f32 0.0, %v962
        %v964 = vpop.f32.mrb[0].mxu0
        %965 = vmatprep.mubr.bf16.mxu0 0
        %966 = vmatmul.mubr.bf16.gmra.mrb[0].mxu0 %v847
        %v967 = vpop.f32.mrb[0].mxu0
        %v968 = vadd.f32 0.0, %v967
        %v969 = vpop.f32.mrb[0].mxu0
        %v970 = vpop.f32.mrb[0].mxu0
        %v971 = vadd.f32 0.0, %v970
        %v972 = vpop.f32.mrb[0].mxu0
        %973 = vmatprep.mubr.bf16.mxu0 0
        %974 = vmatmul.mubr.bf16.gmra.mrb[0].mxu0 %v850
        %v975 = vpop.f32.mrb[0].mxu0
        %v976 = vadd.f32 0.0, %v975
        %v977 = vpop.f32.mrb[0].mxu0
        %v978 = vpop.f32.mrb[0].mxu0
        %v979 = vadd.f32 0.0, %v978
        %v980 = vpop.f32.mrb[0].mxu0
        %981 = vmatprep.mubr.bf16.mxu0 0
        %982 = vmatmul.mubr.bf16.gmra.mrb[0].mxu0 %v853
        %v983 = vpop.f32.mrb[0].mxu0
        %v984 = vadd.f32 0.0, %v983
        %v985 = vpop.f32.mrb[0].mxu0
        %v986 = vpop.f32.mrb[0].mxu0
        %v987 = vadd.f32 0.0, %v986
        %v988 = vpop.f32.mrb[0].mxu0
        %989 = vmatprep.mubr.bf16.mxu0 0
        %990 = vmatmul.mubr.bf16.gmra.mrb[0].mxu0 %v856
        %v991 = vpop.f32.mrb[0].mxu0
        %v992 = vadd.f32 0.0, %v991
        %v993 = vpop.f32.mrb[0].mxu0
        %v994 = vpop.f32.mrb[0].mxu0
        %v995 = vadd.f32 0.0, %v994
        %v996 = vpop.f32.mrb[0].mxu0
        %997 = vmatprep.mubr.bf16.mxu0 0
        %998 = vmatmul.mubr.bf16.gmra.mrb[0].mxu0 %v859
        %v999 = vpop.f32.mrb[0].mxu0
        %v1000 = vadd.f32 0.0, %v999
        %v1001 = vpop.f32.mrb[0].mxu0
        %v1002 = vpop.f32.mrb[0].mxu0
        %v1003 = vadd.f32 0.0, %v1002
        %v1004 = vpop.f32.mrb[0].mxu0
        %1005 = vmatprep.mubr.bf16.mxu0 0
        %1006 = vmatmul.mubr.bf16.gmra.mrb[0].mxu0 %v862
        %v1007 = vpop.f32.mrb[0].mxu0
        %v1008 = vadd.f32 0.0, %v1007
        %v1009 = vpop.f32.mrb[0].mxu0
        %v1010 = vpop.f32.mrb[0].mxu0
        %v1011 = vadd.f32 0.0, %v1010
        %v1012 = vpop.f32.mrb[0].mxu0
        %1013 = vmatprep.mubr.bf16.mxu0 0
        %1014 = vmatmul.mubr.bf16.gmra.mrb[0].mxu0 %v865
        %v1015 = vpop.f32.mrb[0].mxu0
        %v1016 = vadd.f32 0.0, %v1015
        %v1017 = vpop.f32.mrb[0].mxu0
        %v1018 = vpop.f32.mrb[0].mxu0
        %v1019 = vadd.f32 0.0, %v1018
        %v1020 = vpop.f32.mrb[0].mxu0
        %1021 = vmatprep.mubr.bf16.mxu0 0
        %1022 = vmatmul.mubr.bf16.gmra.mrb[0].mxu0 %v868
        %v1023 = vpop.f32.mrb[0].mxu0
        %v1024 = vadd.f32 0.0, %v1023
        %v1025 = vpop.f32.mrb[0].mxu0
        %v1026 = vpop.f32.mrb[0].mxu0
        %v1027 = vadd.f32 0.0, %v1026
        %v1028 = vpop.f32.mrb[0].mxu0
        %1029 = vmatprep.mubr.bf16.mxu0 0
        %1030 = vmatmul.mubr.bf16.gmra.mrb[0].mxu0 %v871
        %v1031 = vpop.f32.mrb[0].mxu0
        %v1032 = vadd.f32 0.0, %v1031
        %v1033 = vpop.f32.mrb[0].mxu0
        %v1034 = vpop.f32.mrb[0].mxu0
        %v1035 = vadd.f32 0.0, %v1034
        %v1036 = vpop.f32.mrb[0].mxu0
        %1037 = vmatprep.mubr.bf16.mxu0 0
        %1038 = vmatmul.mubr.bf16.gmra.mrb[0].mxu0 %v874
        %v1039 = vpop.f32.mrb[0].mxu0
        %v1040 = vadd.f32 0.0, %v1039
        %v1041 = vpop.f32.mrb[0].mxu0
        %v1042 = vpop.f32.mrb[0].mxu0
        %v1043 = vadd.f32 0.0, %v1042
        %v1044 = vpop.f32.mrb[0].mxu0
        %1045 = vmatprep.mubr.bf16.mxu0 0
        %1046 = vmatmul.mubr.bf16.gmra.mrb[0].mxu0 %v877
        %v1047 = vpop.f32.mrb[0].mxu0
        %v1048 = vadd.f32 0.0, %v1047
        %v1049 = vpop.f32.mrb[0].mxu0
        %v1050 = vpop.f32.mrb[0].mxu0
        %v1051 = vadd.f32 0.0, %v1050
        %v1052 = vpop.f32.mrb[0].mxu0
        %1053 = vmatprep.mubr.bf16.mxu0 0
        %1054 = vmatmul.mubr.bf16.gmra.mrb[0].mxu0 %v880
        %v1055 = vpop.f32.mrb[0].mxu0
        %v1056 = vadd.f32 0.0, %v1055
        %v1057 = vpop.f32.mrb[0].mxu0
        %v1058 = vpop.f32.mrb[0].mxu0
        %v1059 = vadd.f32 0.0, %v1058
        %v1060 = vpop.f32.mrb[0].mxu0
        %1061 = vdwg.mxu0
        %v1062 = vadd.f32 %v628, %v920
        %v1063 = vadd.f32 %v631, %v923
        %v1064 = vadd.f32 %v636, %v928
        %v1065 = vadd.f32 %v639, %v931
        %v1066 = vadd.f32 %v644, %v936
        %v1067 = vadd.f32 %v647, %v939
        %v1068 = vadd.f32 %v652, %v944
        %v1069 = vadd.f32 %v655, %v947
        %v1070 = vadd.f32 %v660, %v952
        %v1071 = vadd.f32 %v663, %v955
        %v1072 = vadd.f32 %v668, %v960
        %v1073 = vadd.f32 %v671, %v963
        %v1074 = vadd.f32 %v676, %v968
        %v1075 = vadd.f32 %v679, %v971
        %v1076 = vadd.f32 %v684, %v976
        %v1077 = vadd.f32 %v687, %v979
        %v1078 = vadd.f32 %v692, %v984
        %v1079 = vadd.f32 %v695, %v987
        %v1080 = vadd.f32 %v700, %v992
        %v1081 = vadd.f32 %v703, %v995
        %v1082 = vadd.f32 %v708, %v1000
        %v1083 = vadd.f32 %v711, %v1003
        %v1084 = vadd.f32 %v716, %v1008
        %v1085 = vadd.f32 %v719, %v1011
        %v1086 = vadd.f32 %v724, %v1016
        %v1087 = vadd.f32 %v727, %v1019
        %v1088 = vadd.f32 %v732, %v1024
        %v1089 = vadd.f32 %v735, %v1027
        %v1090 = vadd.f32 %v740, %v1032
        %v1091 = vadd.f32 %v743, %v1035
        %v1092 = vadd.f32 %v748, %v1040
        %v1093 = vadd.f32 %v751, %v1043
        %v1094 = vadd.f32 %v756, %v1048
        %v1095 = vadd.f32 %v759, %v1051
        %v1096 = vadd.f32 %v764, %v1056
        %v1097 = vadd.f32 %v767, %v1059
        %s1098 = sadd.s32 %s185, 18
        %s1099 = scalar_lea.vmem %s182, %s1098
        %v1100 = vld [vmem:[%s1099] sm:$0xff]
        %v1101 = vld [vmem:[%s1099 + $0x8] sm:$0xff]
        %v1102 = vld [vmem:[%s1099 + $0x10] sm:$0xff]
        %v1103 = vld [vmem:[%s1099 + $0x18] sm:$0xff]
        %v1104 = vld [vmem:[%s1099 + $0x20] sm:$0xff]
        %v1105 = vld [vmem:[%s1099 + $0x28] sm:$0xff]
        %v1106 = vld [vmem:[%s1099 + $0x30] sm:$0xff]
        %v1107 = vld [vmem:[%s1099 + $0x38] sm:$0xff]
        %v1108 = vld [vmem:[%s1099 + $0x40] sm:$0xff]
        %v1109 = vld [vmem:[%s1099 + $0x48] sm:$0xff]
        %v1110 = vld [vmem:[%s1099 + $0x50] sm:$0xff]
        %v1111 = vld [vmem:[%s1099 + $0x58] sm:$0xff]
        %v1112 = vld [vmem:[%s1099 + $0x60] sm:$0xff]
        %v1113 = vld [vmem:[%s1099 + $0x68] sm:$0xff]
        %v1114 = vld [vmem:[%s1099 + $0x70] sm:$0xff]
        %v1115 = vld [vmem:[%s1099 + $0x78] sm:$0xff]
        %v1116 = vld [vmem:[%s1099 + $0x80] sm:$0xff]
        %v1117 = vld [vmem:[%s1099 + $0x88] sm:$0xff]
        %v1118 = vld [vmem:[%s1099 + $0x90] sm:$0xff]
        %v1119 = vld [vmem:[%s1099 + $0x98] sm:$0xff]
        %v1120 = vld [vmem:[%s1099 + $0xa0] sm:$0xff]
        %v1121 = vld [vmem:[%s1099 + $0xa8] sm:$0xff]
        %v1122 = vld [vmem:[%s1099 + $0xb0] sm:$0xff]
        %v1123 = vld [vmem:[%s1099 + $0xb8] sm:$0xff]
        %v1124 = vld [vmem:[%s1099 + $0xc0] sm:$0xff]
        %v1125 = vld [vmem:[%s1099 + $0xc8] sm:$0xff]
        %v1126 = vld [vmem:[%s1099 + $0xd0] sm:$0xff]
        %v1127 = vld [vmem:[%s1099 + $0xd8] sm:$0xff]
        %v1128 = vld [vmem:[%s1099 + $0xe0] sm:$0xff]
        %v1129 = vld [vmem:[%s1099 + $0xe8] sm:$0xff]
        %v1130 = vld [vmem:[%s1099 + $0xf0] sm:$0xff]
        %v1131 = vld [vmem:[%s1099 + $0xf8] sm:$0xff]
        %v1132 = vld [vmem:[%s1099 + $0x100] sm:$0xff]
        %v1133 = vld [vmem:[%s1099 + $0x108] sm:$0xff]
        %v1134 = vld [vmem:[%s1099 + $0x110] sm:$0xff]
        %v1135 = vld [vmem:[%s1099 + $0x118] sm:$0xff]
        %v1136 = vpack.c.bf16 %v1101, %v1100
        %v1137 = vpack.c.bf16 %v1103, %v1102
        %v1138 = vpack.c.bf16 %v1105, %v1104
        %v1139 = vpack.c.bf16 %v1107, %v1106
        %v1140 = vpack.c.bf16 %v1109, %v1108
        %v1141 = vpack.c.bf16 %v1111, %v1110
        %v1142 = vpack.c.bf16 %v1113, %v1112
        %v1143 = vpack.c.bf16 %v1115, %v1114
        %v1144 = vpack.c.bf16 %v1117, %v1116
        %v1145 = vpack.c.bf16 %v1119, %v1118
        %v1146 = vpack.c.bf16 %v1121, %v1120
        %v1147 = vpack.c.bf16 %v1123, %v1122
        %v1148 = vpack.c.bf16 %v1125, %v1124
        %v1149 = vpack.c.bf16 %v1127, %v1126
        %v1150 = vpack.c.bf16 %v1129, %v1128
        %v1151 = vpack.c.bf16 %v1131, %v1130
        %v1152 = vpack.c.bf16 %v1133, %v1132
        %v1153 = vpack.c.bf16 %v1135, %v1134
        %s1154 = scalar_lea.vmem %s1, 6
        %v1155 = vld [vmem:[%s1154] sm:$0x3]
        %v1157 = vsel %vm300, %v1136, 0
        %v1160 = vsel %vm300, %v1137, 0
        %v1163 = vsel %vm300, %v1138, 0
        %v1166 = vsel %vm300, %v1139, 0
        %v1169 = vsel %vm300, %v1140, 0
        %v1172 = vsel %vm300, %v1141, 0
        %v1175 = vsel %vm300, %v1142, 0
        %v1178 = vsel %vm300, %v1143, 0
        %v1181 = vsel %vm300, %v1144, 0
        %v1184 = vsel %vm300, %v1145, 0
        %v1187 = vsel %vm300, %v1146, 0
        %v1190 = vsel %vm300, %v1147, 0
        %v1193 = vsel %vm300, %v1148, 0
        %v1196 = vsel %vm300, %v1149, 0
        %v1199 = vsel %vm300, %v1150, 0
        %v1202 = vsel %vm300, %v1151, 0
        %v1205 = vsel %vm300, %v1152, 0
        %v1208 = vsel %vm300, %v1153, 0
        %v1211 = vsel %vm355, %v1155, 0
        %1213 = vmatprep.subr.bf16.mxu0 0
        %1214 = vmatpush1.bf16.msra.mxu0 %v1211
        %1215 = vmatprep.subr.bf16.mxu0 0
        %1216 = vmatpush1.bf16.msra.mxu0 0
        %1217 = vmatprep.subr.bf16.mxu0 0
        %1218 = vmatpush1.bf16.msra.mxu0 0
        %1219 = vmatprep.subr.bf16.mxu0 0
        %1220 = vmatpush1.bf16.msra.mxu0 0
        %1221 = vmatprep.subr.bf16.mxu0 0
        %1222 = vmatpush1.bf16.msra.mxu0 0
        %1223 = vmatprep.subr.bf16.mxu0 0
        %1224 = vmatpush1.bf16.msra.mxu0 0
        %1225 = vmatprep.subr.bf16.mxu0 0
        %1226 = vmatpush1.bf16.msra.mxu0 0
        %1227 = vmatprep.subr.bf16.mxu0 0
        %1228 = vmatpush1.bf16.msra.mxu0 0
        %1229 = vmatprep.subr.bf16.mxu0 0
        %1230 = vmatpush1.bf16.msra.mxu0 0
        %1231 = vmatprep.subr.bf16.mxu0 0
        %1232 = vmatpush1.bf16.msra.mxu0 0
        %1233 = vmatprep.subr.bf16.mxu0 0
        %1234 = vmatpush1.bf16.msra.mxu0 0
        %1235 = vmatprep.subr.bf16.mxu0 0
        %1236 = vmatpush1.bf16.msra.mxu0 0
        %1237 = vmatprep.subr.bf16.mxu0 0
        %1238 = vmatpush1.bf16.msra.mxu0 0
        %1239 = vmatprep.subr.bf16.mxu0 0
        %1240 = vmatpush1.bf16.msra.mxu0 0
        %1241 = vmatprep.subr.bf16.mxu0 0
        %1242 = vmatpush1.bf16.msra.mxu0 0
        %1243 = vmatprep.subr.bf16.mxu0 0
        %1244 = vmatpush1.bf16.msra.mxu0 0
        %1245 = vmatprep.mubr.bf16.mxu0 0
        %1246 = vmatmul.mubr.bf16.gmra.mrb[0].mxu0 %v1157
        %v1247 = vpop.f32.mrb[0].mxu0
        %v1248 = vadd.f32 0.0, %v1247
        %v1249 = vpop.f32.mrb[0].mxu0
        %v1250 = vpop.f32.mrb[0].mxu0
        %v1251 = vadd.f32 0.0, %v1250
        %v1252 = vpop.f32.mrb[0].mxu0
        %1253 = vmatprep.mubr.bf16.mxu0 0
        %1254 = vmatmul.mubr.bf16.gmra.mrb[0].mxu0 %v1160
        %v1255 = vpop.f32.mrb[0].mxu0
        %v1256 = vadd.f32 0.0, %v1255
        %v1257 = vpop.f32.mrb[0].mxu0
        %v1258 = vpop.f32.mrb[0].mxu0
        %v1259 = vadd.f32 0.0, %v1258
        %v1260 = vpop.f32.mrb[0].mxu0
        %1261 = vmatprep.mubr.bf16.mxu0 0
        %1262 = vmatmul.mubr.bf16.gmra.mrb[0].mxu0 %v1163
        %v1263 = vpop.f32.mrb[0].mxu0
        %v1264 = vadd.f32 0.0, %v1263
        %v1265 = vpop.f32.mrb[0].mxu0
        %v1266 = vpop.f32.mrb[0].mxu0
        %v1267 = vadd.f32 0.0, %v1266
        %v1268 = vpop.f32.mrb[0].mxu0
        %1269 = vmatprep.mubr.bf16.mxu0 0
        %1270 = vmatmul.mubr.bf16.gmra.mrb[0].mxu0 %v1166
        %v1271 = vpop.f32.mrb[0].mxu0
        %v1272 = vadd.f32 0.0, %v1271
        %v1273 = vpop.f32.mrb[0].mxu0
        %v1274 = vpop.f32.mrb[0].mxu0
        %v1275 = vadd.f32 0.0, %v1274
        %v1276 = vpop.f32.mrb[0].mxu0
        %1277 = vmatprep.mubr.bf16.mxu0 0
        %1278 = vmatmul.mubr.bf16.gmra.mrb[0].mxu0 %v1169
        %v1279 = vpop.f32.mrb[0].mxu0
        %v1280 = vadd.f32 0.0, %v1279
        %v1281 = vpop.f32.mrb[0].mxu0
        %v1282 = vpop.f32.mrb[0].mxu0
        %v1283 = vadd.f32 0.0, %v1282
        %v1284 = vpop.f32.mrb[0].mxu0
        %1285 = vmatprep.mubr.bf16.mxu0 0
        %1286 = vmatmul.mubr.bf16.gmra.mrb[0].mxu0 %v1172
        %v1287 = vpop.f32.mrb[0].mxu0
        %v1288 = vadd.f32 0.0, %v1287
        %v1289 = vpop.f32.mrb[0].mxu0
        %v1290 = vpop.f32.mrb[0].mxu0
        %v1291 = vadd.f32 0.0, %v1290
        %v1292 = vpop.f32.mrb[0].mxu0
        %1293 = vmatprep.mubr.bf16.mxu0 0
        %1294 = vmatmul.mubr.bf16.gmra.mrb[0].mxu0 %v1175
        %v1295 = vpop.f32.mrb[0].mxu0
        %v1296 = vadd.f32 0.0, %v1295
        %v1297 = vpop.f32.mrb[0].mxu0
        %v1298 = vpop.f32.mrb[0].mxu0
        %v1299 = vadd.f32 0.0, %v1298
        %v1300 = vpop.f32.mrb[0].mxu0
        %1301 = vmatprep.mubr.bf16.mxu0 0
        %1302 = vmatmul.mubr.bf16.gmra.mrb[0].mxu0 %v1178
        %v1303 = vpop.f32.mrb[0].mxu0
        %v1304 = vadd.f32 0.0, %v1303
        %v1305 = vpop.f32.mrb[0].mxu0
        %v1306 = vpop.f32.mrb[0].mxu0
        %v1307 = vadd.f32 0.0, %v1306
        %v1308 = vpop.f32.mrb[0].mxu0
        %1309 = vmatprep.mubr.bf16.mxu0 0
        %1310 = vmatmul.mubr.bf16.gmra.mrb[0].mxu0 %v1181
        %v1311 = vpop.f32.mrb[0].mxu0
        %v1312 = vadd.f32 0.0, %v1311
        %v1313 = vpop.f32.mrb[0].mxu0
        %v1314 = vpop.f32.mrb[0].mxu0
        %v1315 = vadd.f32 0.0, %v1314
        %v1316 = vpop.f32.mrb[0].mxu0
        %1317 = vmatprep.mubr.bf16.mxu0 0
        %1318 = vmatmul.mubr.bf16.gmra.mrb[0].mxu0 %v1184
        %v1319 = vpop.f32.mrb[0].mxu0
        %v1320 = vadd.f32 0.0, %v1319
        %v1321 = vpop.f32.mrb[0].mxu0
        %v1322 = vpop.f32.mrb[0].mxu0
        %v1323 = vadd.f32 0.0, %v1322
        %v1324 = vpop.f32.mrb[0].mxu0
        %1325 = vmatprep.mubr.bf16.mxu0 0
        %1326 = vmatmul.mubr.bf16.gmra.mrb[0].mxu0 %v1187
        %v1327 = vpop.f32.mrb[0].mxu0
        %v1328 = vadd.f32 0.0, %v1327
        %v1329 = vpop.f32.mrb[0].mxu0
        %v1330 = vpop.f32.mrb[0].mxu0
        %v1331 = vadd.f32 0.0, %v1330
        %v1332 = vpop.f32.mrb[0].mxu0
        %1333 = vmatprep.mubr.bf16.mxu0 0
        %1334 = vmatmul.mubr.bf16.gmra.mrb[0].mxu0 %v1190
        %v1335 = vpop.f32.mrb[0].mxu0
        %v1336 = vadd.f32 0.0, %v1335
        %v1337 = vpop.f32.mrb[0].mxu0
        %v1338 = vpop.f32.mrb[0].mxu0
        %v1339 = vadd.f32 0.0, %v1338
        %v1340 = vpop.f32.mrb[0].mxu0
        %1341 = vmatprep.mubr.bf16.mxu0 0
        %1342 = vmatmul.mubr.bf16.gmra.mrb[0].mxu0 %v1193
        %v1343 = vpop.f32.mrb[0].mxu0
        %v1344 = vadd.f32 0.0, %v1343
        %v1345 = vpop.f32.mrb[0].mxu0
        %v1346 = vpop.f32.mrb[0].mxu0
        %v1347 = vadd.f32 0.0, %v1346
        %v1348 = vpop.f32.mrb[0].mxu0
        %1349 = vmatprep.mubr.bf16.mxu0 0
        %1350 = vmatmul.mubr.bf16.gmra.mrb[0].mxu0 %v1196
        %v1351 = vpop.f32.mrb[0].mxu0
        %v1352 = vadd.f32 0.0, %v1351
        %v1353 = vpop.f32.mrb[0].mxu0
        %v1354 = vpop.f32.mrb[0].mxu0
        %v1355 = vadd.f32 0.0, %v1354
        %v1356 = vpop.f32.mrb[0].mxu0
        %1357 = vmatprep.mubr.bf16.mxu0 0
        %1358 = vmatmul.mubr.bf16.gmra.mrb[0].mxu0 %v1199
        %v1359 = vpop.f32.mrb[0].mxu0
        %v1360 = vadd.f32 0.0, %v1359
        %v1361 = vpop.f32.mrb[0].mxu0
        %v1362 = vpop.f32.mrb[0].mxu0
        %v1363 = vadd.f32 0.0, %v1362
        %v1364 = vpop.f32.mrb[0].mxu0
        %1365 = vmatprep.mubr.bf16.mxu0 0
        %1366 = vmatmul.mubr.bf16.gmra.mrb[0].mxu0 %v1202
        %v1367 = vpop.f32.mrb[0].mxu0
        %v1368 = vadd.f32 0.0, %v1367
        %v1369 = vpop.f32.mrb[0].mxu0
        %v1370 = vpop.f32.mrb[0].mxu0
        %v1371 = vadd.f32 0.0, %v1370
        %v1372 = vpop.f32.mrb[0].mxu0
        %1373 = vmatprep.mubr.bf16.mxu0 0
        %1374 = vmatmul.mubr.bf16.gmra.mrb[0].mxu0 %v1205
        %v1375 = vpop.f32.mrb[0].mxu0
        %v1376 = vadd.f32 0.0, %v1375
        %v1377 = vpop.f32.mrb[0].mxu0
        %v1378 = vpop.f32.mrb[0].mxu0
        %v1379 = vadd.f32 0.0, %v1378
        %v1380 = vpop.f32.mrb[0].mxu0
        %1381 = vmatprep.mubr.bf16.mxu0 0
        %1382 = vmatmul.mubr.bf16.gmra.mrb[0].mxu0 %v1208
        %v1383 = vpop.f32.mrb[0].mxu0
        %v1384 = vadd.f32 0.0, %v1383
        %v1385 = vpop.f32.mrb[0].mxu0
        %v1386 = vpop.f32.mrb[0].mxu0
        %v1387 = vadd.f32 0.0, %v1386
        %v1388 = vpop.f32.mrb[0].mxu0
        %1389 = vdwg.mxu0
        %v1390 = vadd.f32 %v1062, %v1248
        %v1391 = vadd.f32 %v1063, %v1251
        %v1392 = vadd.f32 %v1064, %v1256
        %v1393 = vadd.f32 %v1065, %v1259
        %v1394 = vadd.f32 %v1066, %v1264
        %v1395 = vadd.f32 %v1067, %v1267
        %v1396 = vadd.f32 %v1068, %v1272
        %v1397 = vadd.f32 %v1069, %v1275
        %v1398 = vadd.f32 %v1070, %v1280
        %v1399 = vadd.f32 %v1071, %v1283
        %v1400 = vadd.f32 %v1072, %v1288
        %v1401 = vadd.f32 %v1073, %v1291
        %v1402 = vadd.f32 %v1074, %v1296
        %v1403 = vadd.f32 %v1075, %v1299
        %v1404 = vadd.f32 %v1076, %v1304
        %v1405 = vadd.f32 %v1077, %v1307
        %v1406 = vadd.f32 %v1078, %v1312
        %v1407 = vadd.f32 %v1079, %v1315
        %v1408 = vadd.f32 %v1080, %v1320
        %v1409 = vadd.f32 %v1081, %v1323
        %v1410 = vadd.f32 %v1082, %v1328
        %v1411 = vadd.f32 %v1083, %v1331
        %v1412 = vadd.f32 %v1084, %v1336
        %v1413 = vadd.f32 %v1085, %v1339
        %v1414 = vadd.f32 %v1086, %v1344
        %v1415 = vadd.f32 %v1087, %v1347
        %v1416 = vadd.f32 %v1088, %v1352
        %v1417 = vadd.f32 %v1089, %v1355
        %v1418 = vadd.f32 %v1090, %v1360
        %v1419 = vadd.f32 %v1091, %v1363
        %v1420 = vadd.f32 %v1092, %v1368
        %v1421 = vadd.f32 %v1093, %v1371
        %v1422 = vadd.f32 %v1094, %v1376
        %v1423 = vadd.f32 %v1095, %v1379
        %v1424 = vadd.f32 %v1096, %v1384
        %v1425 = vadd.f32 %v1097, %v1387
        %s1426 = sadd.s32 %s185, 19
        %s1427 = scalar_lea.vmem %s182, %s1426
        %v1428 = vld [vmem:[%s1427] sm:$0xff]
        %v1429 = vld [vmem:[%s1427 + $0x8] sm:$0xff]
        %v1430 = vld [vmem:[%s1427 + $0x10] sm:$0xff]
        %v1431 = vld [vmem:[%s1427 + $0x18] sm:$0xff]
        %v1432 = vld [vmem:[%s1427 + $0x20] sm:$0xff]
        %v1433 = vld [vmem:[%s1427 + $0x28] sm:$0xff]
        %v1434 = vld [vmem:[%s1427 + $0x30] sm:$0xff]
        %v1435 = vld [vmem:[%s1427 + $0x38] sm:$0xff]
        %v1436 = vld [vmem:[%s1427 + $0x40] sm:$0xff]
        %v1437 = vld [vmem:[%s1427 + $0x48] sm:$0xff]
        %v1438 = vld [vmem:[%s1427 + $0x50] sm:$0xff]
        %v1439 = vld [vmem:[%s1427 + $0x58] sm:$0xff]
        %v1440 = vld [vmem:[%s1427 + $0x60] sm:$0xff]
        %v1441 = vld [vmem:[%s1427 + $0x68] sm:$0xff]
        %v1442 = vld [vmem:[%s1427 + $0x70] sm:$0xff]
        %v1443 = vld [vmem:[%s1427 + $0x78] sm:$0xff]
        %v1444 = vld [vmem:[%s1427 + $0x80] sm:$0xff]
        %v1445 = vld [vmem:[%s1427 + $0x88] sm:$0xff]
        %v1446 = vld [vmem:[%s1427 + $0x90] sm:$0xff]
        %v1447 = vld [vmem:[%s1427 + $0x98] sm:$0xff]
        %v1448 = vld [vmem:[%s1427 + $0xa0] sm:$0xff]
        %v1449 = vld [vmem:[%s1427 + $0xa8] sm:$0xff]
        %v1450 = vld [vmem:[%s1427 + $0xb0] sm:$0xff]
        %v1451 = vld [vmem:[%s1427 + $0xb8] sm:$0xff]
        %v1452 = vld [vmem:[%s1427 + $0xc0] sm:$0xff]
        %v1453 = vld [vmem:[%s1427 + $0xc8] sm:$0xff]
        %v1454 = vld [vmem:[%s1427 + $0xd0] sm:$0xff]
        %v1455 = vld [vmem:[%s1427 + $0xd8] sm:$0xff]
        %v1456 = vld [vmem:[%s1427 + $0xe0] sm:$0xff]
        %v1457 = vld [vmem:[%s1427 + $0xe8] sm:$0xff]
        %v1458 = vld [vmem:[%s1427 + $0xf0] sm:$0xff]
        %v1459 = vld [vmem:[%s1427 + $0xf8] sm:$0xff]
        %v1460 = vld [vmem:[%s1427 + $0x100] sm:$0xff]
        %v1461 = vld [vmem:[%s1427 + $0x108] sm:$0xff]
        %v1462 = vld [vmem:[%s1427 + $0x110] sm:$0xff]
        %v1463 = vld [vmem:[%s1427 + $0x118] sm:$0xff]
        %v1464 = vpack.c.bf16 %v1429, %v1428
        %v1465 = vpack.c.bf16 %v1431, %v1430
        %v1466 = vpack.c.bf16 %v1433, %v1432
        %v1467 = vpack.c.bf16 %v1435, %v1434
        %v1468 = vpack.c.bf16 %v1437, %v1436
        %v1469 = vpack.c.bf16 %v1439, %v1438
        %v1470 = vpack.c.bf16 %v1441, %v1440
        %v1471 = vpack.c.bf16 %v1443, %v1442
        %v1472 = vpack.c.bf16 %v1445, %v1444
        %v1473 = vpack.c.bf16 %v1447, %v1446
        %v1474 = vpack.c.bf16 %v1449, %v1448
        %v1475 = vpack.c.bf16 %v1451, %v1450
        %v1476 = vpack.c.bf16 %v1453, %v1452
        %v1477 = vpack.c.bf16 %v1455, %v1454
        %v1478 = vpack.c.bf16 %v1457, %v1456
        %v1479 = vpack.c.bf16 %v1459, %v1458
        %v1480 = vpack.c.bf16 %v1461, %v1460
        %v1481 = vpack.c.bf16 %v1463, %v1462
        %s1482 = scalar_lea.vmem %s1, 8
        %v1483 = vld [vmem:[%s1482] sm:$0x3]
        %v1485 = vsel %vm300, %v1464, 0
        %v1488 = vsel %vm300, %v1465, 0
        %v1491 = vsel %vm300, %v1466, 0
        %v1494 = vsel %vm300, %v1467, 0
        %v1497 = vsel %vm300, %v1468, 0
        %v1500 = vsel %vm300, %v1469, 0
        %v1503 = vsel %vm300, %v1470, 0
        %v1506 = vsel %vm300, %v1471, 0
        %v1509 = vsel %vm300, %v1472, 0
        %v1512 = vsel %vm300, %v1473, 0
        %v1515 = vsel %vm300, %v1474, 0
        %v1518 = vsel %vm300, %v1475, 0
        %v1521 = vsel %vm300, %v1476, 0
        %v1524 = vsel %vm300, %v1477, 0
        %v1527 = vsel %vm300, %v1478, 0
        %v1530 = vsel %vm300, %v1479, 0
        %v1533 = vsel %vm300, %v1480, 0
        %v1536 = vsel %vm300, %v1481, 0
        %v1539 = vsel %vm355, %v1483, 0
        %1541 = vmatprep.subr.bf16.mxu0 0
        %1542 = vmatpush1.bf16.msra.mxu0 %v1539
        %1543 = vmatprep.subr.bf16.mxu0 0
        %1544 = vmatpush1.bf16.msra.mxu0 0
        %1545 = vmatprep.subr.bf16.mxu0 0
        %1546 = vmatpush1.bf16.msra.mxu0 0
        %1547 = vmatprep.subr.bf16.mxu0 0
        %1548 = vmatpush1.bf16.msra.mxu0 0
        %1549 = vmatprep.subr.bf16.mxu0 0
        %1550 = vmatpush1.bf16.msra.mxu0 0
        %1551 = vmatprep.subr.bf16.mxu0 0
        %1552 = vmatpush1.bf16.msra.mxu0 0
        %1553 = vmatprep.subr.bf16.mxu0 0
        %1554 = vmatpush1.bf16.msra.mxu0 0
        %1555 = vmatprep.subr.bf16.mxu0 0
        %1556 = vmatpush1.bf16.msra.mxu0 0
        %1557 = vmatprep.subr.bf16.mxu0 0
        %1558 = vmatpush1.bf16.msra.mxu0 0
        %1559 = vmatprep.subr.bf16.mxu0 0
        %1560 = vmatpush1.bf16.msra.mxu0 0
        %1561 = vmatprep.subr.bf16.mxu0 0
        %1562 = vmatpush1.bf16.msra.mxu0 0
        %1563 = vmatprep.subr.bf16.mxu0 0
        %1564 = vmatpush1.bf16.msra.mxu0 0
        %1565 = vmatprep.subr.bf16.mxu0 0
        %1566 = vmatpush1.bf16.msra.mxu0 0
        %1567 = vmatprep.subr.bf16.mxu0 0
        %1568 = vmatpush1.bf16.msra.mxu0 0
        %1569 = vmatprep.subr.bf16.mxu0 0
        %1570 = vmatpush1.bf16.msra.mxu0 0
        %1571 = vmatprep.subr.bf16.mxu0 0
        %1572 = vmatpush1.bf16.msra.mxu0 0
        %1573 = vmatprep.mubr.bf16.mxu0 0
        %1574 = vmatmul.mubr.bf16.gmra.mrb[0].mxu0 %v1485
        %v1575 = vpop.f32.mrb[0].mxu0
        %v1576 = vadd.f32 0.0, %v1575
        %v1577 = vpop.f32.mrb[0].mxu0
        %v1578 = vpop.f32.mrb[0].mxu0
        %v1579 = vadd.f32 0.0, %v1578
        %v1580 = vpop.f32.mrb[0].mxu0
        %1581 = vmatprep.mubr.bf16.mxu0 0
        %1582 = vmatmul.mubr.bf16.gmra.mrb[0].mxu0 %v1488
        %v1583 = vpop.f32.mrb[0].mxu0
        %v1584 = vadd.f32 0.0, %v1583
        %v1585 = vpop.f32.mrb[0].mxu0
        %v1586 = vpop.f32.mrb[0].mxu0
        %v1587 = vadd.f32 0.0, %v1586
        %v1588 = vpop.f32.mrb[0].mxu0
        %1589 = vmatprep.mubr.bf16.mxu0 0
        %1590 = vmatmul.mubr.bf16.gmra.mrb[0].mxu0 %v1491
        %v1591 = vpop.f32.mrb[0].mxu0
        %v1592 = vadd.f32 0.0, %v1591
        %v1593 = vpop.f32.mrb[0].mxu0
        %v1594 = vpop.f32.mrb[0].mxu0
        %v1595 = vadd.f32 0.0, %v1594
        %v1596 = vpop.f32.mrb[0].mxu0
        %1597 = vmatprep.mubr.bf16.mxu0 0
        %1598 = vmatmul.mubr.bf16.gmra.mrb[0].mxu0 %v1494
        %v1599 = vpop.f32.mrb[0].mxu0
        %v1600 = vadd.f32 0.0, %v1599
        %v1601 = vpop.f32.mrb[0].mxu0
        %v1602 = vpop.f32.mrb[0].mxu0
        %v1603 = vadd.f32 0.0, %v1602
        %v1604 = vpop.f32.mrb[0].mxu0
        %1605 = vmatprep.mubr.bf16.mxu0 0
        %1606 = vmatmul.mubr.bf16.gmra.mrb[0].mxu0 %v1497
        %v1607 = vpop.f32.mrb[0].mxu0
        %v1608 = vadd.f32 0.0, %v1607
        %v1609 = vpop.f32.mrb[0].mxu0
        %v1610 = vpop.f32.mrb[0].mxu0
        %v1611 = vadd.f32 0.0, %v1610
        %v1612 = vpop.f32.mrb[0].mxu0
        %1613 = vmatprep.mubr.bf16.mxu0 0
        %1614 = vmatmul.mubr.bf16.gmra.mrb[0].mxu0 %v1500
        %v1615 = vpop.f32.mrb[0].mxu0
        %v1616 = vadd.f32 0.0, %v1615
        %v1617 = vpop.f32.mrb[0].mxu0
        %v1618 = vpop.f32.mrb[0].mxu0
        %v1619 = vadd.f32 0.0, %v1618
        %v1620 = vpop.f32.mrb[0].mxu0
        %1621 = vmatprep.mubr.bf16.mxu0 0
        %1622 = vmatmul.mubr.bf16.gmra.mrb[0].mxu0 %v1503
        %v1623 = vpop.f32.mrb[0].mxu0
        %v1624 = vadd.f32 0.0, %v1623
        %v1625 = vpop.f32.mrb[0].mxu0
        %v1626 = vpop.f32.mrb[0].mxu0
        %v1627 = vadd.f32 0.0, %v1626
        %v1628 = vpop.f32.mrb[0].mxu0
        %1629 = vmatprep.mubr.bf16.mxu0 0
        %1630 = vmatmul.mubr.bf16.gmra.mrb[0].mxu0 %v1506
        %v1631 = vpop.f32.mrb[0].mxu0
        %v1632 = vadd.f32 0.0, %v1631
        %v1633 = vpop.f32.mrb[0].mxu0
        %v1634 = vpop.f32.mrb[0].mxu0
        %v1635 = vadd.f32 0.0, %v1634
        %v1636 = vpop.f32.mrb[0].mxu0
        %1637 = vmatprep.mubr.bf16.mxu0 0
        %1638 = vmatmul.mubr.bf16.gmra.mrb[0].mxu0 %v1509
        %v1639 = vpop.f32.mrb[0].mxu0
        %v1640 = vadd.f32 0.0, %v1639
        %v1641 = vpop.f32.mrb[0].mxu0
        %v1642 = vpop.f32.mrb[0].mxu0
        %v1643 = vadd.f32 0.0, %v1642
        %v1644 = vpop.f32.mrb[0].mxu0
        %1645 = vmatprep.mubr.bf16.mxu0 0
        %1646 = vmatmul.mubr.bf16.gmra.mrb[0].mxu0 %v1512
        %v1647 = vpop.f32.mrb[0].mxu0
        %v1648 = vadd.f32 0.0, %v1647
        %v1649 = vpop.f32.mrb[0].mxu0
        %v1650 = vpop.f32.mrb[0].mxu0
        %v1651 = vadd.f32 0.0, %v1650
        %v1652 = vpop.f32.mrb[0].mxu0
        %1653 = vmatprep.mubr.bf16.mxu0 0
        %1654 = vmatmul.mubr.bf16.gmra.mrb[0].mxu0 %v1515
        %v1655 = vpop.f32.mrb[0].mxu0
        %v1656 = vadd.f32 0.0, %v1655
        %v1657 = vpop.f32.mrb[0].mxu0
        %v1658 = vpop.f32.mrb[0].mxu0
        %v1659 = vadd.f32 0.0, %v1658
        %v1660 = vpop.f32.mrb[0].mxu0
        %1661 = vmatprep.mubr.bf16.mxu0 0
        %1662 = vmatmul.mubr.bf16.gmra.mrb[0].mxu0 %v1518
        %v1663 = vpop.f32.mrb[0].mxu0
        %v1664 = vadd.f32 0.0, %v1663
        %v1665 = vpop.f32.mrb[0].mxu0
        %v1666 = vpop.f32.mrb[0].mxu0
        %v1667 = vadd.f32 0.0, %v1666
        %v1668 = vpop.f32.mrb[0].mxu0
        %1669 = vmatprep.mubr.bf16.mxu0 0
        %1670 = vmatmul.mubr.bf16.gmra.mrb[0].mxu0 %v1521
        %v1671 = vpop.f32.mrb[0].mxu0
        %v1672 = vadd.f32 0.0, %v1671
        %v1673 = vpop.f32.mrb[0].mxu0
        %v1674 = vpop.f32.mrb[0].mxu0
        %v1675 = vadd.f32 0.0, %v1674
        %v1676 = vpop.f32.mrb[0].mxu0
        %1677 = vmatprep.mubr.bf16.mxu0 0
        %1678 = vmatmul.mubr.bf16.gmra.mrb[0].mxu0 %v1524
        %v1679 = vpop.f32.mrb[0].mxu0
        %v1680 = vadd.f32 0.0, %v1679
        %v1681 = vpop.f32.mrb[0].mxu0
        %v1682 = vpop.f32.mrb[0].mxu0
        %v1683 = vadd.f32 0.0, %v1682
        %v1684 = vpop.f32.mrb[0].mxu0
        %1685 = vmatprep.mubr.bf16.mxu0 0
        %1686 = vmatmul.mubr.bf16.gmra.mrb[0].mxu0 %v1527
        %v1687 = vpop.f32.mrb[0].mxu0
        %v1688 = vadd.f32 0.0, %v1687
        %v1689 = vpop.f32.mrb[0].mxu0
        %v1690 = vpop.f32.mrb[0].mxu0
        %v1691 = vadd.f32 0.0, %v1690
        %v1692 = vpop.f32.mrb[0].mxu0
        %1693 = vmatprep.mubr.bf16.mxu0 0
        %1694 = vmatmul.mubr.bf16.gmra.mrb[0].mxu0 %v1530
        %v1695 = vpop.f32.mrb[0].mxu0
        %v1696 = vadd.f32 0.0, %v1695
        %v1697 = vpop.f32.mrb[0].mxu0
        %v1698 = vpop.f32.mrb[0].mxu0
        %v1699 = vadd.f32 0.0, %v1698
        %v1700 = vpop.f32.mrb[0].mxu0
        %1701 = vmatprep.mubr.bf16.mxu0 0
        %1702 = vmatmul.mubr.bf16.gmra.mrb[0].mxu0 %v1533
        %v1703 = vpop.f32.mrb[0].mxu0
        %v1704 = vadd.f32 0.0, %v1703
        %v1705 = vpop.f32.mrb[0].mxu0
        %v1706 = vpop.f32.mrb[0].mxu0
        %v1707 = vadd.f32 0.0, %v1706
        %v1708 = vpop.f32.mrb[0].mxu0
        %1709 = vmatprep.mubr.bf16.mxu0 0
        %1710 = vmatmul.mubr.bf16.gmra.mrb[0].mxu0 %v1536
        %v1711 = vpop.f32.mrb[0].mxu0
        %v1712 = vadd.f32 0.0, %v1711
        %v1713 = vpop.f32.mrb[0].mxu0
        %v1714 = vpop.f32.mrb[0].mxu0
        %v1715 = vadd.f32 0.0, %v1714
        %v1716 = vpop.f32.mrb[0].mxu0
        %1717 = vdwg.mxu0
        %v1718 = vadd.f32 %v1390, %v1576
        %v1719 = vadd.f32 %v1391, %v1579
        %v1720 = vadd.f32 %v1392, %v1584
        %v1721 = vadd.f32 %v1393, %v1587
        %v1722 = vadd.f32 %v1394, %v1592
        %v1723 = vadd.f32 %v1395, %v1595
        %v1724 = vadd.f32 %v1396, %v1600
        %v1725 = vadd.f32 %v1397, %v1603
        %v1726 = vadd.f32 %v1398, %v1608
        %v1727 = vadd.f32 %v1399, %v1611
        %v1728 = vadd.f32 %v1400, %v1616
        %v1729 = vadd.f32 %v1401, %v1619
        %v1730 = vadd.f32 %v1402, %v1624
        %v1731 = vadd.f32 %v1403, %v1627
        %v1732 = vadd.f32 %v1404, %v1632
        %v1733 = vadd.f32 %v1405, %v1635
        %v1734 = vadd.f32 %v1406, %v1640
        %v1735 = vadd.f32 %v1407, %v1643
        %v1736 = vadd.f32 %v1408, %v1648
        %v1737 = vadd.f32 %v1409, %v1651
        %v1738 = vadd.f32 %v1410, %v1656
        %v1739 = vadd.f32 %v1411, %v1659
        %v1740 = vadd.f32 %v1412, %v1664
        %v1741 = vadd.f32 %v1413, %v1667
        %v1742 = vadd.f32 %v1414, %v1672
        %v1743 = vadd.f32 %v1415, %v1675
        %v1744 = vadd.f32 %v1416, %v1680
        %v1745 = vadd.f32 %v1417, %v1683
        %v1746 = vadd.f32 %v1418, %v1688
        %v1747 = vadd.f32 %v1419, %v1691
        %v1748 = vadd.f32 %v1420, %v1696
        %v1749 = vadd.f32 %v1421, %v1699
        %v1750 = vadd.f32 %v1422, %v1704
        %v1751 = vadd.f32 %v1423, %v1707
        %v1752 = vadd.f32 %v1424, %v1712
        %v1753 = vadd.f32 %v1425, %v1715
        %s1754 = sadd.s32 %s185, 20
        %s1755 = scalar_lea.vmem %s182, %s1754
        %v1756 = vld [vmem:[%s1755] sm:$0xff]
        %v1757 = vld [vmem:[%s1755 + $0x8] sm:$0xff]
        %v1758 = vld [vmem:[%s1755 + $0x10] sm:$0xff]
        %v1759 = vld [vmem:[%s1755 + $0x18] sm:$0xff]
        %v1760 = vld [vmem:[%s1755 + $0x20] sm:$0xff]
        %v1761 = vld [vmem:[%s1755 + $0x28] sm:$0xff]
        %v1762 = vld [vmem:[%s1755 + $0x30] sm:$0xff]
        %v1763 = vld [vmem:[%s1755 + $0x38] sm:$0xff]
        %v1764 = vld [vmem:[%s1755 + $0x40] sm:$0xff]
        %v1765 = vld [vmem:[%s1755 + $0x48] sm:$0xff]
        %v1766 = vld [vmem:[%s1755 + $0x50] sm:$0xff]
        %v1767 = vld [vmem:[%s1755 + $0x58] sm:$0xff]
        %v1768 = vld [vmem:[%s1755 + $0x60] sm:$0xff]
        %v1769 = vld [vmem:[%s1755 + $0x68] sm:$0xff]
        %v1770 = vld [vmem:[%s1755 + $0x70] sm:$0xff]
        %v1771 = vld [vmem:[%s1755 + $0x78] sm:$0xff]
        %v1772 = vld [vmem:[%s1755 + $0x80] sm:$0xff]
        %v1773 = vld [vmem:[%s1755 + $0x88] sm:$0xff]
        %v1774 = vld [vmem:[%s1755 + $0x90] sm:$0xff]
        %v1775 = vld [vmem:[%s1755 + $0x98] sm:$0xff]
        %v1776 = vld [vmem:[%s1755 + $0xa0] sm:$0xff]
        %v1777 = vld [vmem:[%s1755 + $0xa8] sm:$0xff]
        %v1778 = vld [vmem:[%s1755 + $0xb0] sm:$0xff]
        %v1779 = vld [vmem:[%s1755 + $0xb8] sm:$0xff]
        %v1780 = vld [vmem:[%s1755 + $0xc0] sm:$0xff]
        %v1781 = vld [vmem:[%s1755 + $0xc8] sm:$0xff]
        %v1782 = vld [vmem:[%s1755 + $0xd0] sm:$0xff]
        %v1783 = vld [vmem:[%s1755 + $0xd8] sm:$0xff]
        %v1784 = vld [vmem:[%s1755 + $0xe0] sm:$0xff]
        %v1785 = vld [vmem:[%s1755 + $0xe8] sm:$0xff]
        %v1786 = vld [vmem:[%s1755 + $0xf0] sm:$0xff]
        %v1787 = vld [vmem:[%s1755 + $0xf8] sm:$0xff]
        %v1788 = vld [vmem:[%s1755 + $0x100] sm:$0xff]
        %v1789 = vld [vmem:[%s1755 + $0x108] sm:$0xff]
        %v1790 = vld [vmem:[%s1755 + $0x110] sm:$0xff]
        %v1791 = vld [vmem:[%s1755 + $0x118] sm:$0xff]
        %v1792 = vpack.c.bf16 %v1757, %v1756
        %v1793 = vpack.c.bf16 %v1759, %v1758
        %v1794 = vpack.c.bf16 %v1761, %v1760
        %v1795 = vpack.c.bf16 %v1763, %v1762
        %v1796 = vpack.c.bf16 %v1765, %v1764
        %v1797 = vpack.c.bf16 %v1767, %v1766
        %v1798 = vpack.c.bf16 %v1769, %v1768
        %v1799 = vpack.c.bf16 %v1771, %v1770
        %v1800 = vpack.c.bf16 %v1773, %v1772
        %v1801 = vpack.c.bf16 %v1775, %v1774
        %v1802 = vpack.c.bf16 %v1777, %v1776
        %v1803 = vpack.c.bf16 %v1779, %v1778
        %v1804 = vpack.c.bf16 %v1781, %v1780
        %v1805 = vpack.c.bf16 %v1783, %v1782
        %v1806 = vpack.c.bf16 %v1785, %v1784
        %v1807 = vpack.c.bf16 %v1787, %v1786
        %v1808 = vpack.c.bf16 %v1789, %v1788
        %v1809 = vpack.c.bf16 %v1791, %v1790
        %s1810 = scalar_lea.vmem %s1, 10
        %v1811 = vld [vmem:[%s1810] sm:$0x3]
        %v1813 = vsel %vm300, %v1792, 0
        %v1816 = vsel %vm300, %v1793, 0
        %v1819 = vsel %vm300, %v1794, 0
        %v1822 = vsel %vm300, %v1795, 0
        %v1825 = vsel %vm300, %v1796, 0
        %v1828 = vsel %vm300, %v1797, 0
        %v1831 = vsel %vm300, %v1798, 0
        %v1834 = vsel %vm300, %v1799, 0
        %v1837 = vsel %vm300, %v1800, 0
        %v1840 = vsel %vm300, %v1801, 0
        %v1843 = vsel %vm300, %v1802, 0
        %v1846 = vsel %vm300, %v1803, 0
        %v1849 = vsel %vm300, %v1804, 0
        %v1852 = vsel %vm300, %v1805, 0
        %v1855 = vsel %vm300, %v1806, 0
        %v1858 = vsel %vm300, %v1807, 0
        %v1861 = vsel %vm300, %v1808, 0
        %v1864 = vsel %vm300, %v1809, 0
        %v1867 = vsel %vm355, %v1811, 0
        %1869 = vmatprep.subr.bf16.mxu0 0
        %1870 = vmatpush1.bf16.msra.mxu0 %v1867
        %1871 = vmatprep.subr.bf16.mxu0 0
        %1872 = vmatpush1.bf16.msra.mxu0 0
        %1873 = vmatprep.subr.bf16.mxu0 0
        %1874 = vmatpush1.bf16.msra.mxu0 0
        %1875 = vmatprep.subr.bf16.mxu0 0
        %1876 = vmatpush1.bf16.msra.mxu0 0
        %1877 = vmatprep.subr.bf16.mxu0 0
        %1878 = vmatpush1.bf16.msra.mxu0 0
        %1879 = vmatprep.subr.bf16.mxu0 0
        %1880 = vmatpush1.bf16.msra.mxu0 0
        %1881 = vmatprep.subr.bf16.mxu0 0
        %1882 = vmatpush1.bf16.msra.mxu0 0
        %1883 = vmatprep.subr.bf16.mxu0 0
        %1884 = vmatpush1.bf16.msra.mxu0 0
        %1885 = vmatprep.subr.bf16.mxu0 0
        %1886 = vmatpush1.bf16.msra.mxu0 0
        %1887 = vmatprep.subr.bf16.mxu0 0
        %1888 = vmatpush1.bf16.msra.mxu0 0
        %1889 = vmatprep.subr.bf16.mxu0 0
        %1890 = vmatpush1.bf16.msra.mxu0 0
        %1891 = vmatprep.subr.bf16.mxu0 0
        %1892 = vmatpush1.bf16.msra.mxu0 0
        %1893 = vmatprep.subr.bf16.mxu0 0
        %1894 = vmatpush1.bf16.msra.mxu0 0
        %1895 = vmatprep.subr.bf16.mxu0 0
        %1896 = vmatpush1.bf16.msra.mxu0 0
        %1897 = vmatprep.subr.bf16.mxu0 0
        %1898 = vmatpush1.bf16.msra.mxu0 0
        %1899 = vmatprep.subr.bf16.mxu0 0
        %1900 = vmatpush1.bf16.msra.mxu0 0
        %1901 = vmatprep.mubr.bf16.mxu0 0
        %1902 = vmatmul.mubr.bf16.gmra.mrb[0].mxu0 %v1813
        %v1903 = vpop.f32.mrb[0].mxu0
        %v1904 = vadd.f32 0.0, %v1903
        %v1905 = vpop.f32.mrb[0].mxu0
        %v1906 = vpop.f32.mrb[0].mxu0
        %v1907 = vadd.f32 0.0, %v1906
        %v1908 = vpop.f32.mrb[0].mxu0
        %1909 = vmatprep.mubr.bf16.mxu0 0
        %1910 = vmatmul.mubr.bf16.gmra.mrb[0].mxu0 %v1816
        %v1911 = vpop.f32.mrb[0].mxu0
        %v1912 = vadd.f32 0.0, %v1911
        %v1913 = vpop.f32.mrb[0].mxu0
        %v1914 = vpop.f32.mrb[0].mxu0
        %v1915 = vadd.f32 0.0, %v1914
        %v1916 = vpop.f32.mrb[0].mxu0
        %1917 = vmatprep.mubr.bf16.mxu0 0
        %1918 = vmatmul.mubr.bf16.gmra.mrb[0].mxu0 %v1819
        %v1919 = vpop.f32.mrb[0].mxu0
        %v1920 = vadd.f32 0.0, %v1919
        %v1921 = vpop.f32.mrb[0].mxu0
        %v1922 = vpop.f32.mrb[0].mxu0
        %v1923 = vadd.f32 0.0, %v1922
        %v1924 = vpop.f32.mrb[0].mxu0
        %1925 = vmatprep.mubr.bf16.mxu0 0
        %1926 = vmatmul.mubr.bf16.gmra.mrb[0].mxu0 %v1822
        %v1927 = vpop.f32.mrb[0].mxu0
        %v1928 = vadd.f32 0.0, %v1927
        %v1929 = vpop.f32.mrb[0].mxu0
        %v1930 = vpop.f32.mrb[0].mxu0
        %v1931 = vadd.f32 0.0, %v1930
        %v1932 = vpop.f32.mrb[0].mxu0
        %1933 = vmatprep.mubr.bf16.mxu0 0
        %1934 = vmatmul.mubr.bf16.gmra.mrb[0].mxu0 %v1825
        %v1935 = vpop.f32.mrb[0].mxu0
        %v1936 = vadd.f32 0.0, %v1935
        %v1937 = vpop.f32.mrb[0].mxu0
        %v1938 = vpop.f32.mrb[0].mxu0
        %v1939 = vadd.f32 0.0, %v1938
        %v1940 = vpop.f32.mrb[0].mxu0
        %1941 = vmatprep.mubr.bf16.mxu0 0
        %1942 = vmatmul.mubr.bf16.gmra.mrb[0].mxu0 %v1828
        %v1943 = vpop.f32.mrb[0].mxu0
        %v1944 = vadd.f32 0.0, %v1943
        %v1945 = vpop.f32.mrb[0].mxu0
        %v1946 = vpop.f32.mrb[0].mxu0
        %v1947 = vadd.f32 0.0, %v1946
        %v1948 = vpop.f32.mrb[0].mxu0
        %1949 = vmatprep.mubr.bf16.mxu0 0
        %1950 = vmatmul.mubr.bf16.gmra.mrb[0].mxu0 %v1831
        %v1951 = vpop.f32.mrb[0].mxu0
        %v1952 = vadd.f32 0.0, %v1951
        %v1953 = vpop.f32.mrb[0].mxu0
        %v1954 = vpop.f32.mrb[0].mxu0
        %v1955 = vadd.f32 0.0, %v1954
        %v1956 = vpop.f32.mrb[0].mxu0
        %1957 = vmatprep.mubr.bf16.mxu0 0
        %1958 = vmatmul.mubr.bf16.gmra.mrb[0].mxu0 %v1834
        %v1959 = vpop.f32.mrb[0].mxu0
        %v1960 = vadd.f32 0.0, %v1959
        %v1961 = vpop.f32.mrb[0].mxu0
        %v1962 = vpop.f32.mrb[0].mxu0
        %v1963 = vadd.f32 0.0, %v1962
        %v1964 = vpop.f32.mrb[0].mxu0
        %1965 = vmatprep.mubr.bf16.mxu0 0
        %1966 = vmatmul.mubr.bf16.gmra.mrb[0].mxu0 %v1837
        %v1967 = vpop.f32.mrb[0].mxu0
        %v1968 = vadd.f32 0.0, %v1967
        %v1969 = vpop.f32.mrb[0].mxu0
        %v1970 = vpop.f32.mrb[0].mxu0
        %v1971 = vadd.f32 0.0, %v1970
        %v1972 = vpop.f32.mrb[0].mxu0
        %1973 = vmatprep.mubr.bf16.mxu0 0
        %1974 = vmatmul.mubr.bf16.gmra.mrb[0].mxu0 %v1840
        %v1975 = vpop.f32.mrb[0].mxu0
        %v1976 = vadd.f32 0.0, %v1975
        %v1977 = vpop.f32.mrb[0].mxu0
        %v1978 = vpop.f32.mrb[0].mxu0
        %v1979 = vadd.f32 0.0, %v1978
        %v1980 = vpop.f32.mrb[0].mxu0
        %1981 = vmatprep.mubr.bf16.mxu0 0
        %1982 = vmatmul.mubr.bf16.gmra.mrb[0].mxu0 %v1843
        %v1983 = vpop.f32.mrb[0].mxu0
        %v1984 = vadd.f32 0.0, %v1983
        %v1985 = vpop.f32.mrb[0].mxu0
        %v1986 = vpop.f32.mrb[0].mxu0
        %v1987 = vadd.f32 0.0, %v1986
        %v1988 = vpop.f32.mrb[0].mxu0
        %1989 = vmatprep.mubr.bf16.mxu0 0
        %1990 = vmatmul.mubr.bf16.gmra.mrb[0].mxu0 %v1846
        %v1991 = vpop.f32.mrb[0].mxu0
        %v1992 = vadd.f32 0.0, %v1991
        %v1993 = vpop.f32.mrb[0].mxu0
        %v1994 = vpop.f32.mrb[0].mxu0
        %v1995 = vadd.f32 0.0, %v1994
        %v1996 = vpop.f32.mrb[0].mxu0
        %1997 = vmatprep.mubr.bf16.mxu0 0
        %1998 = vmatmul.mubr.bf16.gmra.mrb[0].mxu0 %v1849
        %v1999 = vpop.f32.mrb[0].mxu0
        %v2000 = vadd.f32 0.0, %v1999
        %v2001 = vpop.f32.mrb[0].mxu0
        %v2002 = vpop.f32.mrb[0].mxu0
        %v2003 = vadd.f32 0.0, %v2002
        %v2004 = vpop.f32.mrb[0].mxu0
        %2005 = vmatprep.mubr.bf16.mxu0 0
        %2006 = vmatmul.mubr.bf16.gmra.mrb[0].mxu0 %v1852
        %v2007 = vpop.f32.mrb[0].mxu0
        %v2008 = vadd.f32 0.0, %v2007
        %v2009 = vpop.f32.mrb[0].mxu0
        %v2010 = vpop.f32.mrb[0].mxu0
        %v2011 = vadd.f32 0.0, %v2010
        %v2012 = vpop.f32.mrb[0].mxu0
        %2013 = vmatprep.mubr.bf16.mxu0 0
        %2014 = vmatmul.mubr.bf16.gmra.mrb[0].mxu0 %v1855
        %v2015 = vpop.f32.mrb[0].mxu0
        %v2016 = vadd.f32 0.0, %v2015
        %v2017 = vpop.f32.mrb[0].mxu0
        %v2018 = vpop.f32.mrb[0].mxu0
        %v2019 = vadd.f32 0.0, %v2018
        %v2020 = vpop.f32.mrb[0].mxu0
        %2021 = vmatprep.mubr.bf16.mxu0 0
        %2022 = vmatmul.mubr.bf16.gmra.mrb[0].mxu0 %v1858
        %v2023 = vpop.f32.mrb[0].mxu0
        %v2024 = vadd.f32 0.0, %v2023
        %v2025 = vpop.f32.mrb[0].mxu0
        %v2026 = vpop.f32.mrb[0].mxu0
        %v2027 = vadd.f32 0.0, %v2026
        %v2028 = vpop.f32.mrb[0].mxu0
        %2029 = vmatprep.mubr.bf16.mxu0 0
        %2030 = vmatmul.mubr.bf16.gmra.mrb[0].mxu0 %v1861
        %v2031 = vpop.f32.mrb[0].mxu0
        %v2032 = vadd.f32 0.0, %v2031
        %v2033 = vpop.f32.mrb[0].mxu0
        %v2034 = vpop.f32.mrb[0].mxu0
        %v2035 = vadd.f32 0.0, %v2034
        %v2036 = vpop.f32.mrb[0].mxu0
        %2037 = vmatprep.mubr.bf16.mxu0 0
        %2038 = vmatmul.mubr.bf16.gmra.mrb[0].mxu0 %v1864
        %v2039 = vpop.f32.mrb[0].mxu0
        %v2040 = vadd.f32 0.0, %v2039
        %v2041 = vpop.f32.mrb[0].mxu0
        %v2042 = vpop.f32.mrb[0].mxu0
        %v2043 = vadd.f32 0.0, %v2042
        %v2044 = vpop.f32.mrb[0].mxu0
        %2045 = vdwg.mxu0
        %v2046 = vadd.f32 %v1718, %v1904
        %v2047 = vadd.f32 %v1719, %v1907
        %v2048 = vadd.f32 %v1720, %v1912
        %v2049 = vadd.f32 %v1721, %v1915
        %v2050 = vadd.f32 %v1722, %v1920
        %v2051 = vadd.f32 %v1723, %v1923
        %v2052 = vadd.f32 %v1724, %v1928
        %v2053 = vadd.f32 %v1725, %v1931
        %v2054 = vadd.f32 %v1726, %v1936
        %v2055 = vadd.f32 %v1727, %v1939
        %v2056 = vadd.f32 %v1728, %v1944
        %v2057 = vadd.f32 %v1729, %v1947
        %v2058 = vadd.f32 %v1730, %v1952
        %v2059 = vadd.f32 %v1731, %v1955
        %v2060 = vadd.f32 %v1732, %v1960
        %v2061 = vadd.f32 %v1733, %v1963
        %v2062 = vadd.f32 %v1734, %v1968
        %v2063 = vadd.f32 %v1735, %v1971
        %v2064 = vadd.f32 %v1736, %v1976
        %v2065 = vadd.f32 %v1737, %v1979
        %v2066 = vadd.f32 %v1738, %v1984
        %v2067 = vadd.f32 %v1739, %v1987
        %v2068 = vadd.f32 %v1740, %v1992
        %v2069 = vadd.f32 %v1741, %v1995
        %v2070 = vadd.f32 %v1742, %v2000
        %v2071 = vadd.f32 %v1743, %v2003
        %v2072 = vadd.f32 %v1744, %v2008
        %v2073 = vadd.f32 %v1745, %v2011
        %v2074 = vadd.f32 %v1746, %v2016
        %v2075 = vadd.f32 %v1747, %v2019
        %v2076 = vadd.f32 %v1748, %v2024
        %v2077 = vadd.f32 %v1749, %v2027
        %v2078 = vadd.f32 %v1750, %v2032
        %v2079 = vadd.f32 %v1751, %v2035
        %v2080 = vadd.f32 %v1752, %v2040
        %v2081 = vadd.f32 %v1753, %v2043
        %s2082 = sadd.s32 %s185, 36
        %s2083 = scalar_lea.vmem %s182, %s2082
        %v2084 = vld [vmem:[%s2083] sm:$0xff]
        %v2085 = vld [vmem:[%s2083 + $0x8] sm:$0xff]
        %v2086 = vld [vmem:[%s2083 + $0x10] sm:$0xff]
        %v2087 = vld [vmem:[%s2083 + $0x18] sm:$0xff]
        %v2088 = vld [vmem:[%s2083 + $0x20] sm:$0xff]
        %v2089 = vld [vmem:[%s2083 + $0x28] sm:$0xff]
        %v2090 = vld [vmem:[%s2083 + $0x30] sm:$0xff]
        %v2091 = vld [vmem:[%s2083 + $0x38] sm:$0xff]
        %v2092 = vld [vmem:[%s2083 + $0x40] sm:$0xff]
        %v2093 = vld [vmem:[%s2083 + $0x48] sm:$0xff]
        %v2094 = vld [vmem:[%s2083 + $0x50] sm:$0xff]
        %v2095 = vld [vmem:[%s2083 + $0x58] sm:$0xff]
        %v2096 = vld [vmem:[%s2083 + $0x60] sm:$0xff]
        %v2097 = vld [vmem:[%s2083 + $0x68] sm:$0xff]
        %v2098 = vld [vmem:[%s2083 + $0x70] sm:$0xff]
        %v2099 = vld [vmem:[%s2083 + $0x78] sm:$0xff]
        %v2100 = vld [vmem:[%s2083 + $0x80] sm:$0xff]
        %v2101 = vld [vmem:[%s2083 + $0x88] sm:$0xff]
        %v2102 = vld [vmem:[%s2083 + $0x90] sm:$0xff]
        %v2103 = vld [vmem:[%s2083 + $0x98] sm:$0xff]
        %v2104 = vld [vmem:[%s2083 + $0xa0] sm:$0xff]
        %v2105 = vld [vmem:[%s2083 + $0xa8] sm:$0xff]
        %v2106 = vld [vmem:[%s2083 + $0xb0] sm:$0xff]
        %v2107 = vld [vmem:[%s2083 + $0xb8] sm:$0xff]
        %v2108 = vld [vmem:[%s2083 + $0xc0] sm:$0xff]
        %v2109 = vld [vmem:[%s2083 + $0xc8] sm:$0xff]
        %v2110 = vld [vmem:[%s2083 + $0xd0] sm:$0xff]
        %v2111 = vld [vmem:[%s2083 + $0xd8] sm:$0xff]
        %v2112 = vld [vmem:[%s2083 + $0xe0] sm:$0xff]
        %v2113 = vld [vmem:[%s2083 + $0xe8] sm:$0xff]
        %v2114 = vld [vmem:[%s2083 + $0xf0] sm:$0xff]
        %v2115 = vld [vmem:[%s2083 + $0xf8] sm:$0xff]
        %v2116 = vld [vmem:[%s2083 + $0x100] sm:$0xff]
        %v2117 = vld [vmem:[%s2083 + $0x108] sm:$0xff]
        %v2118 = vld [vmem:[%s2083 + $0x110] sm:$0xff]
        %v2119 = vld [vmem:[%s2083 + $0x118] sm:$0xff]
        %v2120 = vpack.c.bf16 %v2085, %v2084
        %v2121 = vpack.c.bf16 %v2087, %v2086
        %v2122 = vpack.c.bf16 %v2089, %v2088
        %v2123 = vpack.c.bf16 %v2091, %v2090
        %v2124 = vpack.c.bf16 %v2093, %v2092
        %v2125 = vpack.c.bf16 %v2095, %v2094
        %v2126 = vpack.c.bf16 %v2097, %v2096
        %v2127 = vpack.c.bf16 %v2099, %v2098
        %v2128 = vpack.c.bf16 %v2101, %v2100
        %v2129 = vpack.c.bf16 %v2103, %v2102
        %v2130 = vpack.c.bf16 %v2105, %v2104
        %v2131 = vpack.c.bf16 %v2107, %v2106
        %v2132 = vpack.c.bf16 %v2109, %v2108
        %v2133 = vpack.c.bf16 %v2111, %v2110
        %v2134 = vpack.c.bf16 %v2113, %v2112
        %v2135 = vpack.c.bf16 %v2115, %v2114
        %v2136 = vpack.c.bf16 %v2117, %v2116
        %v2137 = vpack.c.bf16 %v2119, %v2118
        %s2138 = scalar_lea.vmem %s1, 12
        %v2139 = vld [vmem:[%s2138] sm:$0x3]
        %v2141 = vsel %vm300, %v2120, 0
        %v2144 = vsel %vm300, %v2121, 0
        %v2147 = vsel %vm300, %v2122, 0
        %v2150 = vsel %vm300, %v2123, 0
        %v2153 = vsel %vm300, %v2124, 0
        %v2156 = vsel %vm300, %v2125, 0
        %v2159 = vsel %vm300, %v2126, 0
        %v2162 = vsel %vm300, %v2127, 0
        %v2165 = vsel %vm300, %v2128, 0
        %v2168 = vsel %vm300, %v2129, 0
        %v2171 = vsel %vm300, %v2130, 0
        %v2174 = vsel %vm300, %v2131, 0
        %v2177 = vsel %vm300, %v2132, 0
        %v2180 = vsel %vm300, %v2133, 0
        %v2183 = vsel %vm300, %v2134, 0
        %v2186 = vsel %vm300, %v2135, 0
        %v2189 = vsel %vm300, %v2136, 0
        %v2192 = vsel %vm300, %v2137, 0
        %v2195 = vsel %vm355, %v2139, 0
        %2197 = vmatprep.subr.bf16.mxu0 0
        %2198 = vmatpush1.bf16.msra.mxu0 %v2195
        %2199 = vmatprep.subr.bf16.mxu0 0
        %2200 = vmatpush1.bf16.msra.mxu0 0
        %2201 = vmatprep.subr.bf16.mxu0 0
        %2202 = vmatpush1.bf16.msra.mxu0 0
        %2203 = vmatprep.subr.bf16.mxu0 0
        %2204 = vmatpush1.bf16.msra.mxu0 0
        %2205 = vmatprep.subr.bf16.mxu0 0
        %2206 = vmatpush1.bf16.msra.mxu0 0
        %2207 = vmatprep.subr.bf16.mxu0 0
        %2208 = vmatpush1.bf16.msra.mxu0 0
        %2209 = vmatprep.subr.bf16.mxu0 0
        %2210 = vmatpush1.bf16.msra.mxu0 0
        %2211 = vmatprep.subr.bf16.mxu0 0
        %2212 = vmatpush1.bf16.msra.mxu0 0
        %2213 = vmatprep.subr.bf16.mxu0 0
        %2214 = vmatpush1.bf16.msra.mxu0 0
        %2215 = vmatprep.subr.bf16.mxu0 0
        %2216 = vmatpush1.bf16.msra.mxu0 0
        %2217 = vmatprep.subr.bf16.mxu0 0
        %2218 = vmatpush1.bf16.msra.mxu0 0
        %2219 = vmatprep.subr.bf16.mxu0 0
        %2220 = vmatpush1.bf16.msra.mxu0 0
        %2221 = vmatprep.subr.bf16.mxu0 0
        %2222 = vmatpush1.bf16.msra.mxu0 0
        %2223 = vmatprep.subr.bf16.mxu0 0
        %2224 = vmatpush1.bf16.msra.mxu0 0
        %2225 = vmatprep.subr.bf16.mxu0 0
        %2226 = vmatpush1.bf16.msra.mxu0 0
        %2227 = vmatprep.subr.bf16.mxu0 0
        %2228 = vmatpush1.bf16.msra.mxu0 0
        %2229 = vmatprep.mubr.bf16.mxu0 0
        %2230 = vmatmul.mubr.bf16.gmra.mrb[0].mxu0 %v2141
        %v2231 = vpop.f32.mrb[0].mxu0
        %v2232 = vadd.f32 0.0, %v2231
        %v2233 = vpop.f32.mrb[0].mxu0
        %v2234 = vpop.f32.mrb[0].mxu0
        %v2235 = vadd.f32 0.0, %v2234
        %v2236 = vpop.f32.mrb[0].mxu0
        %2237 = vmatprep.mubr.bf16.mxu0 0
        %2238 = vmatmul.mubr.bf16.gmra.mrb[0].mxu0 %v2144
        %v2239 = vpop.f32.mrb[0].mxu0
        %v2240 = vadd.f32 0.0, %v2239
        %v2241 = vpop.f32.mrb[0].mxu0
        %v2242 = vpop.f32.mrb[0].mxu0
        %v2243 = vadd.f32 0.0, %v2242
        %v2244 = vpop.f32.mrb[0].mxu0
        %2245 = vmatprep.mubr.bf16.mxu0 0
        %2246 = vmatmul.mubr.bf16.gmra.mrb[0].mxu0 %v2147
        %v2247 = vpop.f32.mrb[0].mxu0
        %v2248 = vadd.f32 0.0, %v2247
        %v2249 = vpop.f32.mrb[0].mxu0
        %v2250 = vpop.f32.mrb[0].mxu0
        %v2251 = vadd.f32 0.0, %v2250
        %v2252 = vpop.f32.mrb[0].mxu0
        %2253 = vmatprep.mubr.bf16.mxu0 0
        %2254 = vmatmul.mubr.bf16.gmra.mrb[0].mxu0 %v2150
        %v2255 = vpop.f32.mrb[0].mxu0
        %v2256 = vadd.f32 0.0, %v2255
        %v2257 = vpop.f32.mrb[0].mxu0
        %v2258 = vpop.f32.mrb[0].mxu0
        %v2259 = vadd.f32 0.0, %v2258
        %v2260 = vpop.f32.mrb[0].mxu0
        %2261 = vmatprep.mubr.bf16.mxu0 0
        %2262 = vmatmul.mubr.bf16.gmra.mrb[0].mxu0 %v2153
        %v2263 = vpop.f32.mrb[0].mxu0
        %v2264 = vadd.f32 0.0, %v2263
        %v2265 = vpop.f32.mrb[0].mxu0
        %v2266 = vpop.f32.mrb[0].mxu0
        %v2267 = vadd.f32 0.0, %v2266
        %v2268 = vpop.f32.mrb[0].mxu0
        %2269 = vmatprep.mubr.bf16.mxu0 0
        %2270 = vmatmul.mubr.bf16.gmra.mrb[0].mxu0 %v2156
        %v2271 = vpop.f32.mrb[0].mxu0
        %v2272 = vadd.f32 0.0, %v2271
        %v2273 = vpop.f32.mrb[0].mxu0
        %v2274 = vpop.f32.mrb[0].mxu0
        %v2275 = vadd.f32 0.0, %v2274
        %v2276 = vpop.f32.mrb[0].mxu0
        %2277 = vmatprep.mubr.bf16.mxu0 0
        %2278 = vmatmul.mubr.bf16.gmra.mrb[0].mxu0 %v2159
        %v2279 = vpop.f32.mrb[0].mxu0
        %v2280 = vadd.f32 0.0, %v2279
        %v2281 = vpop.f32.mrb[0].mxu0
        %v2282 = vpop.f32.mrb[0].mxu0
        %v2283 = vadd.f32 0.0, %v2282
        %v2284 = vpop.f32.mrb[0].mxu0
        %2285 = vmatprep.mubr.bf16.mxu0 0
        %2286 = vmatmul.mubr.bf16.gmra.mrb[0].mxu0 %v2162
        %v2287 = vpop.f32.mrb[0].mxu0
        %v2288 = vadd.f32 0.0, %v2287
        %v2289 = vpop.f32.mrb[0].mxu0
        %v2290 = vpop.f32.mrb[0].mxu0
        %v2291 = vadd.f32 0.0, %v2290
        %v2292 = vpop.f32.mrb[0].mxu0
        %2293 = vmatprep.mubr.bf16.mxu0 0
        %2294 = vmatmul.mubr.bf16.gmra.mrb[0].mxu0 %v2165
        %v2295 = vpop.f32.mrb[0].mxu0
        %v2296 = vadd.f32 0.0, %v2295
        %v2297 = vpop.f32.mrb[0].mxu0
        %v2298 = vpop.f32.mrb[0].mxu0
        %v2299 = vadd.f32 0.0, %v2298
        %v2300 = vpop.f32.mrb[0].mxu0
        %2301 = vmatprep.mubr.bf16.mxu0 0
        %2302 = vmatmul.mubr.bf16.gmra.mrb[0].mxu0 %v2168
        %v2303 = vpop.f32.mrb[0].mxu0
        %v2304 = vadd.f32 0.0, %v2303
        %v2305 = vpop.f32.mrb[0].mxu0
        %v2306 = vpop.f32.mrb[0].mxu0
        %v2307 = vadd.f32 0.0, %v2306
        %v2308 = vpop.f32.mrb[0].mxu0
        %2309 = vmatprep.mubr.bf16.mxu0 0
        %2310 = vmatmul.mubr.bf16.gmra.mrb[0].mxu0 %v2171
        %v2311 = vpop.f32.mrb[0].mxu0
        %v2312 = vadd.f32 0.0, %v2311
        %v2313 = vpop.f32.mrb[0].mxu0
        %v2314 = vpop.f32.mrb[0].mxu0
        %v2315 = vadd.f32 0.0, %v2314
        %v2316 = vpop.f32.mrb[0].mxu0
        %2317 = vmatprep.mubr.bf16.mxu0 0
        %2318 = vmatmul.mubr.bf16.gmra.mrb[0].mxu0 %v2174
        %v2319 = vpop.f32.mrb[0].mxu0
        %v2320 = vadd.f32 0.0, %v2319
        %v2321 = vpop.f32.mrb[0].mxu0
        %v2322 = vpop.f32.mrb[0].mxu0
        %v2323 = vadd.f32 0.0, %v2322
        %v2324 = vpop.f32.mrb[0].mxu0
        %2325 = vmatprep.mubr.bf16.mxu0 0
        %2326 = vmatmul.mubr.bf16.gmra.mrb[0].mxu0 %v2177
        %v2327 = vpop.f32.mrb[0].mxu0
        %v2328 = vadd.f32 0.0, %v2327
        %v2329 = vpop.f32.mrb[0].mxu0
        %v2330 = vpop.f32.mrb[0].mxu0
        %v2331 = vadd.f32 0.0, %v2330
        %v2332 = vpop.f32.mrb[0].mxu0
        %2333 = vmatprep.mubr.bf16.mxu0 0
        %2334 = vmatmul.mubr.bf16.gmra.mrb[0].mxu0 %v2180
        %v2335 = vpop.f32.mrb[0].mxu0
        %v2336 = vadd.f32 0.0, %v2335
        %v2337 = vpop.f32.mrb[0].mxu0
        %v2338 = vpop.f32.mrb[0].mxu0
        %v2339 = vadd.f32 0.0, %v2338
        %v2340 = vpop.f32.mrb[0].mxu0
        %2341 = vmatprep.mubr.bf16.mxu0 0
        %2342 = vmatmul.mubr.bf16.gmra.mrb[0].mxu0 %v2183
        %v2343 = vpop.f32.mrb[0].mxu0
        %v2344 = vadd.f32 0.0, %v2343
        %v2345 = vpop.f32.mrb[0].mxu0
        %v2346 = vpop.f32.mrb[0].mxu0
        %v2347 = vadd.f32 0.0, %v2346
        %v2348 = vpop.f32.mrb[0].mxu0
        %2349 = vmatprep.mubr.bf16.mxu0 0
        %2350 = vmatmul.mubr.bf16.gmra.mrb[0].mxu0 %v2186
        %v2351 = vpop.f32.mrb[0].mxu0
        %v2352 = vadd.f32 0.0, %v2351
        %v2353 = vpop.f32.mrb[0].mxu0
        %v2354 = vpop.f32.mrb[0].mxu0
        %v2355 = vadd.f32 0.0, %v2354
        %v2356 = vpop.f32.mrb[0].mxu0
        %2357 = vmatprep.mubr.bf16.mxu0 0
        %2358 = vmatmul.mubr.bf16.gmra.mrb[0].mxu0 %v2189
        %v2359 = vpop.f32.mrb[0].mxu0
        %v2360 = vadd.f32 0.0, %v2359
        %v2361 = vpop.f32.mrb[0].mxu0
        %v2362 = vpop.f32.mrb[0].mxu0
        %v2363 = vadd.f32 0.0, %v2362
        %v2364 = vpop.f32.mrb[0].mxu0
        %2365 = vmatprep.mubr.bf16.mxu0 0
        %2366 = vmatmul.mubr.bf16.gmra.mrb[0].mxu0 %v2192
        %v2367 = vpop.f32.mrb[0].mxu0
        %v2368 = vadd.f32 0.0, %v2367
        %v2369 = vpop.f32.mrb[0].mxu0
        %v2370 = vpop.f32.mrb[0].mxu0
        %v2371 = vadd.f32 0.0, %v2370
        %v2372 = vpop.f32.mrb[0].mxu0
        %2373 = vdwg.mxu0
        %v2374 = vadd.f32 %v2046, %v2232
        %v2375 = vadd.f32 %v2047, %v2235
        %v2376 = vadd.f32 %v2048, %v2240
        %v2377 = vadd.f32 %v2049, %v2243
        %v2378 = vadd.f32 %v2050, %v2248
        %v2379 = vadd.f32 %v2051, %v2251
        %v2380 = vadd.f32 %v2052, %v2256
        %v2381 = vadd.f32 %v2053, %v2259
        %v2382 = vadd.f32 %v2054, %v2264
        %v2383 = vadd.f32 %v2055, %v2267
        %v2384 = vadd.f32 %v2056, %v2272
        %v2385 = vadd.f32 %v2057, %v2275
        %v2386 = vadd.f32 %v2058, %v2280
        %v2387 = vadd.f32 %v2059, %v2283
        %v2388 = vadd.f32 %v2060, %v2288
        %v2389 = vadd.f32 %v2061, %v2291
        %v2390 = vadd.f32 %v2062, %v2296
        %v2391 = vadd.f32 %v2063, %v2299
        %v2392 = vadd.f32 %v2064, %v2304
        %v2393 = vadd.f32 %v2065, %v2307
        %v2394 = vadd.f32 %v2066, %v2312
        %v2395 = vadd.f32 %v2067, %v2315
        %v2396 = vadd.f32 %v2068, %v2320
        %v2397 = vadd.f32 %v2069, %v2323
        %v2398 = vadd.f32 %v2070, %v2328
        %v2399 = vadd.f32 %v2071, %v2331
        %v2400 = vadd.f32 %v2072, %v2336
        %v2401 = vadd.f32 %v2073, %v2339
        %v2402 = vadd.f32 %v2074, %v2344
        %v2403 = vadd.f32 %v2075, %v2347
        %v2404 = vadd.f32 %v2076, %v2352
        %v2405 = vadd.f32 %v2077, %v2355
        %v2406 = vadd.f32 %v2078, %v2360
        %v2407 = vadd.f32 %v2079, %v2363
        %v2408 = vadd.f32 %v2080, %v2368
        %v2409 = vadd.f32 %v2081, %v2371
        %s2410 = sadd.s32 %s185, 37
        %s2411 = scalar_lea.vmem %s182, %s2410
        %v2412 = vld [vmem:[%s2411] sm:$0xff]
        %v2413 = vld [vmem:[%s2411 + $0x8] sm:$0xff]
        %v2414 = vld [vmem:[%s2411 + $0x10] sm:$0xff]
        %v2415 = vld [vmem:[%s2411 + $0x18] sm:$0xff]
        %v2416 = vld [vmem:[%s2411 + $0x20] sm:$0xff]
        %v2417 = vld [vmem:[%s2411 + $0x28] sm:$0xff]
        %v2418 = vld [vmem:[%s2411 + $0x30] sm:$0xff]
        %v2419 = vld [vmem:[%s2411 + $0x38] sm:$0xff]
        %v2420 = vld [vmem:[%s2411 + $0x40] sm:$0xff]
        %v2421 = vld [vmem:[%s2411 + $0x48] sm:$0xff]
        %v2422 = vld [vmem:[%s2411 + $0x50] sm:$0xff]
        %v2423 = vld [vmem:[%s2411 + $0x58] sm:$0xff]
        %v2424 = vld [vmem:[%s2411 + $0x60] sm:$0xff]
        %v2425 = vld [vmem:[%s2411 + $0x68] sm:$0xff]
        %v2426 = vld [vmem:[%s2411 + $0x70] sm:$0xff]
        %v2427 = vld [vmem:[%s2411 + $0x78] sm:$0xff]
        %v2428 = vld [vmem:[%s2411 + $0x80] sm:$0xff]
        %v2429 = vld [vmem:[%s2411 + $0x88] sm:$0xff]
        %v2430 = vld [vmem:[%s2411 + $0x90] sm:$0xff]
        %v2431 = vld [vmem:[%s2411 + $0x98] sm:$0xff]
        %v2432 = vld [vmem:[%s2411 + $0xa0] sm:$0xff]
        %v2433 = vld [vmem:[%s2411 + $0xa8] sm:$0xff]
        %v2434 = vld [vmem:[%s2411 + $0xb0] sm:$0xff]
        %v2435 = vld [vmem:[%s2411 + $0xb8] sm:$0xff]
        %v2436 = vld [vmem:[%s2411 + $0xc0] sm:$0xff]
        %v2437 = vld [vmem:[%s2411 + $0xc8] sm:$0xff]
        %v2438 = vld [vmem:[%s2411 + $0xd0] sm:$0xff]
        %v2439 = vld [vmem:[%s2411 + $0xd8] sm:$0xff]
        %v2440 = vld [vmem:[%s2411 + $0xe0] sm:$0xff]
        %v2441 = vld [vmem:[%s2411 + $0xe8] sm:$0xff]
        %v2442 = vld [vmem:[%s2411 + $0xf0] sm:$0xff]
        %v2443 = vld [vmem:[%s2411 + $0xf8] sm:$0xff]
        %v2444 = vld [vmem:[%s2411 + $0x100] sm:$0xff]
        %v2445 = vld [vmem:[%s2411 + $0x108] sm:$0xff]
        %v2446 = vld [vmem:[%s2411 + $0x110] sm:$0xff]
        %v2447 = vld [vmem:[%s2411 + $0x118] sm:$0xff]
        %v2448 = vpack.c.bf16 %v2413, %v2412
        %v2449 = vpack.c.bf16 %v2415, %v2414
        %v2450 = vpack.c.bf16 %v2417, %v2416
        %v2451 = vpack.c.bf16 %v2419, %v2418
        %v2452 = vpack.c.bf16 %v2421, %v2420
        %v2453 = vpack.c.bf16 %v2423, %v2422
        %v2454 = vpack.c.bf16 %v2425, %v2424
        %v2455 = vpack.c.bf16 %v2427, %v2426
        %v2456 = vpack.c.bf16 %v2429, %v2428
        %v2457 = vpack.c.bf16 %v2431, %v2430
        %v2458 = vpack.c.bf16 %v2433, %v2432
        %v2459 = vpack.c.bf16 %v2435, %v2434
        %v2460 = vpack.c.bf16 %v2437, %v2436
        %v2461 = vpack.c.bf16 %v2439, %v2438
        %v2462 = vpack.c.bf16 %v2441, %v2440
        %v2463 = vpack.c.bf16 %v2443, %v2442
        %v2464 = vpack.c.bf16 %v2445, %v2444
        %v2465 = vpack.c.bf16 %v2447, %v2446
        %s2466 = scalar_lea.vmem %s1, 14
        %v2467 = vld [vmem:[%s2466] sm:$0x3]
        %v2469 = vsel %vm300, %v2448, 0
        %v2472 = vsel %vm300, %v2449, 0
        %v2475 = vsel %vm300, %v2450, 0
        %v2478 = vsel %vm300, %v2451, 0
        %v2481 = vsel %vm300, %v2452, 0
        %v2484 = vsel %vm300, %v2453, 0
        %v2487 = vsel %vm300, %v2454, 0
        %v2490 = vsel %vm300, %v2455, 0
        %v2493 = vsel %vm300, %v2456, 0
        %v2496 = vsel %vm300, %v2457, 0
        %v2499 = vsel %vm300, %v2458, 0
        %v2502 = vsel %vm300, %v2459, 0
        %v2505 = vsel %vm300, %v2460, 0
        %v2508 = vsel %vm300, %v2461, 0
        %v2511 = vsel %vm300, %v2462, 0
        %v2514 = vsel %vm300, %v2463, 0
        %v2517 = vsel %vm300, %v2464, 0
        %v2520 = vsel %vm300, %v2465, 0
        %v2523 = vsel %vm355, %v2467, 0
        %2525 = vmatprep.subr.bf16.mxu0 0
        %2526 = vmatpush1.bf16.msra.mxu0 %v2523
        %2527 = vmatprep.subr.bf16.mxu0 0
        %2528 = vmatpush1.bf16.msra.mxu0 0
        %2529 = vmatprep.subr.bf16.mxu0 0
        %2530 = vmatpush1.bf16.msra.mxu0 0
        %2531 = vmatprep.subr.bf16.mxu0 0
        %2532 = vmatpush1.bf16.msra.mxu0 0
        %2533 = vmatprep.subr.bf16.mxu0 0
        %2534 = vmatpush1.bf16.msra.mxu0 0
        %2535 = vmatprep.subr.bf16.mxu0 0
        %2536 = vmatpush1.bf16.msra.mxu0 0
        %2537 = vmatprep.subr.bf16.mxu0 0
        %2538 = vmatpush1.bf16.msra.mxu0 0
        %2539 = vmatprep.subr.bf16.mxu0 0
        %2540 = vmatpush1.bf16.msra.mxu0 0
        %2541 = vmatprep.subr.bf16.mxu0 0
        %2542 = vmatpush1.bf16.msra.mxu0 0
        %2543 = vmatprep.subr.bf16.mxu0 0
        %2544 = vmatpush1.bf16.msra.mxu0 0
        %2545 = vmatprep.subr.bf16.mxu0 0
        %2546 = vmatpush1.bf16.msra.mxu0 0
        %2547 = vmatprep.subr.bf16.mxu0 0
        %2548 = vmatpush1.bf16.msra.mxu0 0
        %2549 = vmatprep.subr.bf16.mxu0 0
        %2550 = vmatpush1.bf16.msra.mxu0 0
        %2551 = vmatprep.subr.bf16.mxu0 0
        %2552 = vmatpush1.bf16.msra.mxu0 0
        %2553 = vmatprep.subr.bf16.mxu0 0
        %2554 = vmatpush1.bf16.msra.mxu0 0
        %2555 = vmatprep.subr.bf16.mxu0 0
        %2556 = vmatpush1.bf16.msra.mxu0 0
        %2557 = vmatprep.mubr.bf16.mxu0 0
        %2558 = vmatmul.mubr.bf16.gmra.mrb[0].mxu0 %v2469
        %v2559 = vpop.f32.mrb[0].mxu0
        %v2560 = vadd.f32 0.0, %v2559
        %v2561 = vpop.f32.mrb[0].mxu0
        %v2562 = vpop.f32.mrb[0].mxu0
        %v2563 = vadd.f32 0.0, %v2562
        %v2564 = vpop.f32.mrb[0].mxu0
        %2565 = vmatprep.mubr.bf16.mxu0 0
        %2566 = vmatmul.mubr.bf16.gmra.mrb[0].mxu0 %v2472
        %v2567 = vpop.f32.mrb[0].mxu0
        %v2568 = vadd.f32 0.0, %v2567
        %v2569 = vpop.f32.mrb[0].mxu0
        %v2570 = vpop.f32.mrb[0].mxu0
        %v2571 = vadd.f32 0.0, %v2570
        %v2572 = vpop.f32.mrb[0].mxu0
        %2573 = vmatprep.mubr.bf16.mxu0 0
        %2574 = vmatmul.mubr.bf16.gmra.mrb[0].mxu0 %v2475
        %v2575 = vpop.f32.mrb[0].mxu0
        %v2576 = vadd.f32 0.0, %v2575
        %v2577 = vpop.f32.mrb[0].mxu0
        %v2578 = vpop.f32.mrb[0].mxu0
        %v2579 = vadd.f32 0.0, %v2578
        %v2580 = vpop.f32.mrb[0].mxu0
        %2581 = vmatprep.mubr.bf16.mxu0 0
        %2582 = vmatmul.mubr.bf16.gmra.mrb[0].mxu0 %v2478
        %v2583 = vpop.f32.mrb[0].mxu0
        %v2584 = vadd.f32 0.0, %v2583
        %v2585 = vpop.f32.mrb[0].mxu0
        %v2586 = vpop.f32.mrb[0].mxu0
        %v2587 = vadd.f32 0.0, %v2586
        %v2588 = vpop.f32.mrb[0].mxu0
        %2589 = vmatprep.mubr.bf16.mxu0 0
        %2590 = vmatmul.mubr.bf16.gmra.mrb[0].mxu0 %v2481
        %v2591 = vpop.f32.mrb[0].mxu0
        %v2592 = vadd.f32 0.0, %v2591
        %v2593 = vpop.f32.mrb[0].mxu0
        %v2594 = vpop.f32.mrb[0].mxu0
        %v2595 = vadd.f32 0.0, %v2594
        %v2596 = vpop.f32.mrb[0].mxu0
        %2597 = vmatprep.mubr.bf16.mxu0 0
        %2598 = vmatmul.mubr.bf16.gmra.mrb[0].mxu0 %v2484
        %v2599 = vpop.f32.mrb[0].mxu0
        %v2600 = vadd.f32 0.0, %v2599
        %v2601 = vpop.f32.mrb[0].mxu0
        %v2602 = vpop.f32.mrb[0].mxu0
        %v2603 = vadd.f32 0.0, %v2602
        %v2604 = vpop.f32.mrb[0].mxu0
        %2605 = vmatprep.mubr.bf16.mxu0 0
        %2606 = vmatmul.mubr.bf16.gmra.mrb[0].mxu0 %v2487
        %v2607 = vpop.f32.mrb[0].mxu0
        %v2608 = vadd.f32 0.0, %v2607
        %v2609 = vpop.f32.mrb[0].mxu0
        %v2610 = vpop.f32.mrb[0].mxu0
        %v2611 = vadd.f32 0.0, %v2610
        %v2612 = vpop.f32.mrb[0].mxu0
        %2613 = vmatprep.mubr.bf16.mxu0 0
        %2614 = vmatmul.mubr.bf16.gmra.mrb[0].mxu0 %v2490
        %v2615 = vpop.f32.mrb[0].mxu0
        %v2616 = vadd.f32 0.0, %v2615
        %v2617 = vpop.f32.mrb[0].mxu0
        %v2618 = vpop.f32.mrb[0].mxu0
        %v2619 = vadd.f32 0.0, %v2618
        %v2620 = vpop.f32.mrb[0].mxu0
        %2621 = vmatprep.mubr.bf16.mxu0 0
        %2622 = vmatmul.mubr.bf16.gmra.mrb[0].mxu0 %v2493
        %v2623 = vpop.f32.mrb[0].mxu0
        %v2624 = vadd.f32 0.0, %v2623
        %v2625 = vpop.f32.mrb[0].mxu0
        %v2626 = vpop.f32.mrb[0].mxu0
        %v2627 = vadd.f32 0.0, %v2626
        %v2628 = vpop.f32.mrb[0].mxu0
        %2629 = vmatprep.mubr.bf16.mxu0 0
        %2630 = vmatmul.mubr.bf16.gmra.mrb[0].mxu0 %v2496
        %v2631 = vpop.f32.mrb[0].mxu0
        %v2632 = vadd.f32 0.0, %v2631
        %v2633 = vpop.f32.mrb[0].mxu0
        %v2634 = vpop.f32.mrb[0].mxu0
        %v2635 = vadd.f32 0.0, %v2634
        %v2636 = vpop.f32.mrb[0].mxu0
        %2637 = vmatprep.mubr.bf16.mxu0 0
        %2638 = vmatmul.mubr.bf16.gmra.mrb[0].mxu0 %v2499
        %v2639 = vpop.f32.mrb[0].mxu0
        %v2640 = vadd.f32 0.0, %v2639
        %v2641 = vpop.f32.mrb[0].mxu0
        %v2642 = vpop.f32.mrb[0].mxu0
        %v2643 = vadd.f32 0.0, %v2642
        %v2644 = vpop.f32.mrb[0].mxu0
        %2645 = vmatprep.mubr.bf16.mxu0 0
        %2646 = vmatmul.mubr.bf16.gmra.mrb[0].mxu0 %v2502
        %v2647 = vpop.f32.mrb[0].mxu0
        %v2648 = vadd.f32 0.0, %v2647
        %v2649 = vpop.f32.mrb[0].mxu0
        %v2650 = vpop.f32.mrb[0].mxu0
        %v2651 = vadd.f32 0.0, %v2650
        %v2652 = vpop.f32.mrb[0].mxu0
        %2653 = vmatprep.mubr.bf16.mxu0 0
        %2654 = vmatmul.mubr.bf16.gmra.mrb[0].mxu0 %v2505
        %v2655 = vpop.f32.mrb[0].mxu0
        %v2656 = vadd.f32 0.0, %v2655
        %v2657 = vpop.f32.mrb[0].mxu0
        %v2658 = vpop.f32.mrb[0].mxu0
        %v2659 = vadd.f32 0.0, %v2658
        %v2660 = vpop.f32.mrb[0].mxu0
        %2661 = vmatprep.mubr.bf16.mxu0 0
        %2662 = vmatmul.mubr.bf16.gmra.mrb[0].mxu0 %v2508
        %v2663 = vpop.f32.mrb[0].mxu0
        %v2664 = vadd.f32 0.0, %v2663
        %v2665 = vpop.f32.mrb[0].mxu0
        %v2666 = vpop.f32.mrb[0].mxu0
        %v2667 = vadd.f32 0.0, %v2666
        %v2668 = vpop.f32.mrb[0].mxu0
        %2669 = vmatprep.mubr.bf16.mxu0 0
        %2670 = vmatmul.mubr.bf16.gmra.mrb[0].mxu0 %v2511
        %v2671 = vpop.f32.mrb[0].mxu0
        %v2672 = vadd.f32 0.0, %v2671
        %v2673 = vpop.f32.mrb[0].mxu0
        %v2674 = vpop.f32.mrb[0].mxu0
        %v2675 = vadd.f32 0.0, %v2674
        %v2676 = vpop.f32.mrb[0].mxu0
        %2677 = vmatprep.mubr.bf16.mxu0 0
        %2678 = vmatmul.mubr.bf16.gmra.mrb[0].mxu0 %v2514
        %v2679 = vpop.f32.mrb[0].mxu0
        %v2680 = vadd.f32 0.0, %v2679
        %v2681 = vpop.f32.mrb[0].mxu0
        %v2682 = vpop.f32.mrb[0].mxu0
        %v2683 = vadd.f32 0.0, %v2682
        %v2684 = vpop.f32.mrb[0].mxu0
        %2685 = vmatprep.mubr.bf16.mxu0 0
        %2686 = vmatmul.mubr.bf16.gmra.mrb[0].mxu0 %v2517
        %v2687 = vpop.f32.mrb[0].mxu0
        %v2688 = vadd.f32 0.0, %v2687
        %v2689 = vpop.f32.mrb[0].mxu0
        %v2690 = vpop.f32.mrb[0].mxu0
        %v2691 = vadd.f32 0.0, %v2690
        %v2692 = vpop.f32.mrb[0].mxu0
        %2693 = vmatprep.mubr.bf16.mxu0 0
        %2694 = vmatmul.mubr.bf16.gmra.mrb[0].mxu0 %v2520
        %v2695 = vpop.f32.mrb[0].mxu0
        %v2696 = vadd.f32 0.0, %v2695
        %v2697 = vpop.f32.mrb[0].mxu0
        %v2698 = vpop.f32.mrb[0].mxu0
        %v2699 = vadd.f32 0.0, %v2698
        %v2700 = vpop.f32.mrb[0].mxu0
        %2701 = vdwg.mxu0
        %v2702 = vadd.f32 %v2374, %v2560
        %v2703 = vadd.f32 %v2375, %v2563
        %v2704 = vadd.f32 %v2376, %v2568
        %v2705 = vadd.f32 %v2377, %v2571
        %v2706 = vadd.f32 %v2378, %v2576
        %v2707 = vadd.f32 %v2379, %v2579
        %v2708 = vadd.f32 %v2380, %v2584
        %v2709 = vadd.f32 %v2381, %v2587
        %v2710 = vadd.f32 %v2382, %v2592
        %v2711 = vadd.f32 %v2383, %v2595
        %v2712 = vadd.f32 %v2384, %v2600
        %v2713 = vadd.f32 %v2385, %v2603
        %v2714 = vadd.f32 %v2386, %v2608
        %v2715 = vadd.f32 %v2387, %v2611
        %v2716 = vadd.f32 %v2388, %v2616
        %v2717 = vadd.f32 %v2389, %v2619
        %v2718 = vadd.f32 %v2390, %v2624
        %v2719 = vadd.f32 %v2391, %v2627
        %v2720 = vadd.f32 %v2392, %v2632
        %v2721 = vadd.f32 %v2393, %v2635
        %v2722 = vadd.f32 %v2394, %v2640
        %v2723 = vadd.f32 %v2395, %v2643
        %v2724 = vadd.f32 %v2396, %v2648
        %v2725 = vadd.f32 %v2397, %v2651
        %v2726 = vadd.f32 %v2398, %v2656
        %v2727 = vadd.f32 %v2399, %v2659
        %v2728 = vadd.f32 %v2400, %v2664
        %v2729 = vadd.f32 %v2401, %v2667
        %v2730 = vadd.f32 %v2402, %v2672
        %v2731 = vadd.f32 %v2403, %v2675
        %v2732 = vadd.f32 %v2404, %v2680
        %v2733 = vadd.f32 %v2405, %v2683
        %v2734 = vadd.f32 %v2406, %v2688
        %v2735 = vadd.f32 %v2407, %v2691
        %v2736 = vadd.f32 %v2408, %v2696
        %v2737 = vadd.f32 %v2409, %v2699
        %s2738 = sadd.s32 %s185, 38
        %s2739 = scalar_lea.vmem %s182, %s2738
        %v2740 = vld [vmem:[%s2739] sm:$0xff]
        %v2741 = vld [vmem:[%s2739 + $0x8] sm:$0xff]
        %v2742 = vld [vmem:[%s2739 + $0x10] sm:$0xff]
        %v2743 = vld [vmem:[%s2739 + $0x18] sm:$0xff]
        %v2744 = vld [vmem:[%s2739 + $0x20] sm:$0xff]
        %v2745 = vld [vmem:[%s2739 + $0x28] sm:$0xff]
        %v2746 = vld [vmem:[%s2739 + $0x30] sm:$0xff]
        %v2747 = vld [vmem:[%s2739 + $0x38] sm:$0xff]
        %v2748 = vld [vmem:[%s2739 + $0x40] sm:$0xff]
        %v2749 = vld [vmem:[%s2739 + $0x48] sm:$0xff]
        %v2750 = vld [vmem:[%s2739 + $0x50] sm:$0xff]
        %v2751 = vld [vmem:[%s2739 + $0x58] sm:$0xff]
        %v2752 = vld [vmem:[%s2739 + $0x60] sm:$0xff]
        %v2753 = vld [vmem:[%s2739 + $0x68] sm:$0xff]
        %v2754 = vld [vmem:[%s2739 + $0x70] sm:$0xff]
        %v2755 = vld [vmem:[%s2739 + $0x78] sm:$0xff]
        %v2756 = vld [vmem:[%s2739 + $0x80] sm:$0xff]
        %v2757 = vld [vmem:[%s2739 + $0x88] sm:$0xff]
        %v2758 = vld [vmem:[%s2739 + $0x90] sm:$0xff]
        %v2759 = vld [vmem:[%s2739 + $0x98] sm:$0xff]
        %v2760 = vld [vmem:[%s2739 + $0xa0] sm:$0xff]
        %v2761 = vld [vmem:[%s2739 + $0xa8] sm:$0xff]
        %v2762 = vld [vmem:[%s2739 + $0xb0] sm:$0xff]
        %v2763 = vld [vmem:[%s2739 + $0xb8] sm:$0xff]
        %v2764 = vld [vmem:[%s2739 + $0xc0] sm:$0xff]
        %v2765 = vld [vmem:[%s2739 + $0xc8] sm:$0xff]
        %v2766 = vld [vmem:[%s2739 + $0xd0] sm:$0xff]
        %v2767 = vld [vmem:[%s2739 + $0xd8] sm:$0xff]
        %v2768 = vld [vmem:[%s2739 + $0xe0] sm:$0xff]
        %v2769 = vld [vmem:[%s2739 + $0xe8] sm:$0xff]
        %v2770 = vld [vmem:[%s2739 + $0xf0] sm:$0xff]
        %v2771 = vld [vmem:[%s2739 + $0xf8] sm:$0xff]
        %v2772 = vld [vmem:[%s2739 + $0x100] sm:$0xff]
        %v2773 = vld [vmem:[%s2739 + $0x108] sm:$0xff]
        %v2774 = vld [vmem:[%s2739 + $0x110] sm:$0xff]
        %v2775 = vld [vmem:[%s2739 + $0x118] sm:$0xff]
        %v2776 = vpack.c.bf16 %v2741, %v2740
        %v2777 = vpack.c.bf16 %v2743, %v2742
        %v2778 = vpack.c.bf16 %v2745, %v2744
        %v2779 = vpack.c.bf16 %v2747, %v2746
        %v2780 = vpack.c.bf16 %v2749, %v2748
        %v2781 = vpack.c.bf16 %v2751, %v2750
        %v2782 = vpack.c.bf16 %v2753, %v2752
        %v2783 = vpack.c.bf16 %v2755, %v2754
        %v2784 = vpack.c.bf16 %v2757, %v2756
        %v2785 = vpack.c.bf16 %v2759, %v2758
        %v2786 = vpack.c.bf16 %v2761, %v2760
        %v2787 = vpack.c.bf16 %v2763, %v2762
        %v2788 = vpack.c.bf16 %v2765, %v2764
        %v2789 = vpack.c.bf16 %v2767, %v2766
        %v2790 = vpack.c.bf16 %v2769, %v2768
        %v2791 = vpack.c.bf16 %v2771, %v2770
        %v2792 = vpack.c.bf16 %v2773, %v2772
        %v2793 = vpack.c.bf16 %v2775, %v2774
        %s2794 = scalar_lea.vmem %s1, 16
        %v2795 = vld [vmem:[%s2794] sm:$0x3]
        %v2797 = vsel %vm300, %v2776, 0
        %v2800 = vsel %vm300, %v2777, 0
        %v2803 = vsel %vm300, %v2778, 0
        %v2806 = vsel %vm300, %v2779, 0
        %v2809 = vsel %vm300, %v2780, 0
        %v2812 = vsel %vm300, %v2781, 0
        %v2815 = vsel %vm300, %v2782, 0
        %v2818 = vsel %vm300, %v2783, 0
        %v2821 = vsel %vm300, %v2784, 0
        %v2824 = vsel %vm300, %v2785, 0
        %v2827 = vsel %vm300, %v2786, 0
        %v2830 = vsel %vm300, %v2787, 0
        %v2833 = vsel %vm300, %v2788, 0
        %v2836 = vsel %vm300, %v2789, 0
        %v2839 = vsel %vm300, %v2790, 0
        %v2842 = vsel %vm300, %v2791, 0
        %v2845 = vsel %vm300, %v2792, 0
        %v2848 = vsel %vm300, %v2793, 0
        %v2851 = vsel %vm355, %v2795, 0
        %2853 = vmatprep.subr.bf16.mxu0 0
        %2854 = vmatpush1.bf16.msra.mxu0 %v2851
        %2855 = vmatprep.subr.bf16.mxu0 0
        %2856 = vmatpush1.bf16.msra.mxu0 0
        %2857 = vmatprep.subr.bf16.mxu0 0
        %2858 = vmatpush1.bf16.msra.mxu0 0
        %2859 = vmatprep.subr.bf16.mxu0 0
        %2860 = vmatpush1.bf16.msra.mxu0 0
        %2861 = vmatprep.subr.bf16.mxu0 0
        %2862 = vmatpush1.bf16.msra.mxu0 0
        %2863 = vmatprep.subr.bf16.mxu0 0
        %2864 = vmatpush1.bf16.msra.mxu0 0
        %2865 = vmatprep.subr.bf16.mxu0 0
        %2866 = vmatpush1.bf16.msra.mxu0 0
        %2867 = vmatprep.subr.bf16.mxu0 0
        %2868 = vmatpush1.bf16.msra.mxu0 0
        %2869 = vmatprep.subr.bf16.mxu0 0
        %2870 = vmatpush1.bf16.msra.mxu0 0
        %2871 = vmatprep.subr.bf16.mxu0 0
        %2872 = vmatpush1.bf16.msra.mxu0 0
        %2873 = vmatprep.subr.bf16.mxu0 0
        %2874 = vmatpush1.bf16.msra.mxu0 0
        %2875 = vmatprep.subr.bf16.mxu0 0
        %2876 = vmatpush1.bf16.msra.mxu0 0
        %2877 = vmatprep.subr.bf16.mxu0 0
        %2878 = vmatpush1.bf16.msra.mxu0 0
        %2879 = vmatprep.subr.bf16.mxu0 0
        %2880 = vmatpush1.bf16.msra.mxu0 0
        %2881 = vmatprep.subr.bf16.mxu0 0
        %2882 = vmatpush1.bf16.msra.mxu0 0
        %2883 = vmatprep.subr.bf16.mxu0 0
        %2884 = vmatpush1.bf16.msra.mxu0 0
        %2885 = vmatprep.mubr.bf16.mxu0 0
        %2886 = vmatmul.mubr.bf16.gmra.mrb[0].mxu0 %v2797
        %v2887 = vpop.f32.mrb[0].mxu0
        %v2888 = vadd.f32 0.0, %v2887
        %v2889 = vpop.f32.mrb[0].mxu0
        %v2890 = vpop.f32.mrb[0].mxu0
        %v2891 = vadd.f32 0.0, %v2890
        %v2892 = vpop.f32.mrb[0].mxu0
        %2893 = vmatprep.mubr.bf16.mxu0 0
        %2894 = vmatmul.mubr.bf16.gmra.mrb[0].mxu0 %v2800
        %v2895 = vpop.f32.mrb[0].mxu0
        %v2896 = vadd.f32 0.0, %v2895
        %v2897 = vpop.f32.mrb[0].mxu0
        %v2898 = vpop.f32.mrb[0].mxu0
        %v2899 = vadd.f32 0.0, %v2898
        %v2900 = vpop.f32.mrb[0].mxu0
        %2901 = vmatprep.mubr.bf16.mxu0 0
        %2902 = vmatmul.mubr.bf16.gmra.mrb[0].mxu0 %v2803
        %v2903 = vpop.f32.mrb[0].mxu0
        %v2904 = vadd.f32 0.0, %v2903
        %v2905 = vpop.f32.mrb[0].mxu0
        %v2906 = vpop.f32.mrb[0].mxu0
        %v2907 = vadd.f32 0.0, %v2906
        %v2908 = vpop.f32.mrb[0].mxu0
        %2909 = vmatprep.mubr.bf16.mxu0 0
        %2910 = vmatmul.mubr.bf16.gmra.mrb[0].mxu0 %v2806
        %v2911 = vpop.f32.mrb[0].mxu0
        %v2912 = vadd.f32 0.0, %v2911
        %v2913 = vpop.f32.mrb[0].mxu0
        %v2914 = vpop.f32.mrb[0].mxu0
        %v2915 = vadd.f32 0.0, %v2914
        %v2916 = vpop.f32.mrb[0].mxu0
        %2917 = vmatprep.mubr.bf16.mxu0 0
        %2918 = vmatmul.mubr.bf16.gmra.mrb[0].mxu0 %v2809
        %v2919 = vpop.f32.mrb[0].mxu0
        %v2920 = vadd.f32 0.0, %v2919
        %v2921 = vpop.f32.mrb[0].mxu0
        %v2922 = vpop.f32.mrb[0].mxu0
        %v2923 = vadd.f32 0.0, %v2922
        %v2924 = vpop.f32.mrb[0].mxu0
        %2925 = vmatprep.mubr.bf16.mxu0 0
        %2926 = vmatmul.mubr.bf16.gmra.mrb[0].mxu0 %v2812
        %v2927 = vpop.f32.mrb[0].mxu0
        %v2928 = vadd.f32 0.0, %v2927
        %v2929 = vpop.f32.mrb[0].mxu0
        %v2930 = vpop.f32.mrb[0].mxu0
        %v2931 = vadd.f32 0.0, %v2930
        %v2932 = vpop.f32.mrb[0].mxu0
        %2933 = vmatprep.mubr.bf16.mxu0 0
        %2934 = vmatmul.mubr.bf16.gmra.mrb[0].mxu0 %v2815
        %v2935 = vpop.f32.mrb[0].mxu0
        %v2936 = vadd.f32 0.0, %v2935
        %v2937 = vpop.f32.mrb[0].mxu0
        %v2938 = vpop.f32.mrb[0].mxu0
        %v2939 = vadd.f32 0.0, %v2938
        %v2940 = vpop.f32.mrb[0].mxu0
        %2941 = vmatprep.mubr.bf16.mxu0 0
        %2942 = vmatmul.mubr.bf16.gmra.mrb[0].mxu0 %v2818
        %v2943 = vpop.f32.mrb[0].mxu0
        %v2944 = vadd.f32 0.0, %v2943
        %v2945 = vpop.f32.mrb[0].mxu0
        %v2946 = vpop.f32.mrb[0].mxu0
        %v2947 = vadd.f32 0.0, %v2946
        %v2948 = vpop.f32.mrb[0].mxu0
        %2949 = vmatprep.mubr.bf16.mxu0 0
        %2950 = vmatmul.mubr.bf16.gmra.mrb[0].mxu0 %v2821
        %v2951 = vpop.f32.mrb[0].mxu0
        %v2952 = vadd.f32 0.0, %v2951
        %v2953 = vpop.f32.mrb[0].mxu0
        %v2954 = vpop.f32.mrb[0].mxu0
        %v2955 = vadd.f32 0.0, %v2954
        %v2956 = vpop.f32.mrb[0].mxu0
        %2957 = vmatprep.mubr.bf16.mxu0 0
        %2958 = vmatmul.mubr.bf16.gmra.mrb[0].mxu0 %v2824
        %v2959 = vpop.f32.mrb[0].mxu0
        %v2960 = vadd.f32 0.0, %v2959
        %v2961 = vpop.f32.mrb[0].mxu0
        %v2962 = vpop.f32.mrb[0].mxu0
        %v2963 = vadd.f32 0.0, %v2962
        %v2964 = vpop.f32.mrb[0].mxu0
        %2965 = vmatprep.mubr.bf16.mxu0 0
        %2966 = vmatmul.mubr.bf16.gmra.mrb[0].mxu0 %v2827
        %v2967 = vpop.f32.mrb[0].mxu0
        %v2968 = vadd.f32 0.0, %v2967
        %v2969 = vpop.f32.mrb[0].mxu0
        %v2970 = vpop.f32.mrb[0].mxu0
        %v2971 = vadd.f32 0.0, %v2970
        %v2972 = vpop.f32.mrb[0].mxu0
        %2973 = vmatprep.mubr.bf16.mxu0 0
        %2974 = vmatmul.mubr.bf16.gmra.mrb[0].mxu0 %v2830
        %v2975 = vpop.f32.mrb[0].mxu0
        %v2976 = vadd.f32 0.0, %v2975
        %v2977 = vpop.f32.mrb[0].mxu0
        %v2978 = vpop.f32.mrb[0].mxu0
        %v2979 = vadd.f32 0.0, %v2978
        %v2980 = vpop.f32.mrb[0].mxu0
        %2981 = vmatprep.mubr.bf16.mxu0 0
        %2982 = vmatmul.mubr.bf16.gmra.mrb[0].mxu0 %v2833
        %v2983 = vpop.f32.mrb[0].mxu0
        %v2984 = vadd.f32 0.0, %v2983
        %v2985 = vpop.f32.mrb[0].mxu0
        %v2986 = vpop.f32.mrb[0].mxu0
        %v2987 = vadd.f32 0.0, %v2986
        %v2988 = vpop.f32.mrb[0].mxu0
        %2989 = vmatprep.mubr.bf16.mxu0 0
        %2990 = vmatmul.mubr.bf16.gmra.mrb[0].mxu0 %v2836
        %v2991 = vpop.f32.mrb[0].mxu0
        %v2992 = vadd.f32 0.0, %v2991
        %v2993 = vpop.f32.mrb[0].mxu0
        %v2994 = vpop.f32.mrb[0].mxu0
        %v2995 = vadd.f32 0.0, %v2994
        %v2996 = vpop.f32.mrb[0].mxu0
        %2997 = vmatprep.mubr.bf16.mxu0 0
        %2998 = vmatmul.mubr.bf16.gmra.mrb[0].mxu0 %v2839
        %v2999 = vpop.f32.mrb[0].mxu0
        %v3000 = vadd.f32 0.0, %v2999
        %v3001 = vpop.f32.mrb[0].mxu0
        %v3002 = vpop.f32.mrb[0].mxu0
        %v3003 = vadd.f32 0.0, %v3002
        %v3004 = vpop.f32.mrb[0].mxu0
        %3005 = vmatprep.mubr.bf16.mxu0 0
        %3006 = vmatmul.mubr.bf16.gmra.mrb[0].mxu0 %v2842
        %v3007 = vpop.f32.mrb[0].mxu0
        %v3008 = vadd.f32 0.0, %v3007
        %v3009 = vpop.f32.mrb[0].mxu0
        %v3010 = vpop.f32.mrb[0].mxu0
        %v3011 = vadd.f32 0.0, %v3010
        %v3012 = vpop.f32.mrb[0].mxu0
        %3013 = vmatprep.mubr.bf16.mxu0 0
        %3014 = vmatmul.mubr.bf16.gmra.mrb[0].mxu0 %v2845
        %v3015 = vpop.f32.mrb[0].mxu0
        %v3016 = vadd.f32 0.0, %v3015
        %v3017 = vpop.f32.mrb[0].mxu0
        %v3018 = vpop.f32.mrb[0].mxu0
        %v3019 = vadd.f32 0.0, %v3018
        %v3020 = vpop.f32.mrb[0].mxu0
        %3021 = vmatprep.mubr.bf16.mxu0 0
        %3022 = vmatmul.mubr.bf16.gmra.mrb[0].mxu0 %v2848
        %v3023 = vpop.f32.mrb[0].mxu0
        %v3024 = vadd.f32 0.0, %v3023
        %v3025 = vpop.f32.mrb[0].mxu0
        %v3026 = vpop.f32.mrb[0].mxu0
        %v3027 = vadd.f32 0.0, %v3026
        %v3028 = vpop.f32.mrb[0].mxu0
        %3029 = vdwg.mxu0
        %v3030 = vadd.f32 %v2702, %v2888
        %v3031 = vadd.f32 %v2703, %v2891
        %v3032 = vadd.f32 %v2704, %v2896
        %v3033 = vadd.f32 %v2705, %v2899
        %v3034 = vadd.f32 %v2706, %v2904
        %v3035 = vadd.f32 %v2707, %v2907
        %v3036 = vadd.f32 %v2708, %v2912
        %v3037 = vadd.f32 %v2709, %v2915
        %v3038 = vadd.f32 %v2710, %v2920
        %v3039 = vadd.f32 %v2711, %v2923
        %v3040 = vadd.f32 %v2712, %v2928
        %v3041 = vadd.f32 %v2713, %v2931
        %v3042 = vadd.f32 %v2714, %v2936
        %v3043 = vadd.f32 %v2715, %v2939
        %v3044 = vadd.f32 %v2716, %v2944
        %v3045 = vadd.f32 %v2717, %v2947
        %v3046 = vadd.f32 %v2718, %v2952
        %v3047 = vadd.f32 %v2719, %v2955
        %v3048 = vadd.f32 %v2720, %v2960
        %v3049 = vadd.f32 %v2721, %v2963
        %v3050 = vadd.f32 %v2722, %v2968
        %v3051 = vadd.f32 %v2723, %v2971
        %v3052 = vadd.f32 %v2724, %v2976
        %v3053 = vadd.f32 %v2725, %v2979
        %v3054 = vadd.f32 %v2726, %v2984
        %v3055 = vadd.f32 %v2727, %v2987
        %v3056 = vadd.f32 %v2728, %v2992
        %v3057 = vadd.f32 %v2729, %v2995
        %v3058 = vadd.f32 %v2730, %v3000
        %v3059 = vadd.f32 %v2731, %v3003
        %v3060 = vadd.f32 %v2732, %v3008
        %v3061 = vadd.f32 %v2733, %v3011
        %v3062 = vadd.f32 %v2734, %v3016
        %v3063 = vadd.f32 %v2735, %v3019
        %v3064 = vadd.f32 %v2736, %v3024
        %v3065 = vadd.f32 %v2737, %v3027
        %v3066 = vld [vmem:[%s2] sm:$0x1]
        %v3068 = vlaneseq
        %v3069 = vshrl.u32 %v3068, 7
        %v3070 = vsub.s32 0, %v3069
        %v3071 = vrot.slane %v3066, %v3070
        %v3073 = vadd.f32 %v3030, %v3071
        %v3074 = vadd.f32 %v3031, %v3071
        %v3075 = vadd.f32 %v3032, %v3071
        %v3076 = vadd.f32 %v3033, %v3071
        %v3077 = vadd.f32 %v3034, %v3071
        %v3078 = vadd.f32 %v3035, %v3071
        %v3079 = vadd.f32 %v3036, %v3071
        %v3080 = vadd.f32 %v3037, %v3071
        %v3081 = vadd.f32 %v3038, %v3071
        %v3082 = vadd.f32 %v3039, %v3071
        %v3083 = vadd.f32 %v3040, %v3071
        %v3084 = vadd.f32 %v3041, %v3071
        %v3085 = vadd.f32 %v3042, %v3071
        %v3086 = vadd.f32 %v3043, %v3071
        %v3087 = vadd.f32 %v3044, %v3071
        %v3088 = vadd.f32 %v3045, %v3071
        %v3089 = vadd.f32 %v3046, %v3071
        %v3090 = vadd.f32 %v3047, %v3071
        %v3091 = vadd.f32 %v3048, %v3071
        %v3092 = vadd.f32 %v3049, %v3071
        %v3093 = vadd.f32 %v3050, %v3071
        %v3094 = vadd.f32 %v3051, %v3071
        %v3095 = vadd.f32 %v3052, %v3071
        %v3096 = vadd.f32 %v3053, %v3071
        %v3097 = vadd.f32 %v3054, %v3071
        %v3098 = vadd.f32 %v3055, %v3071
        %v3099 = vadd.f32 %v3056, %v3071
        %v3100 = vadd.f32 %v3057, %v3071
        %v3101 = vadd.f32 %v3058, %v3071
        %v3102 = vadd.f32 %v3059, %v3071
        %v3103 = vadd.f32 %v3060, %v3071
        %v3104 = vadd.f32 %v3061, %v3071
        %v3105 = vadd.f32 %v3062, %v3071
        %v3106 = vadd.f32 %v3063, %v3071
        %v3107 = vadd.f32 %v3064, %v3071
        %v3108 = vadd.f32 %v3065, %v3071
        %vm3109 = vcmp.gt.f32.partialorder %v3073, 0.0
        %vm3110 = vcmp.gt.f32.partialorder %v3074, 0.0
        %vm3111 = vcmp.gt.f32.partialorder %v3075, 0.0
        %vm3112 = vcmp.gt.f32.partialorder %v3076, 0.0
        %vm3113 = vcmp.gt.f32.partialorder %v3077, 0.0
        %vm3114 = vcmp.gt.f32.partialorder %v3078, 0.0
        %vm3115 = vcmp.gt.f32.partialorder %v3079, 0.0
        %vm3116 = vcmp.gt.f32.partialorder %v3080, 0.0
        %vm3117 = vcmp.gt.f32.partialorder %v3081, 0.0
        %vm3118 = vcmp.gt.f32.partialorder %v3082, 0.0
        %vm3119 = vcmp.gt.f32.partialorder %v3083, 0.0
        %vm3120 = vcmp.gt.f32.partialorder %v3084, 0.0
        %vm3121 = vcmp.gt.f32.partialorder %v3085, 0.0
        %vm3122 = vcmp.gt.f32.partialorder %v3086, 0.0
        %vm3123 = vcmp.gt.f32.partialorder %v3087, 0.0
        %vm3124 = vcmp.gt.f32.partialorder %v3088, 0.0
        %vm3125 = vcmp.gt.f32.partialorder %v3089, 0.0
        %vm3126 = vcmp.gt.f32.partialorder %v3090, 0.0
        %vm3127 = vcmp.gt.f32.partialorder %v3091, 0.0
        %vm3128 = vcmp.gt.f32.partialorder %v3092, 0.0
        %vm3129 = vcmp.gt.f32.partialorder %v3093, 0.0
        %vm3130 = vcmp.gt.f32.partialorder %v3094, 0.0
        %vm3131 = vcmp.gt.f32.partialorder %v3095, 0.0
        %vm3132 = vcmp.gt.f32.partialorder %v3096, 0.0
        %vm3133 = vcmp.gt.f32.partialorder %v3097, 0.0
        %vm3134 = vcmp.gt.f32.partialorder %v3098, 0.0
        %vm3135 = vcmp.gt.f32.partialorder %v3099, 0.0
        %vm3136 = vcmp.gt.f32.partialorder %v3100, 0.0
        %vm3137 = vcmp.gt.f32.partialorder %v3101, 0.0
        %vm3138 = vcmp.gt.f32.partialorder %v3102, 0.0
        %vm3139 = vcmp.gt.f32.partialorder %v3103, 0.0
        %vm3140 = vcmp.gt.f32.partialorder %v3104, 0.0
        %vm3141 = vcmp.gt.f32.partialorder %v3105, 0.0
        %vm3142 = vcmp.gt.f32.partialorder %v3106, 0.0
        %vm3143 = vcmp.gt.f32.partialorder %v3107, 0.0
        %vm3144 = vcmp.gt.f32.partialorder %v3108, 0.0
        %v3145 = vmul.f32 %v3073, 0.1
        %v3146 = vmul.f32 %v3074, 0.1
        %v3147 = vmul.f32 %v3075, 0.1
        %v3148 = vmul.f32 %v3076, 0.1
        %v3149 = vmul.f32 %v3077, 0.1
        %v3150 = vmul.f32 %v3078, 0.1
        %v3151 = vmul.f32 %v3079, 0.1
        %v3152 = vmul.f32 %v3080, 0.1
        %v3153 = vmul.f32 %v3081, 0.1
        %v3154 = vmul.f32 %v3082, 0.1
        %v3155 = vmul.f32 %v3083, 0.1
        %v3156 = vmul.f32 %v3084, 0.1
        %v3157 = vmul.f32 %v3085, 0.1
        %v3158 = vmul.f32 %v3086, 0.1
        %v3159 = vmul.f32 %v3087, 0.1
        %v3160 = vmul.f32 %v3088, 0.1
        %v3161 = vmul.f32 %v3089, 0.1
        %v3162 = vmul.f32 %v3090, 0.1
        %v3163 = vmul.f32 %v3091, 0.1
        %v3164 = vmul.f32 %v3092, 0.1
        %v3165 = vmul.f32 %v3093, 0.1
        %v3166 = vmul.f32 %v3094, 0.1
        %v3167 = vmul.f32 %v3095, 0.1
        %v3168 = vmul.f32 %v3096, 0.1
        %v3169 = vmul.f32 %v3097, 0.1
        %v3170 = vmul.f32 %v3098, 0.1
        %v3171 = vmul.f32 %v3099, 0.1
        %v3172 = vmul.f32 %v3100, 0.1
        %v3173 = vmul.f32 %v3101, 0.1
        %v3174 = vmul.f32 %v3102, 0.1
        %v3175 = vmul.f32 %v3103, 0.1
        %v3176 = vmul.f32 %v3104, 0.1
        %v3177 = vmul.f32 %v3105, 0.1
        %v3178 = vmul.f32 %v3106, 0.1
        %v3179 = vmul.f32 %v3107, 0.1
        %v3180 = vmul.f32 %v3108, 0.1
        %v3181 = vsel %vm3109, %v3073, %v3145
        %v3182 = vsel %vm3110, %v3074, %v3146
        %v3183 = vsel %vm3111, %v3075, %v3147
        %v3184 = vsel %vm3112, %v3076, %v3148
        %v3185 = vsel %vm3113, %v3077, %v3149
        %v3186 = vsel %vm3114, %v3078, %v3150
        %v3187 = vsel %vm3115, %v3079, %v3151
        %v3188 = vsel %vm3116, %v3080, %v3152
        %v3189 = vsel %vm3117, %v3081, %v3153
        %v3190 = vsel %vm3118, %v3082, %v3154
        %v3191 = vsel %vm3119, %v3083, %v3155
        %v3192 = vsel %vm3120, %v3084, %v3156
        %v3193 = vsel %vm3121, %v3085, %v3157
        %v3194 = vsel %vm3122, %v3086, %v3158
        %v3195 = vsel %vm3123, %v3087, %v3159
        %v3196 = vsel %vm3124, %v3088, %v3160
        %v3197 = vsel %vm3125, %v3089, %v3161
        %v3198 = vsel %vm3126, %v3090, %v3162
        %v3199 = vsel %vm3127, %v3091, %v3163
        %v3200 = vsel %vm3128, %v3092, %v3164
        %v3201 = vsel %vm3129, %v3093, %v3165
        %v3202 = vsel %vm3130, %v3094, %v3166
        %v3203 = vsel %vm3131, %v3095, %v3167
        %v3204 = vsel %vm3132, %v3096, %v3168
        %v3205 = vsel %vm3133, %v3097, %v3169
        %v3206 = vsel %vm3134, %v3098, %v3170
        %v3207 = vsel %vm3135, %v3099, %v3171
        %v3208 = vsel %vm3136, %v3100, %v3172
        %v3209 = vsel %vm3137, %v3101, %v3173
        %v3210 = vsel %vm3138, %v3102, %v3174
        %v3211 = vsel %vm3139, %v3103, %v3175
        %v3212 = vsel %vm3140, %v3104, %v3176
        %v3213 = vsel %vm3141, %v3105, %v3177
        %v3214 = vsel %vm3142, %v3106, %v3178
        %v3215 = vsel %vm3143, %v3107, %v3179
        %v3216 = vsel %vm3144, %v3108, %v3180
        %3217 = vst [vmem:[%s177] sm:$0xff] %v3181
        %3218 = vst [vmem:[%s177 + $0x8] sm:$0xff] %v3182
        %3219 = vst [vmem:[%s177 + $0x10] sm:$0xff] %v3183
        %3220 = vst [vmem:[%s177 + $0x18] sm:$0xff] %v3184
        %3221 = vst [vmem:[%s177 + $0x20] sm:$0xff] %v3185
        %3222 = vst [vmem:[%s177 + $0x28] sm:$0xff] %v3186
        %3223 = vst [vmem:[%s177 + $0x30] sm:$0xff] %v3187
        %3224 = vst [vmem:[%s177 + $0x38] sm:$0xff] %v3188
        %3225 = vst [vmem:[%s177 + $0x40] sm:$0xff] %v3189
        %3226 = vst [vmem:[%s177 + $0x48] sm:$0xff] %v3190
        %3227 = vst [vmem:[%s177 + $0x50] sm:$0xff] %v3191
        %3228 = vst [vmem:[%s177 + $0x58] sm:$0xff] %v3192
        %3229 = vst [vmem:[%s177 + $0x60] sm:$0xff] %v3193
        %3230 = vst [vmem:[%s177 + $0x68] sm:$0xff] %v3194
        %3231 = vst [vmem:[%s177 + $0x70] sm:$0xff] %v3195
        %3232 = vst [vmem:[%s177 + $0x78] sm:$0xff] %v3196
        %3233 = vst [vmem:[%s177 + $0x80] sm:$0xff] %v3197
        %3234 = vst [vmem:[%s177 + $0x88] sm:$0xff] %v3198
        %3235 = vst [vmem:[%s177 + $0x90] sm:$0xff] %v3199
        %3236 = vst [vmem:[%s177 + $0x98] sm:$0xff] %v3200
        %3237 = vst [vmem:[%s177 + $0xa0] sm:$0xff] %v3201
        %3238 = vst [vmem:[%s177 + $0xa8] sm:$0xff] %v3202
        %3239 = vst [vmem:[%s177 + $0xb0] sm:$0xff] %v3203
        %3240 = vst [vmem:[%s177 + $0xb8] sm:$0xff] %v3204
        %3241 = vst [vmem:[%s177 + $0xc0] sm:$0xff] %v3205
        %3242 = vst [vmem:[%s177 + $0xc8] sm:$0xff] %v3206
        %3243 = vst [vmem:[%s177 + $0xd0] sm:$0xff] %v3207
        %3244 = vst [vmem:[%s177 + $0xd8] sm:$0xff] %v3208
        %3245 = vst [vmem:[%s177 + $0xe0] sm:$0xff] %v3209
        %3246 = vst [vmem:[%s177 + $0xe8] sm:$0xff] %v3210
        %3247 = vst [vmem:[%s177 + $0xf0] sm:$0xff] %v3211
        %3248 = vst [vmem:[%s177 + $0xf8] sm:$0xff] %v3212
        %3249 = vst [vmem:[%s177 + $0x100] sm:$0xff] %v3213
        %3250 = vst [vmem:[%s177 + $0x108] sm:$0xff] %v3214
        %3251 = vst [vmem:[%s177 + $0x110] sm:$0xff] %v3215
        %3252 = vst [vmem:[%s177 + $0x118] sm:$0xff] %v3216
        %s3253 = sand.u32 %s107, 1
        %s3254 = scalar_lea.sflag [#allocation3], %s3253
        %s3255 = sand.u32 %s107, 1
        %s3256 = smul.addr %s3255, 288
        %s3257 = scalar_lea.vmem [#allocation2], %s3256
        // Predicated region
        $region33: #{tpu_custom_call.1} parent=31 // pred_check
          %p3258 = pneg %p117
        $region34: #{tpu_custom_call.1} parent=31 // pred_check_branch
          %3260 = sbr.rel (%p3258) target = $region36
        $region35: #{tpu_custom_call.1} parent=31 // pred_region
          %s3261 = smul.u32 36, %s22
          %s3263 = ssub.s32 4608, 4608
          %3264 = vsyncadd %s3254, %s3263
          %s3265 = smul.addr %s21, 36
          %s3266 = sadd.s32 %s3261, %s3265
          %s3267 = smul.addr %s3266, 128
          %s3268 = scalar_lea.hbm %s3, %s3267
          %s3269 = sshll.u32 %s3257, 4
          %s3270 = int_to_ptr.vmem [resolvable:$true] %s3269
          %3275 = dma.vmem_to_hbm [thread:$0]  %s3270, 4608, %s3268, %s3254, 128, 128, 8
        $region36: #{tpu_custom_call.1} parent=31 // pred_fallthru
          _
      $region32: #{tpu_custom_call.1} parent=5 // pred_fallthru
        _
      %p3276 = scmp.le.s32.totalorder 2, %s12
      // Predicated region
      $region37: #{tpu_custom_call.1} parent=5 // pred_check
        %p3277 = pneg %p3276
      $region38: #{tpu_custom_call.1} parent=5 // pred_check_branch
        %3279 = sbr.rel (%p3277) target = $region40
      $region39: #{tpu_custom_call.1} parent=5 // pred_region
        %s3280 = ssub.s32 %s12, 2
        // Predicated region
        $region41: #{tpu_custom_call.1} parent=39 // pred_check
          %p3281 = pneg %p123
        $region42: #{tpu_custom_call.1} parent=39 // pred_check_branch
          %3283 = sbr.rel (%p3281) target = $region44
        $region43: #{tpu_custom_call.1} parent=39 // pred_region
          %s3284 = sand.u32 %s108, 1
          %s3285 = scalar_lea.sflag [#allocation3], %s3284
          %s3286 = sand.u32 %s108, 1
          %s3287 = smul.addr %s3286, 288
          %s3288 = scalar_lea.vmem [#allocation2], %s3287
          %3289 = dma.done %s3285, 4608
        $region44: #{tpu_custom_call.1} parent=39 // pred_fallthru
          _
      $region40: #{tpu_custom_call.1} parent=5 // pred_fallthru
        _
    $region6: #{tpu_custom_call.1} parent=1 // loop_footer
      %s16 = sadd.s32 1, %s12
    $region7: #{tpu_custom_call.1} parent=1 // loop_footer_branch
      %11 = sbr.rel target = $region3
    $region8: #{tpu_custom_call.1} parent=1 // loop_exit
      _
    %3290 = vsyncpa [#allocation3], 1
    %s3291 = scalar_lea.sflag [#allocation3], 1
    %3292 = vsyncpa %s3291, 1

</llo_original>
